<compile_context>
chip_gen: v6e
topology: v6e:2x2x1
jax: 0.10.0
libtpu: 0.0.40
codegen_flags: <defaults>
</compile_context>

<pallas_src>
from functools import partial

import jax
import jax.numpy as jnp
from jax.experimental import pallas as pl
from jax.experimental.pallas import tpu as pltpu


def _round_up(x, m):
    return ((x + m - 1) // m) * m


def _pick_row_block(n):
    for nb in (512, 256, 128, 64, 32, 16, 8):
        if n % nb == 0:
            return nb
    return n  # single block equal to the full dim (allowed by BlockSpec rules)


def _pad_gate_cols(w, h, hp):
    """(in, 4H) -> (in, 4Hp): zero-pad each PyTorch gate block (i,f,g,o)."""
    if hp == h:
        return w
    in_dim = w.shape[0]
    w4 = w.reshape(in_dim, 4, h)
    w4 = jnp.pad(w4, ((0, 0), (0, 0), (0, hp - h)))
    return w4.reshape(in_dim, 4 * hp)


def _pad_rows(w, h, hp):
    """(H, cols) -> (Hp, cols): zero-pad the hidden contraction dim."""
    if hp == h:
        return w
    return jnp.pad(w, ((0, hp - h), (0, 0)))


def _uncertainty_lstm_kernel(x_ref, wih0_ref, whh0_ref, b0_ref,
                             w1_ref, b1_ref, fcw_ref, fcb_ref,
                             out_ref, hn_ref, cn_ref, hist_ref,
                             *, hp, time_step, n_quantiles):
    """One row-block of the 2-layer LSTM recurrence + batched quantile head.

    x_ref    : (NB, D)  f32     wih0_ref : (D, 4Hp)  bf16   whh0_ref : (Hp, 4Hp) bf16
    b0_ref   : (1, 4Hp) f32     w1_ref   : (2Hp, 4Hp) bf16  (stacked [wih1; whh1])
    b1_ref   : (1, 4Hp) f32     fcw_ref  : (Hp, Q) bf16     fcb_ref  : (1, Q) f32
    out_ref  : (T, NB, Q) f32   hn_ref/cn_ref : (2, NB, Hp) f32
    hist_ref : (T, NB, Hp) bf16 scratch (per-step h1 for the batched head)
    """
    Hp, T, Q = hp, time_step, n_quantiles
    nb = x_ref.shape[0]

    x_bf = x_ref[...].astype(jnp.bfloat16)
    wih0 = wih0_ref[...]
    whh0 = whh0_ref[...]
    w1 = w1_ref[...]
    wih1 = w1[:Hp, :]
    fcw = fcw_ref[...]

    # Time-invariant layer-0 input projection + hoisted bias broadcasts
    # (JAX does not CSE broadcast_in_dim inside the loop).
    xp0 = (jnp.dot(x_bf, wih0, preferred_element_type=jnp.float32)
           + jnp.broadcast_to(b0_ref[...], (nb, 4 * Hp)))
    b1b = jnp.broadcast_to(b1_ref[...], (nb, 4 * Hp))

    def gates(pre, c):
        # PyTorch gate order: i, f, g, o — slices are 128-lane aligned (Hp%128==0).
        i = jax.nn.sigmoid(pre[:, 0 * Hp:1 * Hp])
        f = jax.nn.sigmoid(pre[:, 1 * Hp:2 * Hp])
        g = jnp.tanh(pre[:, 2 * Hp:3 * Hp])
        o = jax.nn.sigmoid(pre[:, 3 * Hp:4 * Hp])
        c_new = f * c + i * g
        return o * jnp.tanh(c_new), c_new

    def gates_zero_c(pre):
        # Peeled t=0 cell: c == 0, so the forget path vanishes.
        i = jax.nn.sigmoid(pre[:, 0 * Hp:1 * Hp])
        g = jnp.tanh(pre[:, 2 * Hp:3 * Hp])
        o = jax.nn.sigmoid(pre[:, 3 * Hp:4 * Hp])
        c_new = i * g
        return o * jnp.tanh(c_new), c_new

    # ---- t = 0 (peeled: h == c == 0 => skip the recurrent matmuls) ----
    h0, c0 = gates_zero_c(xp0)
    pre1 = jnp.dot(h0.astype(jnp.bfloat16), wih1,
                   preferred_element_type=jnp.float32) + b1b
    h1, c1 = gates_zero_c(pre1)
    hist_ref[0] = h1.astype(jnp.bfloat16)

    # ---- t = 1 .. T-1 (fully unrolled serial recurrence) ----
    def step(t, carry):
        h0, c0, h1, c1 = carry
        pre0 = xp0 + jnp.dot(h0.astype(jnp.bfloat16), whh0,
                             preferred_element_type=jnp.float32)
        h0, c0 = gates(pre0, c0)
        # Fused layer-1 matmul: [h0_t ; h1_{t-1}] @ [wih1 ; whh1]
        hc = jnp.concatenate(
            [h0.astype(jnp.bfloat16), h1.astype(jnp.bfloat16)], axis=-1)
        pre1 = jnp.dot(hc, w1, preferred_element_type=jnp.float32) + b1b
        h1, c1 = gates(pre1, c1)
        hist_ref[t] = h1.astype(jnp.bfloat16)
        return h0, c0, h1, c1

    h0, c0, h1, c1 = jax.lax.fori_loop(1, T, step, (h0, c0, h1, c1),
                                       unroll=True)

    # ---- quantile head: one batched matmul over all timesteps ----
    hh = hist_ref[...].reshape(T * nb, Hp)
    y = (jnp.dot(hh, fcw, preferred_element_type=jnp.float32)
         + jnp.broadcast_to(fcb_ref[...], (T * nb, Q)))
    out_ref[...] = y.reshape(T, nb, Q)

    hn_ref[0] = h0
    hn_ref[1] = h1
    cn_ref[0] = c0
    cn_ref[1] = c1


def uncertainty_rnn_forward(feature, params, *, series_dim, embedding_dim,
                            hidden_size, time_step, n_quantiles):
    """Mirrors UncertaintyRNN.forward (eval mode).

    feature: (b, series_dim, raw_input_dim) float32
    returns: uncertainty (b*series_dim, time_step, n_quantiles),
             (h_n, c_n) each (2, b*series_dim, hidden_size)
    """
    b = feature.shape[0]
    emb = params["embedding"]                                        # (S, E)
    emb_b = jnp.broadcast_to(emb[None], (b, series_dim, embedding_dim))
    feat = jnp.concatenate([feature.astype(jnp.float32), emb_b], axis=-1)
    x = feat.reshape(b * series_dim, -1)                             # (N, D)
    N, D = x.shape
    H, Q, T = hidden_size, n_quantiles, time_step
    Hp = _round_up(H, 128)

    # Pad gate blocks / hidden contraction dim to 128 lanes; cast MXU operands
    # to bf16 once (biases + element-wise math stay f32).
    wih0 = _pad_gate_cols(params["w_ih0"], H, Hp).astype(jnp.bfloat16)
    whh0 = _pad_gate_cols(_pad_rows(params["w_hh0"], H, Hp), H, Hp).astype(jnp.bfloat16)
    b0 = _pad_gate_cols(params["b0"], H, Hp)
    wih1 = _pad_gate_cols(_pad_rows(params["w_ih1"], H, Hp), H, Hp)
    whh1 = _pad_gate_cols(_pad_rows(params["w_hh1"], H, Hp), H, Hp)
    w1 = jnp.concatenate([wih1, whh1], axis=0).astype(jnp.bfloat16)  # (2Hp, 4Hp)
    b1 = _pad_gate_cols(params["b1"], H, Hp)
    fcw = _pad_rows(params["fc_w"], H, Hp).astype(jnp.bfloat16)      # (Hp, Q)
    fcb = params["fc_b"]                                             # (1, Q)

    NB = _pick_row_block(N)
    grid = (N // NB,)
    rep2 = lambda i: (0, 0)

    flops = int(N * T * 24 * Hp * Hp + 8 * N * D * Hp + 2 * N * T * Hp * Q)
    transcendentals = int(N * T * 10 * Hp)
    bytes_accessed = int(x.size * 4
                         + (wih0.size + whh0.size + w1.size + fcw.size) * 2
                         + (b0.size + b1.size + fcb.size) * 4
                         + (T * N * Q + 4 * N * Hp) * 4)

    kernel = partial(_uncertainty_lstm_kernel, hp=Hp, time_step=T,
                     n_quantiles=Q)

    out_t, h_n, c_n = pl.pallas_call(
        kernel,
        out_shape=(
            jax.ShapeDtypeStruct((T, N, Q), jnp.float32),
            jax.ShapeDtypeStruct((2, N, Hp), jnp.float32),
            jax.ShapeDtypeStruct((2, N, Hp), jnp.float32),
        ),
        grid=grid,
        in_specs=[
            pl.BlockSpec((NB, D), lambda i: (i, 0)),
            pl.BlockSpec((D, 4 * Hp), rep2),
            pl.BlockSpec((Hp, 4 * Hp), rep2),
            pl.BlockSpec((1, 4 * Hp), rep2),
            pl.BlockSpec((2 * Hp, 4 * Hp), rep2),
            pl.BlockSpec((1, 4 * Hp), rep2),
            pl.BlockSpec((Hp, Q), rep2),
            pl.BlockSpec((1, Q), rep2),
        ],
        out_specs=(
            pl.BlockSpec((T, NB, Q), lambda i: (0, i, 0)),
            pl.BlockSpec((2, NB, Hp), lambda i: (0, i, 0)),
            pl.BlockSpec((2, NB, Hp), lambda i: (0, i, 0)),
        ),
        scratch_shapes=[pltpu.VMEM((T, NB, Hp), jnp.bfloat16)],
        compiler_params=pltpu.CompilerParams(
            dimension_semantics=("parallel",),
            vmem_limit_bytes=32 * 1024 * 1024,
        ),
        cost_estimate=pl.CostEstimate(flops=flops,
                                      transcendentals=transcendentals,
                                      bytes_accessed=bytes_accessed),
    )(x, wih0, whh0, b0, w1, b1, fcw, fcb)

    # Tiny output: keep the (T,N,Q)->(N,T,Q) transpose in XLA for robustness.
    uncertainty = jnp.transpose(out_t, (1, 0, 2))        # (N, T, Q)
    return uncertainty, (h_n[:, :, :H], c_n[:, :, :H])


def _reference_forward(feature, params, *, series_dim, embedding_dim,
                       hidden_size, time_step, n_quantiles):
    """Pure-JAX f32 reference of the same math (for correctness check)."""
    b = feature.shape[0]
    emb_b = jnp.broadcast_to(params["embedding"][None],
                             (b, series_dim, embedding_dim))
    x = jnp.concatenate([feature.astype(jnp.float32), emb_b],
                        axis=-1).reshape(b * series_dim, -1)
    N = x.shape[0]
    H = hidden_size

    def cell(pre, c):
        i = jax.nn.sigmoid(pre[:, 0:H])
        f = jax.nn.sigmoid(pre[:, H:2 * H])
        g = jnp.tanh(pre[:, 2 * H:3 * H])
        o = jax.nn.sigmoid(pre[:, 3 * H:4 * H])
        c_new = f * c + i * g
        return o * jnp.tanh(c_new), c_new

    h0 = c0 = h1 = c1 = jnp.zeros((N, H), jnp.float32)
    xp0 = x @ params["w_ih0"] + params["b0"]
    outs = []
    for _ in range(time_step):
        h0, c0 = cell(xp0 + h0 @ params["w_hh0"], c0)
        h1, c1 = cell(h0 @ params["w_ih1"] + params["b1"] + h1 @ params["w_hh1"], c1)
        outs.append(h1 @ params["fc_w"] + params["fc_b"])
    uncertainty = jnp.stack(outs, axis=1)
    return uncertainty, (jnp.stack([h0, h1]), jnp.stack([c0, c1]))


def init_params(key, *, series_dim, embedding_dim, raw_input_dim,
                hidden_size, n_quantiles):
    H = hidden_size
    D = raw_input_dim + embedding_dim
    stdv = 1.0 / float(H) ** 0.5
    ks = jax.random.split(key, 12)

    def u(k, shape):
        return jax.random.uniform(k, shape, jnp.float32, -stdv, stdv)

    return {
        "embedding": jax.random.normal(ks[0], (series_dim, embedding_dim), jnp.float32),
        # LSTM weights stored transposed vs PyTorch: (in_features, 4H)
        "w_ih0": u(ks[1], (D, 4 * H)),
        "w_hh0": u(ks[2], (H, 4 * H)),
        "b0": u(ks[3], (1, 4 * H)) + u(ks[4], (1, 4 * H)),  # b_ih_l0 + b_hh_l0
        "w_ih1": u(ks[5], (H, 4 * H)),
        "w_hh1": u(ks[6], (H, 4 * H)),
        "b1": u(ks[7], (1, 4 * H)) + u(ks[8], (1, 4 * H)),  # b_ih_l1 + b_hh_l1
        "fc_w": u(ks[9], (H, n_quantiles)),
        "fc_b": u(ks[10], (1, n_quantiles)),
    }


if __name__ == "__main__":
    # Small, forward-consistent shapes.
    batch = 2
    series_dim = 4
    raw_input_dim = 3
    embedding_dim = 2
    hidden_size = 32
    time_step = 8
    n_quantiles = 2  # len(quantile_target)

    key = jax.random.PRNGKey(0)
    pkey, xkey = jax.random.split(key)
    params = init_params(pkey, series_dim=series_dim, embedding_dim=embedding_dim,
                         raw_input_dim=raw_input_dim, hidden_size=hidden_size,
                         n_quantiles=n_quantiles)
    feature = jax.random.normal(xkey, (batch, series_dim, raw_input_dim), jnp.float32)

    cfg = dict(series_dim=series_dim, embedding_dim=embedding_dim,
               hidden_size=hidden_size, time_step=time_step,
               n_quantiles=n_quantiles)

    uncertainty, (h_n, c_n) = uncertainty_rnn_forward(feature, params, **cfg)
    jax.block_until_ready((uncertainty, h_n, c_n))

    assert uncertainty.shape == (batch * series_dim, time_step, n_quantiles)
    assert h_n.shape == (2, batch * series_dim, hidden_size)
    assert c_n.shape == (2, batch * series_dim, hidden_size)

    ref_u, (ref_h, ref_c) = _reference_forward(feature, params, **cfg)
    # Tolerance accounts for bf16 MXU inputs (element-wise math stays f32).
    assert jnp.allclose(uncertainty, ref_u, atol=3e-2, rtol=3e-2)
    assert jnp.allclose(h_n, ref_h, atol=3e-2, rtol=3e-2)
    assert jnp.allclose(c_n, ref_c, atol=3e-2, rtol=3e-2)

    print("KERNEL_OK")
</pallas_src>

<mosaic_0001>
module attributes {stable_mosaic.version = 11 : i64} {
  func.func @_uncertainty_lstm_kernel(%arg0: i32, %arg1: memref<8x5xf32, #tpu.memory_space<vmem>>, %arg2: memref<5x512xbf16, #tpu.memory_space<vmem>>, %arg3: memref<128x512xbf16, #tpu.memory_space<vmem>>, %arg4: memref<1x512xf32, #tpu.memory_space<vmem>>, %arg5: memref<256x512xbf16, #tpu.memory_space<vmem>>, %arg6: memref<1x512xf32, #tpu.memory_space<vmem>>, %arg7: memref<128x2xbf16, #tpu.memory_space<vmem>>, %arg8: memref<1x2xf32, #tpu.memory_space<vmem>>, %arg9: memref<8x8x2xf32, #tpu.memory_space<vmem>>, %arg10: memref<2x8x128xf32, #tpu.memory_space<vmem>>, %arg11: memref<2x8x128xf32, #tpu.memory_space<vmem>>, %arg12: memref<8x8x128xbf16, #tpu.memory_space<vmem>>) attributes {dimension_semantics = [#tpu.dimension_semantics<parallel>], iteration_bounds = array<i64: 1>, scalar_prefetch = 0 : i64, scratch_operands = 1 : i64, tpu.core_type = #tpu.core_type<tc>, window_params = [{transform_indices = @transform_0, window_bounds = array<i64: 8, 5>}, {pipeline_mode = #tpu.pipeline_mode<synchronous>, transform_indices = @transform_1, window_bounds = array<i64: 5, 512>}, {pipeline_mode = #tpu.pipeline_mode<synchronous>, transform_indices = @transform_2, window_bounds = array<i64: 128, 512>}, {pipeline_mode = #tpu.pipeline_mode<synchronous>, transform_indices = @transform_3, window_bounds = array<i64: 1, 512>}, {pipeline_mode = #tpu.pipeline_mode<synchronous>, transform_indices = @transform_4, window_bounds = array<i64: 256, 512>}, {pipeline_mode = #tpu.pipeline_mode<synchronous>, transform_indices = @transform_5, window_bounds = array<i64: 1, 512>}, {pipeline_mode = #tpu.pipeline_mode<synchronous>, transform_indices = @transform_6, window_bounds = array<i64: 128, 2>}, {pipeline_mode = #tpu.pipeline_mode<synchronous>, transform_indices = @transform_7, window_bounds = array<i64: 1, 2>}, {transform_indices = @transform_8, window_bounds = array<i64: 8, 8, 2>}, {transform_indices = @transform_9, window_bounds = array<i64: 2, 8, 128>}, {transform_indices = @transform_10, window_bounds = array<i64: 2, 8, 128>}]} {
    %c0 = arith.constant 0 : index
    %c0_0 = arith.constant 0 : index
    %0 = vector.load %arg1[%c0, %c0_0] : memref<8x5xf32, #tpu.memory_space<vmem>>, vector<8x5xf32>
    %1 = arith.truncf %0 : vector<8x5xf32> to vector<8x5xbf16>
    %c0_1 = arith.constant 0 : index
    %c0_2 = arith.constant 0 : index
    %2 = vector.load %arg2[%c0_1, %c0_2] : memref<5x512xbf16, #tpu.memory_space<vmem>>, vector<5x512xbf16>
    %c0_3 = arith.constant 0 : index
    %c0_4 = arith.constant 0 : index
    %3 = vector.load %arg3[%c0_3, %c0_4] : memref<128x512xbf16, #tpu.memory_space<vmem>>, vector<128x512xbf16>
    %c0_5 = arith.constant 0 : index
    %c0_6 = arith.constant 0 : index
    %4 = vector.load %arg5[%c0_5, %c0_6] : memref<256x512xbf16, #tpu.memory_space<vmem>>, vector<256x512xbf16>
    %5 = vector.extract_strided_slice %4 {offsets = [0, 0], sizes = [128, 512], strides = [1, 1]} : vector<256x512xbf16> to vector<128x512xbf16>
    %c0_7 = arith.constant 0 : index
    %c0_8 = arith.constant 0 : index
    %6 = vector.load %arg7[%c0_7, %c0_8] : memref<128x2xbf16, #tpu.memory_space<vmem>>, vector<128x2xbf16>
    %cst = arith.constant dense<0.000000e+00> : vector<8x512xf32>
    %7 = tpu.matmul %1, %2, %cst {dimension_numbers = #tpu.dot_dimension_numbers<[1], [0], [0], [1], [0, 0, 1, 1], [], []>} : vector<8x5xbf16>, vector<5x512xbf16>, vector<8x512xf32> -> vector<8x512xf32>
    %c0_9 = arith.constant 0 : index
    %c0_10 = arith.constant 0 : index
    %8 = vector.load %arg4[%c0_9, %c0_10] : memref<1x512xf32, #tpu.memory_space<vmem>>, vector<1x512xf32>
    %9 = vector.shape_cast %8 : vector<1x512xf32> to vector<1x512xf32>
    %10 = vector.broadcast %9 : vector<1x512xf32> to vector<8x512xf32>
    %11 = arith.addf %7, %10 : vector<8x512xf32>
    %c0_11 = arith.constant 0 : index
    %c0_12 = arith.constant 0 : index
    %12 = vector.load %arg6[%c0_11, %c0_12] : memref<1x512xf32, #tpu.memory_space<vmem>>, vector<1x512xf32>
    %13 = vector.shape_cast %12 : vector<1x512xf32> to vector<1x512xf32>
    %14 = vector.broadcast %13 : vector<1x512xf32> to vector<8x512xf32>
    %15 = vector.extract_strided_slice %11 {offsets = [0, 0], sizes = [8, 128], strides = [1, 1]} : vector<8x512xf32> to vector<8x128xf32>
    %16 = arith.negf %15 : vector<8x128xf32>
    %17 = math.exp %16 : vector<8x128xf32>
    %cst_13 = arith.constant 1.000000e+00 : f32
    %18 = vector.broadcast %cst_13 : f32 to vector<8x128xf32>
    %19 = arith.addf %18, %17 : vector<8x128xf32>
    %20 = arith.divf %18, %19 : vector<8x128xf32>
    %21 = vector.extract_strided_slice %11 {offsets = [0, 256], sizes = [8, 128], strides = [1, 1]} : vector<8x512xf32> to vector<8x128xf32>
    %22 = math.tanh %21 : vector<8x128xf32>
    %23 = vector.extract_strided_slice %11 {offsets = [0, 384], sizes = [8, 128], strides = [1, 1]} : vector<8x512xf32> to vector<8x128xf32>
    %24 = arith.negf %23 : vector<8x128xf32>
    %25 = math.exp %24 : vector<8x128xf32>
    %cst_14 = arith.constant 1.000000e+00 : f32
    %26 = vector.broadcast %cst_14 : f32 to vector<8x128xf32>
    %27 = arith.addf %26, %25 : vector<8x128xf32>
    %28 = arith.divf %26, %27 : vector<8x128xf32>
    %29 = arith.mulf %20, %22 : vector<8x128xf32>
    %30 = math.tanh %29 : vector<8x128xf32>
    %31 = arith.mulf %28, %30 : vector<8x128xf32>
    %32 = arith.truncf %31 : vector<8x128xf32> to vector<8x128xbf16>
    %cst_15 = arith.constant dense<0.000000e+00> : vector<8x512xf32>
    %33 = tpu.matmul %32, %5, %cst_15 {dimension_numbers = #tpu.dot_dimension_numbers<[1], [0], [0], [1], [0, 0, 1, 1], [], []>} : vector<8x128xbf16>, vector<128x512xbf16>, vector<8x512xf32> -> vector<8x512xf32>
    %34 = arith.addf %33, %14 : vector<8x512xf32>
    %35 = vector.extract_strided_slice %34 {offsets = [0, 0], sizes = [8, 128], strides = [1, 1]} : vector<8x512xf32> to vector<8x128xf32>
    %36 = arith.negf %35 : vector<8x128xf32>
    %37 = math.exp %36 : vector<8x128xf32>
    %cst_16 = arith.constant 1.000000e+00 : f32
    %38 = vector.broadcast %cst_16 : f32 to vector<8x128xf32>
    %39 = arith.addf %38, %37 : vector<8x128xf32>
    %40 = arith.divf %38, %39 : vector<8x128xf32>
    %41 = vector.extract_strided_slice %34 {offsets = [0, 256], sizes = [8, 128], strides = [1, 1]} : vector<8x512xf32> to vector<8x128xf32>
    %42 = math.tanh %41 : vector<8x128xf32>
    %43 = vector.extract_strided_slice %34 {offsets = [0, 384], sizes = [8, 128], strides = [1, 1]} : vector<8x512xf32> to vector<8x128xf32>
    %44 = arith.negf %43 : vector<8x128xf32>
    %45 = math.exp %44 : vector<8x128xf32>
    %cst_17 = arith.constant 1.000000e+00 : f32
    %46 = vector.broadcast %cst_17 : f32 to vector<8x128xf32>
    %47 = arith.addf %46, %45 : vector<8x128xf32>
    %48 = arith.divf %46, %47 : vector<8x128xf32>
    %49 = arith.mulf %40, %42 : vector<8x128xf32>
    %50 = math.tanh %49 : vector<8x128xf32>
    %51 = arith.mulf %48, %50 : vector<8x128xf32>
    %52 = arith.truncf %51 : vector<8x128xf32> to vector<8x128xbf16>
    %c0_18 = arith.constant 0 : index
    %c0_19 = arith.constant 0 : index
    %c0_20 = arith.constant 0 : index
    %53 = vector.load %arg12[%c0_18, %c0_19, %c0_20] : memref<8x8x128xbf16, #tpu.memory_space<vmem>>, vector<1x8x128xbf16>
    %54 = vector.shape_cast %53 : vector<1x8x128xbf16> to vector<8x128xbf16>
    %55 = vector.shape_cast %52 : vector<8x128xbf16> to vector<1x8x128xbf16>
    tpu.vector_store %arg12[%c0_18, %c0_19, %c0_20], %55 {strides = array<i32>} : memref<8x8x128xbf16, #tpu.memory_space<vmem>>, vector<1x8x128xbf16>,
    %c1_i32 = arith.constant 1 : i32
    %56 = arith.truncf %31 : vector<8x128xf32> to vector<8x128xbf16>
    %cst_21 = arith.constant dense<0.000000e+00> : vector<8x512xf32>
    %57 = tpu.matmul %56, %3, %cst_21 {dimension_numbers = #tpu.dot_dimension_numbers<[1], [0], [0], [1], [0, 0, 1, 1], [], []>} : vector<8x128xbf16>, vector<128x512xbf16>, vector<8x512xf32> -> vector<8x512xf32>
    %58 = arith.addf %11, %57 : vector<8x512xf32>
    %59 = vector.extract_strided_slice %58 {offsets = [0, 0], sizes = [8, 128], strides = [1, 1]} : vector<8x512xf32> to vector<8x128xf32>
    %60 = arith.negf %59 : vector<8x128xf32>
    %61 = math.exp %60 : vector<8x128xf32>
    %cst_22 = arith.constant 1.000000e+00 : f32
    %62 = vector.broadcast %cst_22 : f32 to vector<8x128xf32>
    %63 = arith.addf %62, %61 : vector<8x128xf32>
    %64 = arith.divf %62, %63 : vector<8x128xf32>
    %65 = vector.extract_strided_slice %58 {offsets = [0, 128], sizes = [8, 128], strides = [1, 1]} : vector<8x512xf32> to vector<8x128xf32>
    %66 = arith.negf %65 : vector<8x128xf32>
    %67 = math.exp %66 : vector<8x128xf32>
    %cst_23 = arith.constant 1.000000e+00 : f32
    %68 = vector.broadcast %cst_23 : f32 to vector<8x128xf32>
    %69 = arith.addf %68, %67 : vector<8x128xf32>
    %70 = arith.divf %68, %69 : vector<8x128xf32>
    %71 = vector.extract_strided_slice %58 {offsets = [0, 256], sizes = [8, 128], strides = [1, 1]} : vector<8x512xf32> to vector<8x128xf32>
    %72 = math.tanh %71 : vector<8x128xf32>
    %73 = vector.extract_strided_slice %58 {offsets = [0, 384], sizes = [8, 128], strides = [1, 1]} : vector<8x512xf32> to vector<8x128xf32>
    %74 = arith.negf %73 : vector<8x128xf32>
    %75 = math.exp %74 : vector<8x128xf32>
    %cst_24 = arith.constant 1.000000e+00 : f32
    %76 = vector.broadcast %cst_24 : f32 to vector<8x128xf32>
    %77 = arith.addf %76, %75 : vector<8x128xf32>
    %78 = arith.divf %76, %77 : vector<8x128xf32>
    %79 = arith.mulf %70, %29 : vector<8x128xf32>
    %80 = arith.mulf %64, %72 : vector<8x128xf32>
    %81 = arith.addf %79, %80 : vector<8x128xf32>
    %82 = math.tanh %81 : vector<8x128xf32>
    %83 = arith.mulf %78, %82 : vector<8x128xf32>
    %84 = arith.truncf %83 : vector<8x128xf32> to vector<8x128xbf16>
    %85 = arith.truncf %51 : vector<8x128xf32> to vector<8x128xbf16>
    %86 = tpu.concatenate %84, %85 in 1 : vector<8x128xbf16>, vector<8x128xbf16> -> vector<8x256xbf16>
    %cst_25 = arith.constant dense<0.000000e+00> : vector<8x512xf32>
    %87 = tpu.matmul %86, %4, %cst_25 {dimension_numbers = #tpu.dot_dimension_numbers<[1], [0], [0], [1], [0, 0, 1, 1], [], []>} : vector<8x256xbf16>, vector<256x512xbf16>, vector<8x512xf32> -> vector<8x512xf32>
    %88 = arith.addf %87, %14 : vector<8x512xf32>
    %89 = vector.extract_strided_slice %88 {offsets = [0, 0], sizes = [8, 128], strides = [1, 1]} : vector<8x512xf32> to vector<8x128xf32>
    %90 = arith.negf %89 : vector<8x128xf32>
    %91 = math.exp %90 : vector<8x128xf32>
    %cst_26 = arith.constant 1.000000e+00 : f32
    %92 = vector.broadcast %cst_26 : f32 to vector<8x128xf32>
    %93 = arith.addf %92, %91 : vector<8x128xf32>
    %94 = arith.divf %92, %93 : vector<8x128xf32>
    %95 = vector.extract_strided_slice %88 {offsets = [0, 128], sizes = [8, 128], strides = [1, 1]} : vector<8x512xf32> to vector<8x128xf32>
    %96 = arith.negf %95 : vector<8x128xf32>
    %97 = math.exp %96 : vector<8x128xf32>
    %cst_27 = arith.constant 1.000000e+00 : f32
    %98 = vector.broadcast %cst_27 : f32 to vector<8x128xf32>
    %99 = arith.addf %98, %97 : vector<8x128xf32>
    %100 = arith.divf %98, %99 : vector<8x128xf32>
    %101 = vector.extract_strided_slice %88 {offsets = [0, 256], sizes = [8, 128], strides = [1, 1]} : vector<8x512xf32> to vector<8x128xf32>
    %102 = math.tanh %101 : vector<8x128xf32>
    %103 = vector.extract_strided_slice %88 {offsets = [0, 384], sizes = [8, 128], strides = [1, 1]} : vector<8x512xf32> to vector<8x128xf32>
    %104 = arith.negf %103 : vector<8x128xf32>
    %105 = math.exp %104 : vector<8x128xf32>
    %cst_28 = arith.constant 1.000000e+00 : f32
    %106 = vector.broadcast %cst_28 : f32 to vector<8x128xf32>
    %107 = arith.addf %106, %105 : vector<8x128xf32>
    %108 = arith.divf %106, %107 : vector<8x128xf32>
    %109 = arith.mulf %100, %49 : vector<8x128xf32>
    %110 = arith.mulf %94, %102 : vector<8x128xf32>
    %111 = arith.addf %109, %110 : vector<8x128xf32>
    %112 = math.tanh %111 : vector<8x128xf32>
    %113 = arith.mulf %108, %112 : vector<8x128xf32>
    %114 = arith.truncf %113 : vector<8x128xf32> to vector<8x128xbf16>
    %115 = arith.index_cast %c1_i32 : i32 to index
    %c0_29 = arith.constant 0 : index
    %c0_30 = arith.constant 0 : index
    %116 = vector.load %arg12[%115, %c0_29, %c0_30] : memref<8x8x128xbf16, #tpu.memory_space<vmem>>, vector<1x8x128xbf16>
    %117 = vector.shape_cast %116 : vector<1x8x128xbf16> to vector<8x128xbf16>
    %118 = vector.shape_cast %114 : vector<8x128xbf16> to vector<1x8x128xbf16>
    tpu.vector_store %arg12[%115, %c0_29, %c0_30], %118 {strides = array<i32>} : memref<8x8x128xbf16, #tpu.memory_space<vmem>>, vector<1x8x128xbf16>,
    %c2_i32 = arith.constant 2 : i32
    %119 = arith.truncf %83 : vector<8x128xf32> to vector<8x128xbf16>
    %cst_31 = arith.constant dense<0.000000e+00> : vector<8x512xf32>
    %120 = tpu.matmul %119, %3, %cst_31 {dimension_numbers = #tpu.dot_dimension_numbers<[1], [0], [0], [1], [0, 0, 1, 1], [], []>} : vector<8x128xbf16>, vector<128x512xbf16>, vector<8x512xf32> -> vector<8x512xf32>
    %121 = arith.addf %11, %120 : vector<8x512xf32>
    %122 = vector.extract_strided_slice %121 {offsets = [0, 0], sizes = [8, 128], strides = [1, 1]} : vector<8x512xf32> to vector<8x128xf32>
    %123 = arith.negf %122 : vector<8x128xf32>
    %124 = math.exp %123 : vector<8x128xf32>
    %cst_32 = arith.constant 1.000000e+00 : f32
    %125 = vector.broadcast %cst_32 : f32 to vector<8x128xf32>
    %126 = arith.addf %125, %124 : vector<8x128xf32>
    %127 = arith.divf %125, %126 : vector<8x128xf32>
    %128 = vector.extract_strided_slice %121 {offsets = [0, 128], sizes = [8, 128], strides = [1, 1]} : vector<8x512xf32> to vector<8x128xf32>
    %129 = arith.negf %128 : vector<8x128xf32>
    %130 = math.exp %129 : vector<8x128xf32>
    %cst_33 = arith.constant 1.000000e+00 : f32
    %131 = vector.broadcast %cst_33 : f32 to vector<8x128xf32>
    %132 = arith.addf %131, %130 : vector<8x128xf32>
    %133 = arith.divf %131, %132 : vector<8x128xf32>
    %134 = vector.extract_strided_slice %121 {offsets = [0, 256], sizes = [8, 128], strides = [1, 1]} : vector<8x512xf32> to vector<8x128xf32>
    %135 = math.tanh %134 : vector<8x128xf32>
    %136 = vector.extract_strided_slice %121 {offsets = [0, 384], sizes = [8, 128], strides = [1, 1]} : vector<8x512xf32> to vector<8x128xf32>
    %137 = arith.negf %136 : vector<8x128xf32>
    %138 = math.exp %137 : vector<8x128xf32>
    %cst_34 = arith.constant 1.000000e+00 : f32
    %139 = vector.broadcast %cst_34 : f32 to vector<8x128xf32>
    %140 = arith.addf %139, %138 : vector<8x128xf32>
    %141 = arith.divf %139, %140 : vector<8x128xf32>
    %142 = arith.mulf %133, %81 : vector<8x128xf32>
    %143 = arith.mulf %127, %135 : vector<8x128xf32>
    %144 = arith.addf %142, %143 : vector<8x128xf32>
    %145 = math.tanh %144 : vector<8x128xf32>
    %146 = arith.mulf %141, %145 : vector<8x128xf32>
    %147 = arith.truncf %146 : vector<8x128xf32> to vector<8x128xbf16>
    %148 = arith.truncf %113 : vector<8x128xf32> to vector<8x128xbf16>
    %149 = tpu.concatenate %147, %148 in 1 : vector<8x128xbf16>, vector<8x128xbf16> -> vector<8x256xbf16>
    %cst_35 = arith.constant dense<0.000000e+00> : vector<8x512xf32>
    %150 = tpu.matmul %149, %4, %cst_35 {dimension_numbers = #tpu.dot_dimension_numbers<[1], [0], [0], [1], [0, 0, 1, 1], [], []>} : vector<8x256xbf16>, vector<256x512xbf16>, vector<8x512xf32> -> vector<8x512xf32>
    %151 = arith.addf %150, %14 : vector<8x512xf32>
    %152 = vector.extract_strided_slice %151 {offsets = [0, 0], sizes = [8, 128], strides = [1, 1]} : vector<8x512xf32> to vector<8x128xf32>
    %153 = arith.negf %152 : vector<8x128xf32>
    %154 = math.exp %153 : vector<8x128xf32>
    %cst_36 = arith.constant 1.000000e+00 : f32
    %155 = vector.broadcast %cst_36 : f32 to vector<8x128xf32>
    %156 = arith.addf %155, %154 : vector<8x128xf32>
    %157 = arith.divf %155, %156 : vector<8x128xf32>
    %158 = vector.extract_strided_slice %151 {offsets = [0, 128], sizes = [8, 128], strides = [1, 1]} : vector<8x512xf32> to vector<8x128xf32>
    %159 = arith.negf %158 : vector<8x128xf32>
    %160 = math.exp %159 : vector<8x128xf32>
    %cst_37 = arith.constant 1.000000e+00 : f32
    %161 = vector.broadcast %cst_37 : f32 to vector<8x128xf32>
    %162 = arith.addf %161, %160 : vector<8x128xf32>
    %163 = arith.divf %161, %162 : vector<8x128xf32>
    %164 = vector.extract_strided_slice %151 {offsets = [0, 256], sizes = [8, 128], strides = [1, 1]} : vector<8x512xf32> to vector<8x128xf32>
    %165 = math.tanh %164 : vector<8x128xf32>
    %166 = vector.extract_strided_slice %151 {offsets = [0, 384], sizes = [8, 128], strides = [1, 1]} : vector<8x512xf32> to vector<8x128xf32>
    %167 = arith.negf %166 : vector<8x128xf32>
    %168 = math.exp %167 : vector<8x128xf32>
    %cst_38 = arith.constant 1.000000e+00 : f32
    %169 = vector.broadcast %cst_38 : f32 to vector<8x128xf32>
    %170 = arith.addf %169, %168 : vector<8x128xf32>
    %171 = arith.divf %169, %170 : vector<8x128xf32>
    %172 = arith.mulf %163, %111 : vector<8x128xf32>
    %173 = arith.mulf %157, %165 : vector<8x128xf32>
    %174 = arith.addf %172, %173 : vector<8x128xf32>
    %175 = math.tanh %174 : vector<8x128xf32>
    %176 = arith.mulf %171, %175 : vector<8x128xf32>
    %177 = arith.truncf %176 : vector<8x128xf32> to vector<8x128xbf16>
    %178 = arith.index_cast %c2_i32 : i32 to index
    %c0_39 = arith.constant 0 : index
    %c0_40 = arith.constant 0 : index
    %179 = vector.load %arg12[%178, %c0_39, %c0_40] : memref<8x8x128xbf16, #tpu.memory_space<vmem>>, vector<1x8x128xbf16>
    %180 = vector.shape_cast %179 : vector<1x8x128xbf16> to vector<8x128xbf16>
    %181 = vector.shape_cast %177 : vector<8x128xbf16> to vector<1x8x128xbf16>
    tpu.vector_store %arg12[%178, %c0_39, %c0_40], %181 {strides = array<i32>} : memref<8x8x128xbf16, #tpu.memory_space<vmem>>, vector<1x8x128xbf16>,
    %c3_i32 = arith.constant 3 : i32
    %182 = arith.truncf %146 : vector<8x128xf32> to vector<8x128xbf16>
    %cst_41 = arith.constant dense<0.000000e+00> : vector<8x512xf32>
    %183 = tpu.matmul %182, %3, %cst_41 {dimension_numbers = #tpu.dot_dimension_numbers<[1], [0], [0], [1], [0, 0, 1, 1], [], []>} : vector<8x128xbf16>, vector<128x512xbf16>, vector<8x512xf32> -> vector<8x512xf32>
    %184 = arith.addf %11, %183 : vector<8x512xf32>
    %185 = vector.extract_strided_slice %184 {offsets = [0, 0], sizes = [8, 128], strides = [1, 1]} : vector<8x512xf32> to vector<8x128xf32>
    %186 = arith.negf %185 : vector<8x128xf32>
    %187 = math.exp %186 : vector<8x128xf32>
    %cst_42 = arith.constant 1.000000e+00 : f32
    %188 = vector.broadcast %cst_42 : f32 to vector<8x128xf32>
    %189 = arith.addf %188, %187 : vector<8x128xf32>
    %190 = arith.divf %188, %189 : vector<8x128xf32>
    %191 = vector.extract_strided_slice %184 {offsets = [0, 128], sizes = [8, 128], strides = [1, 1]} : vector<8x512xf32> to vector<8x128xf32>
    %192 = arith.negf %191 : vector<8x128xf32>
    %193 = math.exp %192 : vector<8x128xf32>
    %cst_43 = arith.constant 1.000000e+00 : f32
    %194 = vector.broadcast %cst_43 : f32 to vector<8x128xf32>
    %195 = arith.addf %194, %193 : vector<8x128xf32>
    %196 = arith.divf %194, %195 : vector<8x128xf32>
    %197 = vector.extract_strided_slice %184 {offsets = [0, 256], sizes = [8, 128], strides = [1, 1]} : vector<8x512xf32> to vector<8x128xf32>
    %198 = math.tanh %197 : vector<8x128xf32>
    %199 = vector.extract_strided_slice %184 {offsets = [0, 384], sizes = [8, 128], strides = [1, 1]} : vector<8x512xf32> to vector<8x128xf32>
    %200 = arith.negf %199 : vector<8x128xf32>
    %201 = math.exp %200 : vector<8x128xf32>
    %cst_44 = arith.constant 1.000000e+00 : f32
    %202 = vector.broadcast %cst_44 : f32 to vector<8x128xf32>
    %203 = arith.addf %202, %201 : vector<8x128xf32>
    %204 = arith.divf %202, %203 : vector<8x128xf32>
    %205 = arith.mulf %196, %144 : vector<8x128xf32>
    %206 = arith.mulf %190, %198 : vector<8x128xf32>
    %207 = arith.addf %205, %206 : vector<8x128xf32>
    %208 = math.tanh %207 : vector<8x128xf32>
    %209 = arith.mulf %204, %208 : vector<8x128xf32>
    %210 = arith.truncf %209 : vector<8x128xf32> to vector<8x128xbf16>
    %211 = arith.truncf %176 : vector<8x128xf32> to vector<8x128xbf16>
    %212 = tpu.concatenate %210, %211 in 1 : vector<8x128xbf16>, vector<8x128xbf16> -> vector<8x256xbf16>
    %cst_45 = arith.constant dense<0.000000e+00> : vector<8x512xf32>
    %213 = tpu.matmul %212, %4, %cst_45 {dimension_numbers = #tpu.dot_dimension_numbers<[1], [0], [0], [1], [0, 0, 1, 1], [], []>} : vector<8x256xbf16>, vector<256x512xbf16>, vector<8x512xf32> -> vector<8x512xf32>
    %214 = arith.addf %213, %14 : vector<8x512xf32>
    %215 = vector.extract_strided_slice %214 {offsets = [0, 0], sizes = [8, 128], strides = [1, 1]} : vector<8x512xf32> to vector<8x128xf32>
    %216 = arith.negf %215 : vector<8x128xf32>
    %217 = math.exp %216 : vector<8x128xf32>
    %cst_46 = arith.constant 1.000000e+00 : f32
    %218 = vector.broadcast %cst_46 : f32 to vector<8x128xf32>
    %219 = arith.addf %218, %217 : vector<8x128xf32>
    %220 = arith.divf %218, %219 : vector<8x128xf32>
    %221 = vector.extract_strided_slice %214 {offsets = [0, 128], sizes = [8, 128], strides = [1, 1]} : vector<8x512xf32> to vector<8x128xf32>
    %222 = arith.negf %221 : vector<8x128xf32>
    %223 = math.exp %222 : vector<8x128xf32>
    %cst_47 = arith.constant 1.000000e+00 : f32
    %224 = vector.broadcast %cst_47 : f32 to vector<8x128xf32>
    %225 = arith.addf %224, %223 : vector<8x128xf32>
    %226 = arith.divf %224, %225 : vector<8x128xf32>
    %227 = vector.extract_strided_slice %214 {offsets = [0, 256], sizes = [8, 128], strides = [1, 1]} : vector<8x512xf32> to vector<8x128xf32>
    %228 = math.tanh %227 : vector<8x128xf32>
    %229 = vector.extract_strided_slice %214 {offsets = [0, 384], sizes = [8, 128], strides = [1, 1]} : vector<8x512xf32> to vector<8x128xf32>
    %230 = arith.negf %229 : vector<8x128xf32>
    %231 = math.exp %230 : vector<8x128xf32>
    %cst_48 = arith.constant 1.000000e+00 : f32
    %232 = vector.broadcast %cst_48 : f32 to vector<8x128xf32>
    %233 = arith.addf %232, %231 : vector<8x128xf32>
    %234 = arith.divf %232, %233 : vector<8x128xf32>
    %235 = arith.mulf %226, %174 : vector<8x128xf32>
    %236 = arith.mulf %220, %228 : vector<8x128xf32>
    %237 = arith.addf %235, %236 : vector<8x128xf32>
    %238 = math.tanh %237 : vector<8x128xf32>
    %239 = arith.mulf %234, %238 : vector<8x128xf32>
    %240 = arith.truncf %239 : vector<8x128xf32> to vector<8x128xbf16>
    %241 = arith.index_cast %c3_i32 : i32 to index
    %c0_49 = arith.constant 0 : index
    %c0_50 = arith.constant 0 : index
    %242 = vector.load %arg12[%241, %c0_49, %c0_50] : memref<8x8x128xbf16, #tpu.memory_space<vmem>>, vector<1x8x128xbf16>
    %243 = vector.shape_cast %242 : vector<1x8x128xbf16> to vector<8x128xbf16>
    %244 = vector.shape_cast %240 : vector<8x128xbf16> to vector<1x8x128xbf16>
    tpu.vector_store %arg12[%241, %c0_49, %c0_50], %244 {strides = array<i32>} : memref<8x8x128xbf16, #tpu.memory_space<vmem>>, vector<1x8x128xbf16>,
    %c4_i32 = arith.constant 4 : i32
    %245 = arith.truncf %209 : vector<8x128xf32> to vector<8x128xbf16>
    %cst_51 = arith.constant dense<0.000000e+00> : vector<8x512xf32>
    %246 = tpu.matmul %245, %3, %cst_51 {dimension_numbers = #tpu.dot_dimension_numbers<[1], [0], [0], [1], [0, 0, 1, 1], [], []>} : vector<8x128xbf16>, vector<128x512xbf16>, vector<8x512xf32> -> vector<8x512xf32>
    %247 = arith.addf %11, %246 : vector<8x512xf32>
    %248 = vector.extract_strided_slice %247 {offsets = [0, 0], sizes = [8, 128], strides = [1, 1]} : vector<8x512xf32> to vector<8x128xf32>
    %249 = arith.negf %248 : vector<8x128xf32>
    %250 = math.exp %249 : vector<8x128xf32>
    %cst_52 = arith.constant 1.000000e+00 : f32
    %251 = vector.broadcast %cst_52 : f32 to vector<8x128xf32>
    %252 = arith.addf %251, %250 : vector<8x128xf32>
    %253 = arith.divf %251, %252 : vector<8x128xf32>
    %254 = vector.extract_strided_slice %247 {offsets = [0, 128], sizes = [8, 128], strides = [1, 1]} : vector<8x512xf32> to vector<8x128xf32>
    %255 = arith.negf %254 : vector<8x128xf32>
    %256 = math.exp %255 : vector<8x128xf32>
    %cst_53 = arith.constant 1.000000e+00 : f32
    %257 = vector.broadcast %cst_53 : f32 to vector<8x128xf32>
    %258 = arith.addf %257, %256 : vector<8x128xf32>
    %259 = arith.divf %257, %258 : vector<8x128xf32>
    %260 = vector.extract_strided_slice %247 {offsets = [0, 256], sizes = [8, 128], strides = [1, 1]} : vector<8x512xf32> to vector<8x128xf32>
    %261 = math.tanh %260 : vector<8x128xf32>
    %262 = vector.extract_strided_slice %247 {offsets = [0, 384], sizes = [8, 128], strides = [1, 1]} : vector<8x512xf32> to vector<8x128xf32>
    %263 = arith.negf %262 : vector<8x128xf32>
    %264 = math.exp %263 : vector<8x128xf32>
    %cst_54 = arith.constant 1.000000e+00 : f32
    %265 = vector.broadcast %cst_54 : f32 to vector<8x128xf32>
    %266 = arith.addf %265, %264 : vector<8x128xf32>
    %267 = arith.divf %265, %266 : vector<8x128xf32>
    %268 = arith.mulf %259, %207 : vector<8x128xf32>
    %269 = arith.mulf %253, %261 : vector<8x128xf32>
    %270 = arith.addf %268, %269 : vector<8x128xf32>
    %271 = math.tanh %270 : vector<8x128xf32>
    %272 = arith.mulf %267, %271 : vector<8x128xf32>
    %273 = arith.truncf %272 : vector<8x128xf32> to vector<8x128xbf16>
    %274 = arith.truncf %239 : vector<8x128xf32> to vector<8x128xbf16>
    %275 = tpu.concatenate %273, %274 in 1 : vector<8x128xbf16>, vector<8x128xbf16> -> vector<8x256xbf16>
    %cst_55 = arith.constant dense<0.000000e+00> : vector<8x512xf32>
    %276 = tpu.matmul %275, %4, %cst_55 {dimension_numbers = #tpu.dot_dimension_numbers<[1], [0], [0], [1], [0, 0, 1, 1], [], []>} : vector<8x256xbf16>, vector<256x512xbf16>, vector<8x512xf32> -> vector<8x512xf32>
    %277 = arith.addf %276, %14 : vector<8x512xf32>
    %278 = vector.extract_strided_slice %277 {offsets = [0, 0], sizes = [8, 128], strides = [1, 1]} : vector<8x512xf32> to vector<8x128xf32>
    %279 = arith.negf %278 : vector<8x128xf32>
    %280 = math.exp %279 : vector<8x128xf32>
    %cst_56 = arith.constant 1.000000e+00 : f32
    %281 = vector.broadcast %cst_56 : f32 to vector<8x128xf32>
    %282 = arith.addf %281, %280 : vector<8x128xf32>
    %283 = arith.divf %281, %282 : vector<8x128xf32>
    %284 = vector.extract_strided_slice %277 {offsets = [0, 128], sizes = [8, 128], strides = [1, 1]} : vector<8x512xf32> to vector<8x128xf32>
    %285 = arith.negf %284 : vector<8x128xf32>
    %286 = math.exp %285 : vector<8x128xf32>
    %cst_57 = arith.constant 1.000000e+00 : f32
    %287 = vector.broadcast %cst_57 : f32 to vector<8x128xf32>
    %288 = arith.addf %287, %286 : vector<8x128xf32>
    %289 = arith.divf %287, %288 : vector<8x128xf32>
    %290 = vector.extract_strided_slice %277 {offsets = [0, 256], sizes = [8, 128], strides = [1, 1]} : vector<8x512xf32> to vector<8x128xf32>
    %291 = math.tanh %290 : vector<8x128xf32>
    %292 = vector.extract_strided_slice %277 {offsets = [0, 384], sizes = [8, 128], strides = [1, 1]} : vector<8x512xf32> to vector<8x128xf32>
    %293 = arith.negf %292 : vector<8x128xf32>
    %294 = math.exp %293 : vector<8x128xf32>
    %cst_58 = arith.constant 1.000000e+00 : f32
    %295 = vector.broadcast %cst_58 : f32 to vector<8x128xf32>
    %296 = arith.addf %295, %294 : vector<8x128xf32>
    %297 = arith.divf %295, %296 : vector<8x128xf32>
    %298 = arith.mulf %289, %237 : vector<8x128xf32>
    %299 = arith.mulf %283, %291 : vector<8x128xf32>
    %300 = arith.addf %298, %299 : vector<8x128xf32>
    %301 = math.tanh %300 : vector<8x128xf32>
    %302 = arith.mulf %297, %301 : vector<8x128xf32>
    %303 = arith.truncf %302 : vector<8x128xf32> to vector<8x128xbf16>
    %304 = arith.index_cast %c4_i32 : i32 to index
    %c0_59 = arith.constant 0 : index
    %c0_60 = arith.constant 0 : index
    %305 = vector.load %arg12[%304, %c0_59, %c0_60] : memref<8x8x128xbf16, #tpu.memory_space<vmem>>, vector<1x8x128xbf16>
    %306 = vector.shape_cast %305 : vector<1x8x128xbf16> to vector<8x128xbf16>
    %307 = vector.shape_cast %303 : vector<8x128xbf16> to vector<1x8x128xbf16>
    tpu.vector_store %arg12[%304, %c0_59, %c0_60], %307 {strides = array<i32>} : memref<8x8x128xbf16, #tpu.memory_space<vmem>>, vector<1x8x128xbf16>,
    %c5_i32 = arith.constant 5 : i32
    %308 = arith.truncf %272 : vector<8x128xf32> to vector<8x128xbf16>
    %cst_61 = arith.constant dense<0.000000e+00> : vector<8x512xf32>
    %309 = tpu.matmul %308, %3, %cst_61 {dimension_numbers = #tpu.dot_dimension_numbers<[1], [0], [0], [1], [0, 0, 1, 1], [], []>} : vector<8x128xbf16>, vector<128x512xbf16>, vector<8x512xf32> -> vector<8x512xf32>
    %310 = arith.addf %11, %309 : vector<8x512xf32>
    %311 = vector.extract_strided_slice %310 {offsets = [0, 0], sizes = [8, 128], strides = [1, 1]} : vector<8x512xf32> to vector<8x128xf32>
    %312 = arith.negf %311 : vector<8x128xf32>
    %313 = math.exp %312 : vector<8x128xf32>
    %cst_62 = arith.constant 1.000000e+00 : f32
    %314 = vector.broadcast %cst_62 : f32 to vector<8x128xf32>
    %315 = arith.addf %314, %313 : vector<8x128xf32>
    %316 = arith.divf %314, %315 : vector<8x128xf32>
    %317 = vector.extract_strided_slice %310 {offsets = [0, 128], sizes = [8, 128], strides = [1, 1]} : vector<8x512xf32> to vector<8x128xf32>
    %318 = arith.negf %317 : vector<8x128xf32>
    %319 = math.exp %318 : vector<8x128xf32>
    %cst_63 = arith.constant 1.000000e+00 : f32
    %320 = vector.broadcast %cst_63 : f32 to vector<8x128xf32>
    %321 = arith.addf %320, %319 : vector<8x128xf32>
    %322 = arith.divf %320, %321 : vector<8x128xf32>
    %323 = vector.extract_strided_slice %310 {offsets = [0, 256], sizes = [8, 128], strides = [1, 1]} : vector<8x512xf32> to vector<8x128xf32>
    %324 = math.tanh %323 : vector<8x128xf32>
    %325 = vector.extract_strided_slice %310 {offsets = [0, 384], sizes = [8, 128], strides = [1, 1]} : vector<8x512xf32> to vector<8x128xf32>
    %326 = arith.negf %325 : vector<8x128xf32>
    %327 = math.exp %326 : vector<8x128xf32>
    %cst_64 = arith.constant 1.000000e+00 : f32
    %328 = vector.broadcast %cst_64 : f32 to vector<8x128xf32>
    %329 = arith.addf %328, %327 : vector<8x128xf32>
    %330 = arith.divf %328, %329 : vector<8x128xf32>
    %331 = arith.mulf %322, %270 : vector<8x128xf32>
    %332 = arith.mulf %316, %324 : vector<8x128xf32>
    %333 = arith.addf %331, %332 : vector<8x128xf32>
    %334 = math.tanh %333 : vector<8x128xf32>
    %335 = arith.mulf %330, %334 : vector<8x128xf32>
    %336 = arith.truncf %335 : vector<8x128xf32> to vector<8x128xbf16>
    %337 = arith.truncf %302 : vector<8x128xf32> to vector<8x128xbf16>
    %338 = tpu.concatenate %336, %337 in 1 : vector<8x128xbf16>, vector<8x128xbf16> -> vector<8x256xbf16>
    %cst_65 = arith.constant dense<0.000000e+00> : vector<8x512xf32>
    %339 = tpu.matmul %338, %4, %cst_65 {dimension_numbers = #tpu.dot_dimension_numbers<[1], [0], [0], [1], [0, 0, 1, 1], [], []>} : vector<8x256xbf16>, vector<256x512xbf16>, vector<8x512xf32> -> vector<8x512xf32>
    %340 = arith.addf %339, %14 : vector<8x512xf32>
    %341 = vector.extract_strided_slice %340 {offsets = [0, 0], sizes = [8, 128], strides = [1, 1]} : vector<8x512xf32> to vector<8x128xf32>
    %342 = arith.negf %341 : vector<8x128xf32>
    %343 = math.exp %342 : vector<8x128xf32>
    %cst_66 = arith.constant 1.000000e+00 : f32
    %344 = vector.broadcast %cst_66 : f32 to vector<8x128xf32>
    %345 = arith.addf %344, %343 : vector<8x128xf32>
    %346 = arith.divf %344, %345 : vector<8x128xf32>
    %347 = vector.extract_strided_slice %340 {offsets = [0, 128], sizes = [8, 128], strides = [1, 1]} : vector<8x512xf32> to vector<8x128xf32>
    %348 = arith.negf %347 : vector<8x128xf32>
    %349 = math.exp %348 : vector<8x128xf32>
    %cst_67 = arith.constant 1.000000e+00 : f32
    %350 = vector.broadcast %cst_67 : f32 to vector<8x128xf32>
    %351 = arith.addf %350, %349 : vector<8x128xf32>
    %352 = arith.divf %350, %351 : vector<8x128xf32>
    %353 = vector.extract_strided_slice %340 {offsets = [0, 256], sizes = [8, 128], strides = [1, 1]} : vector<8x512xf32> to vector<8x128xf32>
    %354 = math.tanh %353 : vector<8x128xf32>
    %355 = vector.extract_strided_slice %340 {offsets = [0, 384], sizes = [8, 128], strides = [1, 1]} : vector<8x512xf32> to vector<8x128xf32>
    %356 = arith.negf %355 : vector<8x128xf32>
    %357 = math.exp %356 : vector<8x128xf32>
    %cst_68 = arith.constant 1.000000e+00 : f32
    %358 = vector.broadcast %cst_68 : f32 to vector<8x128xf32>
    %359 = arith.addf %358, %357 : vector<8x128xf32>
    %360 = arith.divf %358, %359 : vector<8x128xf32>
    %361 = arith.mulf %352, %300 : vector<8x128xf32>
    %362 = arith.mulf %346, %354 : vector<8x128xf32>
    %363 = arith.addf %361, %362 : vector<8x128xf32>
    %364 = math.tanh %363 : vector<8x128xf32>
    %365 = arith.mulf %360, %364 : vector<8x128xf32>
    %366 = arith.truncf %365 : vector<8x128xf32> to vector<8x128xbf16>
    %367 = arith.index_cast %c5_i32 : i32 to index
    %c0_69 = arith.constant 0 : index
    %c0_70 = arith.constant 0 : index
    %368 = vector.load %arg12[%367, %c0_69, %c0_70] : memref<8x8x128xbf16, #tpu.memory_space<vmem>>, vector<1x8x128xbf16>
    %369 = vector.shape_cast %368 : vector<1x8x128xbf16> to vector<8x128xbf16>
    %370 = vector.shape_cast %366 : vector<8x128xbf16> to vector<1x8x128xbf16>
    tpu.vector_store %arg12[%367, %c0_69, %c0_70], %370 {strides = array<i32>} : memref<8x8x128xbf16, #tpu.memory_space<vmem>>, vector<1x8x128xbf16>,
    %c6_i32 = arith.constant 6 : i32
    %371 = arith.truncf %335 : vector<8x128xf32> to vector<8x128xbf16>
    %cst_71 = arith.constant dense<0.000000e+00> : vector<8x512xf32>
    %372 = tpu.matmul %371, %3, %cst_71 {dimension_numbers = #tpu.dot_dimension_numbers<[1], [0], [0], [1], [0, 0, 1, 1], [], []>} : vector<8x128xbf16>, vector<128x512xbf16>, vector<8x512xf32> -> vector<8x512xf32>
    %373 = arith.addf %11, %372 : vector<8x512xf32>
    %374 = vector.extract_strided_slice %373 {offsets = [0, 0], sizes = [8, 128], strides = [1, 1]} : vector<8x512xf32> to vector<8x128xf32>
    %375 = arith.negf %374 : vector<8x128xf32>
    %376 = math.exp %375 : vector<8x128xf32>
    %cst_72 = arith.constant 1.000000e+00 : f32
    %377 = vector.broadcast %cst_72 : f32 to vector<8x128xf32>
    %378 = arith.addf %377, %376 : vector<8x128xf32>
    %379 = arith.divf %377, %378 : vector<8x128xf32>
    %380 = vector.extract_strided_slice %373 {offsets = [0, 128], sizes = [8, 128], strides = [1, 1]} : vector<8x512xf32> to vector<8x128xf32>
    %381 = arith.negf %380 : vector<8x128xf32>
    %382 = math.exp %381 : vector<8x128xf32>
    %cst_73 = arith.constant 1.000000e+00 : f32
    %383 = vector.broadcast %cst_73 : f32 to vector<8x128xf32>
    %384 = arith.addf %383, %382 : vector<8x128xf32>
    %385 = arith.divf %383, %384 : vector<8x128xf32>
    %386 = vector.extract_strided_slice %373 {offsets = [0, 256], sizes = [8, 128], strides = [1, 1]} : vector<8x512xf32> to vector<8x128xf32>
    %387 = math.tanh %386 : vector<8x128xf32>
    %388 = vector.extract_strided_slice %373 {offsets = [0, 384], sizes = [8, 128], strides = [1, 1]} : vector<8x512xf32> to vector<8x128xf32>
    %389 = arith.negf %388 : vector<8x128xf32>
    %390 = math.exp %389 : vector<8x128xf32>
    %cst_74 = arith.constant 1.000000e+00 : f32
    %391 = vector.broadcast %cst_74 : f32 to vector<8x128xf32>
    %392 = arith.addf %391, %390 : vector<8x128xf32>
    %393 = arith.divf %391, %392 : vector<8x128xf32>
    %394 = arith.mulf %385, %333 : vector<8x128xf32>
    %395 = arith.mulf %379, %387 : vector<8x128xf32>
    %396 = arith.addf %394, %395 : vector<8x128xf32>
    %397 = math.tanh %396 : vector<8x128xf32>
    %398 = arith.mulf %393, %397 : vector<8x128xf32>
    %399 = arith.truncf %398 : vector<8x128xf32> to vector<8x128xbf16>
    %400 = arith.truncf %365 : vector<8x128xf32> to vector<8x128xbf16>
    %401 = tpu.concatenate %399, %400 in 1 : vector<8x128xbf16>, vector<8x128xbf16> -> vector<8x256xbf16>
    %cst_75 = arith.constant dense<0.000000e+00> : vector<8x512xf32>
    %402 = tpu.matmul %401, %4, %cst_75 {dimension_numbers = #tpu.dot_dimension_numbers<[1], [0], [0], [1], [0, 0, 1, 1], [], []>} : vector<8x256xbf16>, vector<256x512xbf16>, vector<8x512xf32> -> vector<8x512xf32>
    %403 = arith.addf %402, %14 : vector<8x512xf32>
    %404 = vector.extract_strided_slice %403 {offsets = [0, 0], sizes = [8, 128], strides = [1, 1]} : vector<8x512xf32> to vector<8x128xf32>
    %405 = arith.negf %404 : vector<8x128xf32>
    %406 = math.exp %405 : vector<8x128xf32>
    %cst_76 = arith.constant 1.000000e+00 : f32
    %407 = vector.broadcast %cst_76 : f32 to vector<8x128xf32>
    %408 = arith.addf %407, %406 : vector<8x128xf32>
    %409 = arith.divf %407, %408 : vector<8x128xf32>
    %410 = vector.extract_strided_slice %403 {offsets = [0, 128], sizes = [8, 128], strides = [1, 1]} : vector<8x512xf32> to vector<8x128xf32>
    %411 = arith.negf %410 : vector<8x128xf32>
    %412 = math.exp %411 : vector<8x128xf32>
    %cst_77 = arith.constant 1.000000e+00 : f32
    %413 = vector.broadcast %cst_77 : f32 to vector<8x128xf32>
    %414 = arith.addf %413, %412 : vector<8x128xf32>
    %415 = arith.divf %413, %414 : vector<8x128xf32>
    %416 = vector.extract_strided_slice %403 {offsets = [0, 256], sizes = [8, 128], strides = [1, 1]} : vector<8x512xf32> to vector<8x128xf32>
    %417 = math.tanh %416 : vector<8x128xf32>
    %418 = vector.extract_strided_slice %403 {offsets = [0, 384], sizes = [8, 128], strides = [1, 1]} : vector<8x512xf32> to vector<8x128xf32>
    %419 = arith.negf %418 : vector<8x128xf32>
    %420 = math.exp %419 : vector<8x128xf32>
    %cst_78 = arith.constant 1.000000e+00 : f32
    %421 = vector.broadcast %cst_78 : f32 to vector<8x128xf32>
    %422 = arith.addf %421, %420 : vector<8x128xf32>
    %423 = arith.divf %421, %422 : vector<8x128xf32>
    %424 = arith.mulf %415, %363 : vector<8x128xf32>
    %425 = arith.mulf %409, %417 : vector<8x128xf32>
    %426 = arith.addf %424, %425 : vector<8x128xf32>
    %427 = math.tanh %426 : vector<8x128xf32>
    %428 = arith.mulf %423, %427 : vector<8x128xf32>
    %429 = arith.truncf %428 : vector<8x128xf32> to vector<8x128xbf16>
    %430 = arith.index_cast %c6_i32 : i32 to index
    %c0_79 = arith.constant 0 : index
    %c0_80 = arith.constant 0 : index
    %431 = vector.load %arg12[%430, %c0_79, %c0_80] : memref<8x8x128xbf16, #tpu.memory_space<vmem>>, vector<1x8x128xbf16>
    %432 = vector.shape_cast %431 : vector<1x8x128xbf16> to vector<8x128xbf16>
    %433 = vector.shape_cast %429 : vector<8x128xbf16> to vector<1x8x128xbf16>
    tpu.vector_store %arg12[%430, %c0_79, %c0_80], %433 {strides = array<i32>} : memref<8x8x128xbf16, #tpu.memory_space<vmem>>, vector<1x8x128xbf16>,
    %c7_i32 = arith.constant 7 : i32
    %434 = arith.truncf %398 : vector<8x128xf32> to vector<8x128xbf16>
    %cst_81 = arith.constant dense<0.000000e+00> : vector<8x512xf32>
    %435 = tpu.matmul %434, %3, %cst_81 {dimension_numbers = #tpu.dot_dimension_numbers<[1], [0], [0], [1], [0, 0, 1, 1], [], []>} : vector<8x128xbf16>, vector<128x512xbf16>, vector<8x512xf32> -> vector<8x512xf32>
    %436 = arith.addf %11, %435 : vector<8x512xf32>
    %437 = vector.extract_strided_slice %436 {offsets = [0, 0], sizes = [8, 128], strides = [1, 1]} : vector<8x512xf32> to vector<8x128xf32>
    %438 = arith.negf %437 : vector<8x128xf32>
    %439 = math.exp %438 : vector<8x128xf32>
    %cst_82 = arith.constant 1.000000e+00 : f32
    %440 = vector.broadcast %cst_82 : f32 to vector<8x128xf32>
    %441 = arith.addf %440, %439 : vector<8x128xf32>
    %442 = arith.divf %440, %441 : vector<8x128xf32>
    %443 = vector.extract_strided_slice %436 {offsets = [0, 128], sizes = [8, 128], strides = [1, 1]} : vector<8x512xf32> to vector<8x128xf32>
    %444 = arith.negf %443 : vector<8x128xf32>
    %445 = math.exp %444 : vector<8x128xf32>
    %cst_83 = arith.constant 1.000000e+00 : f32
    %446 = vector.broadcast %cst_83 : f32 to vector<8x128xf32>
    %447 = arith.addf %446, %445 : vector<8x128xf32>
    %448 = arith.divf %446, %447 : vector<8x128xf32>
    %449 = vector.extract_strided_slice %436 {offsets = [0, 256], sizes = [8, 128], strides = [1, 1]} : vector<8x512xf32> to vector<8x128xf32>
    %450 = math.tanh %449 : vector<8x128xf32>
    %451 = vector.extract_strided_slice %436 {offsets = [0, 384], sizes = [8, 128], strides = [1, 1]} : vector<8x512xf32> to vector<8x128xf32>
    %452 = arith.negf %451 : vector<8x128xf32>
    %453 = math.exp %452 : vector<8x128xf32>
    %cst_84 = arith.constant 1.000000e+00 : f32
    %454 = vector.broadcast %cst_84 : f32 to vector<8x128xf32>
    %455 = arith.addf %454, %453 : vector<8x128xf32>
    %456 = arith.divf %454, %455 : vector<8x128xf32>
    %457 = arith.mulf %448, %396 : vector<8x128xf32>
    %458 = arith.mulf %442, %450 : vector<8x128xf32>
    %459 = arith.addf %457, %458 : vector<8x128xf32>
    %460 = math.tanh %459 : vector<8x128xf32>
    %461 = arith.mulf %456, %460 : vector<8x128xf32>
    %462 = arith.truncf %461 : vector<8x128xf32> to vector<8x128xbf16>
    %463 = arith.truncf %428 : vector<8x128xf32> to vector<8x128xbf16>
    %464 = tpu.concatenate %462, %463 in 1 : vector<8x128xbf16>, vector<8x128xbf16> -> vector<8x256xbf16>
    %cst_85 = arith.constant dense<0.000000e+00> : vector<8x512xf32>
    %465 = tpu.matmul %464, %4, %cst_85 {dimension_numbers = #tpu.dot_dimension_numbers<[1], [0], [0], [1], [0, 0, 1, 1], [], []>} : vector<8x256xbf16>, vector<256x512xbf16>, vector<8x512xf32> -> vector<8x512xf32>
    %466 = arith.addf %465, %14 : vector<8x512xf32>
    %467 = vector.extract_strided_slice %466 {offsets = [0, 0], sizes = [8, 128], strides = [1, 1]} : vector<8x512xf32> to vector<8x128xf32>
    %468 = arith.negf %467 : vector<8x128xf32>
    %469 = math.exp %468 : vector<8x128xf32>
    %cst_86 = arith.constant 1.000000e+00 : f32
    %470 = vector.broadcast %cst_86 : f32 to vector<8x128xf32>
    %471 = arith.addf %470, %469 : vector<8x128xf32>
    %472 = arith.divf %470, %471 : vector<8x128xf32>
    %473 = vector.extract_strided_slice %466 {offsets = [0, 128], sizes = [8, 128], strides = [1, 1]} : vector<8x512xf32> to vector<8x128xf32>
    %474 = arith.negf %473 : vector<8x128xf32>
    %475 = math.exp %474 : vector<8x128xf32>
    %cst_87 = arith.constant 1.000000e+00 : f32
    %476 = vector.broadcast %cst_87 : f32 to vector<8x128xf32>
    %477 = arith.addf %476, %475 : vector<8x128xf32>
    %478 = arith.divf %476, %477 : vector<8x128xf32>
    %479 = vector.extract_strided_slice %466 {offsets = [0, 256], sizes = [8, 128], strides = [1, 1]} : vector<8x512xf32> to vector<8x128xf32>
    %480 = math.tanh %479 : vector<8x128xf32>
    %481 = vector.extract_strided_slice %466 {offsets = [0, 384], sizes = [8, 128], strides = [1, 1]} : vector<8x512xf32> to vector<8x128xf32>
    %482 = arith.negf %481 : vector<8x128xf32>
    %483 = math.exp %482 : vector<8x128xf32>
    %cst_88 = arith.constant 1.000000e+00 : f32
    %484 = vector.broadcast %cst_88 : f32 to vector<8x128xf32>
    %485 = arith.addf %484, %483 : vector<8x128xf32>
    %486 = arith.divf %484, %485 : vector<8x128xf32>
    %487 = arith.mulf %478, %426 : vector<8x128xf32>
    %488 = arith.mulf %472, %480 : vector<8x128xf32>
    %489 = arith.addf %487, %488 : vector<8x128xf32>
    %490 = math.tanh %489 : vector<8x128xf32>
    %491 = arith.mulf %486, %490 : vector<8x128xf32>
    %492 = arith.truncf %491 : vector<8x128xf32> to vector<8x128xbf16>
    %493 = arith.index_cast %c7_i32 : i32 to index
    %c0_89 = arith.constant 0 : index
    %c0_90 = arith.constant 0 : index
    %494 = vector.load %arg12[%493, %c0_89, %c0_90] : memref<8x8x128xbf16, #tpu.memory_space<vmem>>, vector<1x8x128xbf16>
    %495 = vector.shape_cast %494 : vector<1x8x128xbf16> to vector<8x128xbf16>
    %496 = vector.shape_cast %492 : vector<8x128xbf16> to vector<1x8x128xbf16>
    tpu.vector_store %arg12[%493, %c0_89, %c0_90], %496 {strides = array<i32>} : memref<8x8x128xbf16, #tpu.memory_space<vmem>>, vector<1x8x128xbf16>,
    %c7_i32_91 = arith.constant 7 : i32
    %c0_92 = arith.constant 0 : index
    %c0_93 = arith.constant 0 : index
    %c0_94 = arith.constant 0 : index
    %497 = vector.load %arg12[%c0_92, %c0_93, %c0_94] : memref<8x8x128xbf16, #tpu.memory_space<vmem>>, vector<8x8x128xbf16>
    %498 = vector.shape_cast %497 : vector<8x8x128xbf16> to vector<64x128xbf16>
    %cst_95 = arith.constant dense<0.000000e+00> : vector<64x2xf32>
    %499 = tpu.matmul %498, %6, %cst_95 {dimension_numbers = #tpu.dot_dimension_numbers<[1], [0], [0], [1], [0, 0, 1, 1], [], []>} : vector<64x128xbf16>, vector<128x2xbf16>, vector<64x2xf32> -> vector<64x2xf32>
    %c0_96 = arith.constant 0 : index
    %c0_97 = arith.constant 0 : index
    %500 = vector.load %arg8[%c0_96, %c0_97] : memref<1x2xf32, #tpu.memory_space<vmem>>, vector<1x2xf32>
    %501 = vector.shape_cast %500 : vector<1x2xf32> to vector<1x2xf32>
    %502 = vector.broadcast %501 : vector<1x2xf32> to vector<64x2xf32>
    %503 = arith.addf %499, %502 : vector<64x2xf32>
    %504 = vector.shape_cast %503 : vector<64x2xf32> to vector<8x8x2xf32>
    %c0_98 = arith.constant 0 : index
    %c0_99 = arith.constant 0 : index
    %c0_100 = arith.constant 0 : index
    %505 = vector.load %arg9[%c0_98, %c0_99, %c0_100] : memref<8x8x2xf32, #tpu.memory_space<vmem>>, vector<8x8x2xf32>
    tpu.vector_store %arg9[%c0_98, %c0_99, %c0_100], %504 {strides = array<i32>} : memref<8x8x2xf32, #tpu.memory_space<vmem>>, vector<8x8x2xf32>,
    %c0_101 = arith.constant 0 : index
    %c0_102 = arith.constant 0 : index
    %c0_103 = arith.constant 0 : index
    %506 = vector.load %arg10[%c0_101, %c0_102, %c0_103] : memref<2x8x128xf32, #tpu.memory_space<vmem>>, vector<1x8x128xf32>
    %507 = vector.shape_cast %506 : vector<1x8x128xf32> to vector<8x128xf32>
    %508 = vector.shape_cast %461 : vector<8x128xf32> to vector<1x8x128xf32>
    tpu.vector_store %arg10[%c0_101, %c0_102, %c0_103], %508 {strides = array<i32>} : memref<2x8x128xf32, #tpu.memory_space<vmem>>, vector<1x8x128xf32>,
    %c1 = arith.constant 1 : index
    %c0_104 = arith.constant 0 : index
    %c0_105 = arith.constant 0 : index
    %509 = vector.load %arg10[%c1, %c0_104, %c0_105] : memref<2x8x128xf32, #tpu.memory_space<vmem>>, vector<1x8x128xf32>
    %510 = vector.shape_cast %509 : vector<1x8x128xf32> to vector<8x128xf32>
    %511 = vector.shape_cast %491 : vector<8x128xf32> to vector<1x8x128xf32>
    tpu.vector_store %arg10[%c1, %c0_104, %c0_105], %511 {strides = array<i32>} : memref<2x8x128xf32, #tpu.memory_space<vmem>>, vector<1x8x128xf32>,
    %c0_106 = arith.constant 0 : index
    %c0_107 = arith.constant 0 : index
    %c0_108 = arith.constant 0 : index
    %512 = vector.load %arg11[%c0_106, %c0_107, %c0_108] : memref<2x8x128xf32, #tpu.memory_space<vmem>>, vector<1x8x128xf32>
    %513 = vector.shape_cast %512 : vector<1x8x128xf32> to vector<8x128xf32>
    %514 = vector.shape_cast %459 : vector<8x128xf32> to vector<1x8x128xf32>
    tpu.vector_store %arg11[%c0_106, %c0_107, %c0_108], %514 {strides = array<i32>} : memref<2x8x128xf32, #tpu.memory_space<vmem>>, vector<1x8x128xf32>,
    %c1_109 = arith.constant 1 : index
    %c0_110 = arith.constant 0 : index
    %c0_111 = arith.constant 0 : index
    %515 = vector.load %arg11[%c1_109, %c0_110, %c0_111] : memref<2x8x128xf32, #tpu.memory_space<vmem>>, vector<1x8x128xf32>
    %516 = vector.shape_cast %515 : vector<1x8x128xf32> to vector<8x128xf32>
    %517 = vector.shape_cast %489 : vector<8x128xf32> to vector<1x8x128xf32>
    tpu.vector_store %arg11[%c1_109, %c0_110, %c0_111], %517 {strides = array<i32>} : memref<2x8x128xf32, #tpu.memory_space<vmem>>, vector<1x8x128xf32>,
    return
  }
  func.func @transform_0(%arg0: i32) -> (i32, i32) {
    %c0_i32 = arith.constant 0 : i32
    %c0_i32_0 = arith.constant 0 : i32
    return %arg0, %c0_i32 : i32, i32
  }
  func.func @transform_1(%arg0: i32) -> (i32, i32) {
    %c0_i32 = arith.constant 0 : i32
    %c0_i32_0 = arith.constant 0 : i32
    %c0_i32_1 = arith.constant 0 : i32
    return %c0_i32, %c0_i32_0 : i32, i32
  }
  func.func @transform_2(%arg0: i32) -> (i32, i32) {
    %c0_i32 = arith.constant 0 : i32
    %c0_i32_0 = arith.constant 0 : i32
    %c0_i32_1 = arith.constant 0 : i32
    return %c0_i32, %c0_i32_0 : i32, i32
  }
  func.func @transform_3(%arg0: i32) -> (i32, i32) {
    %c0_i32 = arith.constant 0 : i32
    %c0_i32_0 = arith.constant 0 : i32
    %c0_i32_1 = arith.constant 0 : i32
    return %c0_i32, %c0_i32_0 : i32, i32
  }
  func.func @transform_4(%arg0: i32) -> (i32, i32) {
    %c0_i32 = arith.constant 0 : i32
    %c0_i32_0 = arith.constant 0 : i32
    %c0_i32_1 = arith.constant 0 : i32
    return %c0_i32, %c0_i32_0 : i32, i32
  }
  func.func @transform_5(%arg0: i32) -> (i32, i32) {
    %c0_i32 = arith.constant 0 : i32
    %c0_i32_0 = arith.constant 0 : i32
    %c0_i32_1 = arith.constant 0 : i32
    return %c0_i32, %c0_i32_0 : i32, i32
  }
  func.func @transform_6(%arg0: i32) -> (i32, i32) {
    %c0_i32 = arith.constant 0 : i32
    %c0_i32_0 = arith.constant 0 : i32
    %c0_i32_1 = arith.constant 0 : i32
    return %c0_i32, %c0_i32_0 : i32, i32
  }
  func.func @transform_7(%arg0: i32) -> (i32, i32) {
    %c0_i32 = arith.constant 0 : i32
    %c0_i32_0 = arith.constant 0 : i32
    %c0_i32_1 = arith.constant 0 : i32
    return %c0_i32, %c0_i32_0 : i32, i32
  }
  func.func @transform_8(%arg0: i32) -> (i32, i32, i32) {
    %c0_i32 = arith.constant 0 : i32
    %c0_i32_0 = arith.constant 0 : i32
    %c0_i32_1 = arith.constant 0 : i32
    return %c0_i32, %arg0, %c0_i32_0 : i32, i32, i32
  }
  func.func @transform_9(%arg0: i32) -> (i32, i32, i32) {
    %c0_i32 = arith.constant 0 : i32
    %c0_i32_0 = arith.constant 0 : i32
    %c0_i32_1 = arith.constant 0 : i32
    return %c0_i32, %arg0, %c0_i32_0 : i32, i32, i32
  }
  func.func @transform_10(%arg0: i32) -> (i32, i32, i32) {
    %c0_i32 = arith.constant 0 : i32
    %c0_i32_0 = arith.constant 0 : i32
    %c0_i32_1 = arith.constant 0 : i32
    return %c0_i32, %arg0, %c0_i32_0 : i32, i32, i32
  }
}

</mosaic_0001>

<llo_original>
// kernel: tpu_custom_call.1
$region0: #{tpu_custom_call.1}
  #allocation0 [shape = 'u32[]', space=smem, size = 0x4, offset = 0x4, fixed_abs, tag = 'smem constant byte address 0x4 - core index']
  #allocation1 [shape = 'u32[144,128]{1,0:T(1,128)}', space=vmem, size = 0x12000, scoped, tag = 'internal scratch']
  #allocation2 [shape = 'bf16[8,8,128]{2,1,0:T(8,128)(2,1)}', space=vmem, size = 0x4000, scoped, tag = 'scratch operand']
  %s0 = inlined_call_operand.vmem [shape: f32[8,5], index: 0, kind: input, shape index: {}]
  %s1 = inlined_call_operand.vmem [shape: bf16[5,512], index: 1, kind: input, shape index: {}]
  %s2 = inlined_call_operand.hbm [shape: bf16[128,512], index: 2, kind: input, shape index: {}]
  %s3 = inlined_call_operand.vmem [shape: f32[1,512], index: 3, kind: input, shape index: {}]
  %s4 = inlined_call_operand.hbm [shape: bf16[256,512], index: 4, kind: input, shape index: {}]
  %s5 = inlined_call_operand.vmem [shape: f32[1,512], index: 5, kind: input, shape index: {}]
  %s6 = inlined_call_operand.vmem [shape: bf16[128,2], index: 6, kind: input, shape index: {}]
  %s7 = inlined_call_operand.vmem [shape: f32[1,2], index: 7, kind: input, shape index: {}]
  %s8 = inlined_call_operand.vmem [shape: f32[8,8,2], index: 8, kind: output, shape index: {0}]
  %s9 = inlined_call_operand.hbm [shape: f32[2,8,128], index: 9, kind: output, shape index: {1}]
  %s10 = inlined_call_operand.hbm [shape: f32[2,8,128], index: 10, kind: output, shape index: {2}]
  %11 = xla_tuple %s8, %s9, %s10
  %s12 = sld [smem:[#allocation0]]
  $region66: #{tpu_custom_call.1} parent=0
    _
  %s14 = ssub.s32 1, %s12
  %s15 = scalar_select 0, %s14, %s12
  $region1: #{tpu_custom_call.1} parent=0
    #allocation3 [shape = 'u8[131072]{0}', space=vmem, size = 0x20000, scoped, tag = 'input window, operand 2, single buffered']
    #allocation4 [shape = 's32[1]{0}', space=sflag, size = 0x4, scoped, tag = 'scoped memory for tpu_custom_call.1']
    #allocation5 [shape = 's32[1]{0}', space=sflag, size = 0x4, scoped, tag = 'scoped memory for tpu_custom_call.1']
    #allocation6 [shape = 'u8[262144]{0}', space=vmem, size = 0x40000, scoped, tag = 'input window, operand 4, single buffered']
    #allocation7 [shape = 's32[1]{0}', space=sflag, size = 0x4, scoped, tag = 'scoped memory for tpu_custom_call.1']
    #allocation8 [shape = 'u8[8192]{0}', space=vmem, size = 0x2000, scoped, tag = 'output window, operand 1, single buffered']
    #allocation9 [shape = 'u8[8192]{0}', space=vmem, size = 0x2000, scoped, tag = 'output window, operand 2, single buffered']
    #allocation10 [shape = 's32[1]{0}', space=sflag, size = 0x4, scoped, tag = 'scoped memory for tpu_custom_call.1']
    %16 = vsyncpa [#allocation4], 0
    %17 = vsyncpa [#allocation7], 0
    %18 = vsyncpa [#allocation5], 0
    %19 = vsyncpa [#allocation10], 0
    // Predicated region
    $region2: #{tpu_custom_call.1} parent=1 // pred_check
      _
    $region3: #{tpu_custom_call.1} parent=1 // pred_check_branch
      %21 = sbr.rel (0) target = $region5
    $region4: #{tpu_custom_call.1} parent=1 // pred_region
      _
    $region5: #{tpu_custom_call.1} parent=1 // pred_fallthru
      _
    // Predicated region
    $region6: #{tpu_custom_call.1} parent=1 // pred_check
      _
    $region7: #{tpu_custom_call.1} parent=1 // pred_check_branch
      %23 = sbr.rel (0) target = $region9
    $region8: #{tpu_custom_call.1} parent=1 // pred_region
      _
    $region9: #{tpu_custom_call.1} parent=1 // pred_fallthru
      _
    // Predicated region
    $region10: #{tpu_custom_call.1} parent=1 // pred_check
      _
    $region11: #{tpu_custom_call.1} parent=1 // pred_check_branch
      %25 = sbr.rel (0) target = $region13
    $region12: #{tpu_custom_call.1} parent=1 // pred_region
      %s27 = ssub.s32 4096, 4096
      %28 = vsyncadd [#allocation4], %s27
      %s29 = sshll.u32 [#allocation3], 4
      %s30 = int_to_ptr.vmem [resolvable:$true] %s29
      %35 = dma.hbm_to_vmem [thread:$0]  %s2, 4096, %s30, [#allocation4], 256, 256, 16
    $region13: #{tpu_custom_call.1} parent=1 // pred_fallthru
      _
    // Predicated region
    $region14: #{tpu_custom_call.1} parent=1 // pred_check
      _
    $region15: #{tpu_custom_call.1} parent=1 // pred_check_branch
      %37 = sbr.rel (0) target = $region17
    $region16: #{tpu_custom_call.1} parent=1 // pred_region
      _
    $region17: #{tpu_custom_call.1} parent=1 // pred_fallthru
      _
    // Predicated region
    $region18: #{tpu_custom_call.1} parent=1 // pred_check
      _
    $region19: #{tpu_custom_call.1} parent=1 // pred_check_branch
      %39 = sbr.rel (0) target = $region21
    $region20: #{tpu_custom_call.1} parent=1 // pred_region
      %s41 = ssub.s32 8192, 8192
      %42 = vsyncadd [#allocation7], %s41
      %s43 = sshll.u32 [#allocation6], 4
      %s44 = int_to_ptr.vmem [resolvable:$true] %s43
      %49 = dma.hbm_to_vmem [thread:$0]  %s4, 8192, %s44, [#allocation7], 256, 256, 16
    $region21: #{tpu_custom_call.1} parent=1 // pred_fallthru
      _
    // Predicated region
    $region22: #{tpu_custom_call.1} parent=1 // pred_check
      _
    $region23: #{tpu_custom_call.1} parent=1 // pred_check_branch
      %51 = sbr.rel (0) target = $region25
    $region24: #{tpu_custom_call.1} parent=1 // pred_region
      _
    $region25: #{tpu_custom_call.1} parent=1 // pred_fallthru
      _
    // Predicated region
    $region26: #{tpu_custom_call.1} parent=1 // pred_check
      _
    $region27: #{tpu_custom_call.1} parent=1 // pred_check_branch
      %53 = sbr.rel (0) target = $region29
    $region28: #{tpu_custom_call.1} parent=1 // pred_region
      _
    $region29: #{tpu_custom_call.1} parent=1 // pred_fallthru
      _
    // Predicated region
    $region30: #{tpu_custom_call.1} parent=1 // pred_check
      _
    $region31: #{tpu_custom_call.1} parent=1 // pred_check_branch
      %55 = sbr.rel (0) target = $region33
    $region32: #{tpu_custom_call.1} parent=1 // pred_region
      _
    $region33: #{tpu_custom_call.1} parent=1 // pred_fallthru
      _
    // Predicated region
    $region34: #{tpu_custom_call.1} parent=1 // pred_check
      _
    $region35: #{tpu_custom_call.1} parent=1 // pred_check_branch
      %57 = sbr.rel (0) target = $region37
    $region36: #{tpu_custom_call.1} parent=1 // pred_region
      %58 = dma.done [#allocation4], 4096
    $region37: #{tpu_custom_call.1} parent=1 // pred_fallthru
      _
    // Predicated region
    $region38: #{tpu_custom_call.1} parent=1 // pred_check
      _
    $region39: #{tpu_custom_call.1} parent=1 // pred_check_branch
      %60 = sbr.rel (0) target = $region41
    $region40: #{tpu_custom_call.1} parent=1 // pred_region
      %61 = dma.done [#allocation7], 8192
    $region41: #{tpu_custom_call.1} parent=1 // pred_fallthru
      _
    %v63 = vld [vmem:[%s0] sm:$0xff]
    %v64 = vpack.c.bf16 %v63, %v63
    %v65 = vld [vmem:[%s1] sm:$0x77]
    %v66 = vld [vmem:[%s1 + $0x8] sm:$0x77]
    %v67 = vld [vmem:[#allocation3] sm:$0xff]
    %v68 = vld [vmem:[#allocation3 + $0x8] sm:$0xff]
    %v69 = vld [vmem:[#allocation3 + $0x10] sm:$0xff]
    %v70 = vld [vmem:[#allocation3 + $0x18] sm:$0xff]
    %v71 = vld [vmem:[#allocation3 + $0x20] sm:$0xff]
    %v72 = vld [vmem:[#allocation3 + $0x28] sm:$0xff]
    %v73 = vld [vmem:[#allocation3 + $0x30] sm:$0xff]
    %v74 = vld [vmem:[#allocation3 + $0x38] sm:$0xff]
    %v75 = vld [vmem:[#allocation3 + $0x40] sm:$0xff]
    %v76 = vld [vmem:[#allocation3 + $0x48] sm:$0xff]
    %v77 = vld [vmem:[#allocation3 + $0x50] sm:$0xff]
    %v78 = vld [vmem:[#allocation3 + $0x58] sm:$0xff]
    %v79 = vld [vmem:[#allocation3 + $0x60] sm:$0xff]
    %v80 = vld [vmem:[#allocation3 + $0x68] sm:$0xff]
    %v81 = vld [vmem:[#allocation3 + $0x70] sm:$0xff]
    %v82 = vld [vmem:[#allocation3 + $0x78] sm:$0xff]
    %v83 = vld [vmem:[#allocation3 + $0x80] sm:$0xff]
    %v84 = vld [vmem:[#allocation3 + $0x88] sm:$0xff]
    %v85 = vld [vmem:[#allocation3 + $0x90] sm:$0xff]
    %v86 = vld [vmem:[#allocation3 + $0x98] sm:$0xff]
    %v87 = vld [vmem:[#allocation3 + $0xa0] sm:$0xff]
    %v88 = vld [vmem:[#allocation3 + $0xa8] sm:$0xff]
    %v89 = vld [vmem:[#allocation3 + $0xb0] sm:$0xff]
    %v90 = vld [vmem:[#allocation3 + $0xb8] sm:$0xff]
    %v91 = vld [vmem:[#allocation3 + $0xc0] sm:$0xff]
    %v92 = vld [vmem:[#allocation3 + $0xc8] sm:$0xff]
    %v93 = vld [vmem:[#allocation3 + $0xd0] sm:$0xff]
    %v94 = vld [vmem:[#allocation3 + $0xd8] sm:$0xff]
    %v95 = vld [vmem:[#allocation3 + $0xe0] sm:$0xff]
    %v96 = vld [vmem:[#allocation3 + $0xe8] sm:$0xff]
    %v97 = vld [vmem:[#allocation3 + $0xf0] sm:$0xff]
    %v98 = vld [vmem:[#allocation3 + $0xf8] sm:$0xff]
    %v99 = vld [vmem:[#allocation6] sm:$0xff]
    %v100 = vld [vmem:[#allocation6 + $0x8] sm:$0xff]
    %v101 = vld [vmem:[#allocation6 + $0x10] sm:$0xff]
    %v102 = vld [vmem:[#allocation6 + $0x18] sm:$0xff]
    %v103 = vld [vmem:[#allocation6 + $0x20] sm:$0xff]
    %v104 = vld [vmem:[#allocation6 + $0x28] sm:$0xff]
    %v105 = vld [vmem:[#allocation6 + $0x30] sm:$0xff]
    %v106 = vld [vmem:[#allocation6 + $0x38] sm:$0xff]
    %v107 = vld [vmem:[#allocation6 + $0x40] sm:$0xff]
    %v108 = vld [vmem:[#allocation6 + $0x48] sm:$0xff]
    %v109 = vld [vmem:[#allocation6 + $0x50] sm:$0xff]
    %v110 = vld [vmem:[#allocation6 + $0x58] sm:$0xff]
    %v111 = vld [vmem:[#allocation6 + $0x60] sm:$0xff]
    %v112 = vld [vmem:[#allocation6 + $0x68] sm:$0xff]
    %v113 = vld [vmem:[#allocation6 + $0x70] sm:$0xff]
    %v114 = vld [vmem:[#allocation6 + $0x78] sm:$0xff]
    %v115 = vld [vmem:[#allocation6 + $0x80] sm:$0xff]
    %v116 = vld [vmem:[#allocation6 + $0x88] sm:$0xff]
    %v117 = vld [vmem:[#allocation6 + $0x90] sm:$0xff]
    %v118 = vld [vmem:[#allocation6 + $0x98] sm:$0xff]
    %v119 = vld [vmem:[#allocation6 + $0xa0] sm:$0xff]
    %v120 = vld [vmem:[#allocation6 + $0xa8] sm:$0xff]
    %v121 = vld [vmem:[#allocation6 + $0xb0] sm:$0xff]
    %v122 = vld [vmem:[#allocation6 + $0xb8] sm:$0xff]
    %v123 = vld [vmem:[#allocation6 + $0xc0] sm:$0xff]
    %v124 = vld [vmem:[#allocation6 + $0xc8] sm:$0xff]
    %v125 = vld [vmem:[#allocation6 + $0xd0] sm:$0xff]
    %v126 = vld [vmem:[#allocation6 + $0xd8] sm:$0xff]
    %v127 = vld [vmem:[#allocation6 + $0xe0] sm:$0xff]
    %v128 = vld [vmem:[#allocation6 + $0xe8] sm:$0xff]
    %v129 = vld [vmem:[#allocation6 + $0xf0] sm:$0xff]
    %v130 = vld [vmem:[#allocation6 + $0xf8] sm:$0xff]
    %v131 = vld [vmem:[#allocation6 + $0x100] sm:$0xff]
    %v132 = vld [vmem:[#allocation6 + $0x108] sm:$0xff]
    %v133 = vld [vmem:[#allocation6 + $0x110] sm:$0xff]
    %v134 = vld [vmem:[#allocation6 + $0x118] sm:$0xff]
    %v135 = vld [vmem:[#allocation6 + $0x120] sm:$0xff]
    %v136 = vld [vmem:[#allocation6 + $0x128] sm:$0xff]
    %v137 = vld [vmem:[#allocation6 + $0x130] sm:$0xff]
    %v138 = vld [vmem:[#allocation6 + $0x138] sm:$0xff]
    %v139 = vld [vmem:[#allocation6 + $0x140] sm:$0xff]
    %v140 = vld [vmem:[#allocation6 + $0x148] sm:$0xff]
    %v141 = vld [vmem:[#allocation6 + $0x150] sm:$0xff]
    %v142 = vld [vmem:[#allocation6 + $0x158] sm:$0xff]
    %v143 = vld [vmem:[#allocation6 + $0x160] sm:$0xff]
    %v144 = vld [vmem:[#allocation6 + $0x168] sm:$0xff]
    %v145 = vld [vmem:[#allocation6 + $0x170] sm:$0xff]
    %v146 = vld [vmem:[#allocation6 + $0x178] sm:$0xff]
    %v147 = vld [vmem:[#allocation6 + $0x180] sm:$0xff]
    %v148 = vld [vmem:[#allocation6 + $0x188] sm:$0xff]
    %v149 = vld [vmem:[#allocation6 + $0x190] sm:$0xff]
    %v150 = vld [vmem:[#allocation6 + $0x198] sm:$0xff]
    %v151 = vld [vmem:[#allocation6 + $0x1a0] sm:$0xff]
    %v152 = vld [vmem:[#allocation6 + $0x1a8] sm:$0xff]
    %v153 = vld [vmem:[#allocation6 + $0x1b0] sm:$0xff]
    %v154 = vld [vmem:[#allocation6 + $0x1b8] sm:$0xff]
    %v155 = vld [vmem:[#allocation6 + $0x1c0] sm:$0xff]
    %v156 = vld [vmem:[#allocation6 + $0x1c8] sm:$0xff]
    %v157 = vld [vmem:[#allocation6 + $0x1d0] sm:$0xff]
    %v158 = vld [vmem:[#allocation6 + $0x1d8] sm:$0xff]
    %v159 = vld [vmem:[#allocation6 + $0x1e0] sm:$0xff]
    %v160 = vld [vmem:[#allocation6 + $0x1e8] sm:$0xff]
    %v161 = vld [vmem:[#allocation6 + $0x1f0] sm:$0xff]
    %v162 = vld [vmem:[#allocation6 + $0x1f8] sm:$0xff]
    %v163 = vld [vmem:[%s6] sm:$0xf]
    %v164 = vld [vmem:[%s6 + $0x4] sm:$0xf]
    %v165 = vld [vmem:[%s6 + $0x8] sm:$0xf]
    %v166 = vld [vmem:[%s6 + $0xc] sm:$0xf]
    %v167 = vld [vmem:[%s6 + $0x10] sm:$0xf]
    %v168 = vld [vmem:[%s6 + $0x14] sm:$0xf]
    %v169 = vld [vmem:[%s6 + $0x18] sm:$0xf]
    %v170 = vld [vmem:[%s6 + $0x1c] sm:$0xf]
    %v171 = vld [vmem:[%s6 + $0x20] sm:$0xf]
    %v172 = vld [vmem:[%s6 + $0x24] sm:$0xf]
    %v173 = vld [vmem:[%s6 + $0x28] sm:$0xf]
    %v174 = vld [vmem:[%s6 + $0x2c] sm:$0xf]
    %v175 = vld [vmem:[%s6 + $0x30] sm:$0xf]
    %v176 = vld [vmem:[%s6 + $0x34] sm:$0xf]
    %v177 = vld [vmem:[%s6 + $0x38] sm:$0xf]
    %v178 = vld [vmem:[%s6 + $0x3c] sm:$0xf]
    %v179 = vld [vmem:[%s3] sm:$0xf]
    %v181 = vlaneseq
    %v182 = vshrl.u32 %v181, 7
    %v183 = vsub.s32 0, %v182
    %v184 = vrot.slane %v179, %v183
    %v185 = vlaneseq
    %v186 = vshrl.u32 %v185, 7
    %v187 = vsub.s32 1, %v186
    %v188 = vrot.slane %v179, %v187
    %v189 = vlaneseq
    %v190 = vshrl.u32 %v189, 7
    %v191 = vsub.s32 2, %v190
    %v192 = vrot.slane %v179, %v191
    %v193 = vlaneseq
    %v194 = vshrl.u32 %v193, 7
    %v195 = vsub.s32 3, %v194
    %v196 = vrot.slane %v179, %v195
    %v203 = vunpack.c.l.b16 %v65
    %v204 = vunpack.c.h.b16 %v65
    %v205 = vunpack.c.l.b16 %v66
    %v206 = vunpack.c.h.b16 %v66
    %v207 = vpack.c.b16 %v203, %v203
    %v208 = vpack.c.b16 %v204, %v204
    %v209 = vpack.c.b16 %v205, %v205
    %v210 = vpack.c.b16 %v206, %v206
    %vm211 = vcmask 39936
    %v213 = vsel %vm211, %v64, 0
    %vm215 = vcmask 1041408
    %vm216 = vcmask 1042432
    %v217 = vsel %vm215, 4294967295, 65535
    %v218 = vsel %vm216, %v217, 0
    %v220 = vand.u32 %v207, %v218
    %v223 = vand.u32 %v208, %v218
    %v226 = vand.u32 %v209, %v218
    %v229 = vand.u32 %v210, %v218
    %231 = vmatprep.subr.bf16.mxu0 0
    %232 = vmatpush1.bf16.msra.mxu0 0
    %233 = vmatprep.subr.bf16.mxu0 0
    %234 = vmatpush1.bf16.msra.mxu0 0
    %235 = vmatprep.subr.bf16.mxu0 0
    %236 = vmatpush1.bf16.msra.mxu0 0
    %237 = vmatprep.subr.bf16.mxu0 0
    %238 = vmatpush1.bf16.msra.mxu0 0
    %239 = vmatprep.subr.bf16.mxu0 0
    %240 = vmatpush1.bf16.msra.mxu0 0
    %241 = vmatprep.subr.bf16.mxu0 0
    %242 = vmatpush1.bf16.msra.mxu0 0
    %243 = vmatprep.subr.bf16.mxu0 0
    %244 = vmatpush1.bf16.msra.mxu0 0
    %245 = vmatprep.subr.bf16.mxu0 %v223
    %246 = vmatpush1.bf16.msra.mxu0 %v220
    %247 = vmatprep.subr.bf16.mxu0 0
    %248 = vmatpush2.bf16.msra.mxu0 0
    %249 = vmatprep.subr.bf16.mxu0 0
    %250 = vmatpush2.bf16.msra.mxu0 0
    %251 = vmatprep.subr.bf16.mxu0 0
    %252 = vmatpush2.bf16.msra.mxu0 0
    %253 = vmatprep.subr.bf16.mxu0 0
    %254 = vmatpush2.bf16.msra.mxu0 0
    %255 = vmatprep.subr.bf16.mxu0 0
    %256 = vmatpush2.bf16.msra.mxu0 0
    %257 = vmatprep.subr.bf16.mxu0 0
    %258 = vmatpush2.bf16.msra.mxu0 0
    %259 = vmatprep.subr.bf16.mxu0 0
    %260 = vmatpush2.bf16.msra.mxu0 0
    %261 = vmatprep.subr.bf16.mxu0 0
    %262 = vmatpush2.bf16.msra.mxu0 0
    %263 = vmatprep.mubr.bf16.mxu0 0
    %264 = vmatmul.mubr.bf16.gmra.mxu0 %v213
    %v265 = vpop.f32.mrf.mxu0
    %v266 = vadd.f32 %v184, %v265
    %v267 = vpop.f32.mrf.mxu0
    %v268 = vadd.f32 %v188, %v267
    %v269 = vpop.f32.mrf.mxu0
    %v270 = vpop.f32.mrf.mxu0
    %271 = vdwg.mxu0
    %272 = vmatprep.subr.bf16.mxu0 0
    %273 = vmatpush1.bf16.msra.mxu0 0
    %274 = vmatprep.subr.bf16.mxu0 0
    %275 = vmatpush1.bf16.msra.mxu0 0
    %276 = vmatprep.subr.bf16.mxu0 0
    %277 = vmatpush1.bf16.msra.mxu0 0
    %278 = vmatprep.subr.bf16.mxu0 0
    %279 = vmatpush1.bf16.msra.mxu0 0
    %280 = vmatprep.subr.bf16.mxu0 0
    %281 = vmatpush1.bf16.msra.mxu0 0
    %282 = vmatprep.subr.bf16.mxu0 0
    %283 = vmatpush1.bf16.msra.mxu0 0
    %284 = vmatprep.subr.bf16.mxu0 0
    %285 = vmatpush1.bf16.msra.mxu0 0
    %286 = vmatprep.subr.bf16.mxu0 %v229
    %287 = vmatpush1.bf16.msra.mxu0 %v226
    %288 = vmatprep.subr.bf16.mxu0 0
    %289 = vmatpush2.bf16.msra.mxu0 0
    %290 = vmatprep.subr.bf16.mxu0 0
    %291 = vmatpush2.bf16.msra.mxu0 0
    %292 = vmatprep.subr.bf16.mxu0 0
    %293 = vmatpush2.bf16.msra.mxu0 0
    %294 = vmatprep.subr.bf16.mxu0 0
    %295 = vmatpush2.bf16.msra.mxu0 0
    %296 = vmatprep.subr.bf16.mxu0 0
    %297 = vmatpush2.bf16.msra.mxu0 0
    %298 = vmatprep.subr.bf16.mxu0 0
    %299 = vmatpush2.bf16.msra.mxu0 0
    %300 = vmatprep.subr.bf16.mxu0 0
    %301 = vmatpush2.bf16.msra.mxu0 0
    %302 = vmatprep.subr.bf16.mxu0 0
    %303 = vmatpush2.bf16.msra.mxu0 0
    %304 = vmatprep.mubr.bf16.mxu0 0
    %305 = vmatmul.mubr.bf16.gmra.mxu0 %v213
    %v306 = vpop.f32.mrf.mxu0
    %v307 = vadd.f32 %v192, %v306
    %v308 = vpop.f32.mrf.mxu0
    %v309 = vadd.f32 %v196, %v308
    %v310 = vpop.f32.mrf.mxu0
    %v311 = vpop.f32.mrf.mxu0
    %312 = vdwg.mxu0
    %v313 = vld [vmem:[%s5] sm:$0xf]
    %v315 = vlaneseq
    %v316 = vshrl.u32 %v315, 7
    %v317 = vsub.s32 0, %v316
    %v318 = vrot.slane %v313, %v317
    %v319 = vlaneseq
    %v320 = vshrl.u32 %v319, 7
    %v321 = vsub.s32 1, %v320
    %v322 = vrot.slane %v313, %v321
    %v323 = vlaneseq
    %v324 = vshrl.u32 %v323, 7
    %v325 = vsub.s32 2, %v324
    %v326 = vrot.slane %v313, %v325
    %v327 = vlaneseq
    %v328 = vshrl.u32 %v327, 7
    %v329 = vsub.s32 3, %v328
    %v330 = vrot.slane %v313, %v329
    %v335 = vxor.u32 %v266, 2147483648
    %v336 = vmul.f32 %v335, 1.442695
    %v337 = vpow.pop %v336
    %v338 = vadd.f32 %v337, 1.0
    %v339 = vrcp.pop %v338
    %v340 = vmul.f32 1.0, %v339
    %v341 = vtanh.pop %v307
    %v342 = vxor.u32 %v309, 2147483648
    %v343 = vmul.f32 %v342, 1.442695
    %v344 = vpow.pop %v343
    %v345 = vadd.f32 %v344, 1.0
    %v346 = vrcp.pop %v345
    %v347 = vmul.f32 1.0, %v346
    %v348 = vmul.f32 %v340, %v341
    %v349 = vtanh.pop %v348
    %v350 = vmul.f32 %v347, %v349
    %v351 = vpack.c.bf16 %v350, %v350
    %v384 = vunpack.c.l.b16 %v99
    %v385 = vunpack.c.h.b16 %v99
    %v386 = vunpack.c.l.b16 %v100
    %v387 = vunpack.c.h.b16 %v100
    %v388 = vunpack.c.l.b16 %v101
    %v389 = vunpack.c.h.b16 %v101
    %v390 = vunpack.c.l.b16 %v102
    %v391 = vunpack.c.h.b16 %v102
    %v392 = vunpack.c.l.b16 %v103
    %v393 = vunpack.c.h.b16 %v103
    %v394 = vunpack.c.l.b16 %v104
    %v395 = vunpack.c.h.b16 %v104
    %v396 = vunpack.c.l.b16 %v105
    %v397 = vunpack.c.h.b16 %v105
    %v398 = vunpack.c.l.b16 %v106
    %v399 = vunpack.c.h.b16 %v106
    %v400 = vunpack.c.l.b16 %v107
    %v401 = vunpack.c.h.b16 %v107
    %v402 = vunpack.c.l.b16 %v108
    %v403 = vunpack.c.h.b16 %v108
    %v404 = vunpack.c.l.b16 %v109
    %v405 = vunpack.c.h.b16 %v109
    %v406 = vunpack.c.l.b16 %v110
    %v407 = vunpack.c.h.b16 %v110
    %v408 = vunpack.c.l.b16 %v111
    %v409 = vunpack.c.h.b16 %v111
    %v410 = vunpack.c.l.b16 %v112
    %v411 = vunpack.c.h.b16 %v112
    %v412 = vunpack.c.l.b16 %v113
    %v413 = vunpack.c.h.b16 %v113
    %v414 = vunpack.c.l.b16 %v114
    %v415 = vunpack.c.h.b16 %v114
    %v416 = vunpack.c.l.b16 %v115
    %v417 = vunpack.c.h.b16 %v115
    %v418 = vunpack.c.l.b16 %v116
    %v419 = vunpack.c.h.b16 %v116
    %v420 = vunpack.c.l.b16 %v117
    %v421 = vunpack.c.h.b16 %v117
    %v422 = vunpack.c.l.b16 %v118
    %v423 = vunpack.c.h.b16 %v118
    %v424 = vunpack.c.l.b16 %v119
    %v425 = vunpack.c.h.b16 %v119
    %v426 = vunpack.c.l.b16 %v120
    %v427 = vunpack.c.h.b16 %v120
    %v428 = vunpack.c.l.b16 %v121
    %v429 = vunpack.c.h.b16 %v121
    %v430 = vunpack.c.l.b16 %v122
    %v431 = vunpack.c.h.b16 %v122
    %v432 = vunpack.c.l.b16 %v123
    %v433 = vunpack.c.h.b16 %v123
    %v434 = vunpack.c.l.b16 %v124
    %v435 = vunpack.c.h.b16 %v124
    %v436 = vunpack.c.l.b16 %v125
    %v437 = vunpack.c.h.b16 %v125
    %v438 = vunpack.c.l.b16 %v126
    %v439 = vunpack.c.h.b16 %v126
    %v440 = vunpack.c.l.b16 %v127
    %v441 = vunpack.c.h.b16 %v127
    %v442 = vunpack.c.l.b16 %v128
    %v443 = vunpack.c.h.b16 %v128
    %v444 = vunpack.c.l.b16 %v129
    %v445 = vunpack.c.h.b16 %v129
    %v446 = vunpack.c.l.b16 %v130
    %v447 = vunpack.c.h.b16 %v130
    %v448 = vpack.c.b16 %v388, %v384
    %v449 = vpack.c.b16 %v389, %v385
    %v450 = vpack.c.b16 %v390, %v386
    %v451 = vpack.c.b16 %v391, %v387
    %v452 = vpack.c.b16 %v396, %v392
    %v453 = vpack.c.b16 %v397, %v393
    %v454 = vpack.c.b16 %v398, %v394
    %v455 = vpack.c.b16 %v399, %v395
    %v456 = vpack.c.b16 %v404, %v400
    %v457 = vpack.c.b16 %v405, %v401
    %v458 = vpack.c.b16 %v406, %v402
    %v459 = vpack.c.b16 %v407, %v403
    %v460 = vpack.c.b16 %v412, %v408
    %v461 = vpack.c.b16 %v413, %v409
    %v462 = vpack.c.b16 %v414, %v410
    %v463 = vpack.c.b16 %v415, %v411
    %v464 = vpack.c.b16 %v420, %v416
    %v465 = vpack.c.b16 %v421, %v417
    %v466 = vpack.c.b16 %v422, %v418
    %v467 = vpack.c.b16 %v423, %v419
    %v468 = vpack.c.b16 %v428, %v424
    %v469 = vpack.c.b16 %v429, %v425
    %v470 = vpack.c.b16 %v430, %v426
    %v471 = vpack.c.b16 %v431, %v427
    %v472 = vpack.c.b16 %v436, %v432
    %v473 = vpack.c.b16 %v437, %v433
    %v474 = vpack.c.b16 %v438, %v434
    %v475 = vpack.c.b16 %v439, %v435
    %v476 = vpack.c.b16 %v444, %v440
    %v477 = vpack.c.b16 %v445, %v441
    %v478 = vpack.c.b16 %v446, %v442
    %v479 = vpack.c.b16 %v447, %v443
    %512 = vmatprep.subr.bf16.mxu0 %v477
    %513 = vmatpush1.bf16.msra.mxu0 %v476
    %514 = vmatprep.subr.bf16.mxu0 %v473
    %515 = vmatpush1.bf16.msra.mxu0 %v472
    %516 = vmatprep.subr.bf16.mxu0 %v469
    %517 = vmatpush1.bf16.msra.mxu0 %v468
    %518 = vmatprep.subr.bf16.mxu0 %v465
    %519 = vmatpush1.bf16.msra.mxu0 %v464
    %520 = vmatprep.subr.bf16.mxu0 %v461
    %521 = vmatpush1.bf16.msra.mxu0 %v460
    %522 = vmatprep.subr.bf16.mxu0 %v457
    %523 = vmatpush1.bf16.msra.mxu0 %v456
    %524 = vmatprep.subr.bf16.mxu0 %v453
    %525 = vmatpush1.bf16.msra.mxu0 %v452
    %526 = vmatprep.subr.bf16.mxu0 %v449
    %527 = vmatpush1.bf16.msra.mxu0 %v448
    %528 = vmatprep.subr.bf16.mxu0 0
    %529 = vmatpush2.bf16.msra.mxu0 0
    %530 = vmatprep.subr.bf16.mxu0 0
    %531 = vmatpush2.bf16.msra.mxu0 0
    %532 = vmatprep.subr.bf16.mxu0 0
    %533 = vmatpush2.bf16.msra.mxu0 0
    %534 = vmatprep.subr.bf16.mxu0 0
    %535 = vmatpush2.bf16.msra.mxu0 0
    %536 = vmatprep.subr.bf16.mxu0 0
    %537 = vmatpush2.bf16.msra.mxu0 0
    %538 = vmatprep.subr.bf16.mxu0 0
    %539 = vmatpush2.bf16.msra.mxu0 0
    %540 = vmatprep.subr.bf16.mxu0 0
    %541 = vmatpush2.bf16.msra.mxu0 0
    %542 = vmatprep.subr.bf16.mxu0 0
    %543 = vmatpush2.bf16.msra.mxu0 0
    %544 = vmatprep.mubr.bf16.mxu0 0
    %545 = vmatmul.mubr.bf16.gmra.mxu0 %v351
    %v546 = vpop.f32.mrf.mxu0
    %v547 = vadd.f32 %v318, %v546
    %v548 = vpop.f32.mrf.mxu0
    %v549 = vpop.f32.mrf.mxu0
    %v550 = vpop.f32.mrf.mxu0
    %551 = vdwg.mxu0
    %552 = vmatprep.subr.bf16.mxu0 %v479
    %553 = vmatpush1.bf16.msra.mxu0 %v478
    %554 = vmatprep.subr.bf16.mxu0 %v475
    %555 = vmatpush1.bf16.msra.mxu0 %v474
    %556 = vmatprep.subr.bf16.mxu0 %v471
    %557 = vmatpush1.bf16.msra.mxu0 %v470
    %558 = vmatprep.subr.bf16.mxu0 %v467
    %559 = vmatpush1.bf16.msra.mxu0 %v466
    %560 = vmatprep.subr.bf16.mxu0 %v463
    %561 = vmatpush1.bf16.msra.mxu0 %v462
    %562 = vmatprep.subr.bf16.mxu0 %v459
    %563 = vmatpush1.bf16.msra.mxu0 %v458
    %564 = vmatprep.subr.bf16.mxu0 %v455
    %565 = vmatpush1.bf16.msra.mxu0 %v454
    %566 = vmatprep.subr.bf16.mxu0 %v451
    %567 = vmatpush1.bf16.msra.mxu0 %v450
    %568 = vmatprep.subr.bf16.mxu0 0
    %569 = vmatpush2.bf16.msra.mxu0 0
    %570 = vmatprep.subr.bf16.mxu0 0
    %571 = vmatpush2.bf16.msra.mxu0 0
    %572 = vmatprep.subr.bf16.mxu0 0
    %573 = vmatpush2.bf16.msra.mxu0 0
    %574 = vmatprep.subr.bf16.mxu0 0
    %575 = vmatpush2.bf16.msra.mxu0 0
    %576 = vmatprep.subr.bf16.mxu0 0
    %577 = vmatpush2.bf16.msra.mxu0 0
    %578 = vmatprep.subr.bf16.mxu0 0
    %579 = vmatpush2.bf16.msra.mxu0 0
    %580 = vmatprep.subr.bf16.mxu0 0
    %581 = vmatpush2.bf16.msra.mxu0 0
    %582 = vmatprep.subr.bf16.mxu0 0
    %583 = vmatpush2.bf16.msra.mxu0 0
    %584 = vmatprep.mubr.bf16.mxu0 0
    %585 = vmatmul.mubr.bf16.gmra.mxu0 %v351
    %v586 = vpop.f32.mrf.mxu0
    %v587 = vadd.f32 %v326, %v586
    %v588 = vpop.f32.mrf.mxu0
    %v589 = vadd.f32 %v330, %v588
    %v590 = vpop.f32.mrf.mxu0
    %v591 = vpop.f32.mrf.mxu0
    %592 = vdwg.mxu0
    %v593 = vxor.u32 %v547, 2147483648
    %v594 = vmul.f32 %v593, 1.442695
    %v595 = vpow.pop %v594
    %v596 = vadd.f32 %v595, 1.0
    %v597 = vrcp.pop %v596
    %v598 = vmul.f32 1.0, %v597
    %v599 = vtanh.pop %v587
    %v600 = vxor.u32 %v589, 2147483648
    %v601 = vmul.f32 %v600, 1.442695
    %v602 = vpow.pop %v601
    %v603 = vadd.f32 %v602, 1.0
    %v604 = vrcp.pop %v603
    %v605 = vmul.f32 1.0, %v604
    %v606 = vmul.f32 %v598, %v599
    %v607 = vtanh.pop %v606
    %v608 = vmul.f32 %v605, %v607
    %v609 = vpack.c.bf16 %v608, %v608
    %610 = vst [vmem:[#allocation2] sm:$0xf] %v609
    %v643 = vunpack.c.l.b16 %v67
    %v644 = vunpack.c.h.b16 %v67
    %v645 = vunpack.c.l.b16 %v68
    %v646 = vunpack.c.h.b16 %v68
    %v647 = vunpack.c.l.b16 %v69
    %v648 = vunpack.c.h.b16 %v69
    %v649 = vunpack.c.l.b16 %v70
    %v650 = vunpack.c.h.b16 %v70
    %v651 = vunpack.c.l.b16 %v71
    %v652 = vunpack.c.h.b16 %v71
    %v653 = vunpack.c.l.b16 %v72
    %v654 = vunpack.c.h.b16 %v72
    %v655 = vunpack.c.l.b16 %v73
    %v656 = vunpack.c.h.b16 %v73
    %v657 = vunpack.c.l.b16 %v74
    %v658 = vunpack.c.h.b16 %v74
    %v659 = vunpack.c.l.b16 %v75
    %v660 = vunpack.c.h.b16 %v75
    %v661 = vunpack.c.l.b16 %v76
    %v662 = vunpack.c.h.b16 %v76
    %v663 = vunpack.c.l.b16 %v77
    %v664 = vunpack.c.h.b16 %v77
    %v665 = vunpack.c.l.b16 %v78
    %v666 = vunpack.c.h.b16 %v78
    %v667 = vunpack.c.l.b16 %v79
    %v668 = vunpack.c.h.b16 %v79
    %v669 = vunpack.c.l.b16 %v80
    %v670 = vunpack.c.h.b16 %v80
    %v671 = vunpack.c.l.b16 %v81
    %v672 = vunpack.c.h.b16 %v81
    %v673 = vunpack.c.l.b16 %v82
    %v674 = vunpack.c.h.b16 %v82
    %v675 = vunpack.c.l.b16 %v83
    %v676 = vunpack.c.h.b16 %v83
    %v677 = vunpack.c.l.b16 %v84
    %v678 = vunpack.c.h.b16 %v84
    %v679 = vunpack.c.l.b16 %v85
    %v680 = vunpack.c.h.b16 %v85
    %v681 = vunpack.c.l.b16 %v86
    %v682 = vunpack.c.h.b16 %v86
    %v683 = vunpack.c.l.b16 %v87
    %v684 = vunpack.c.h.b16 %v87
    %v685 = vunpack.c.l.b16 %v88
    %v686 = vunpack.c.h.b16 %v88
    %v687 = vunpack.c.l.b16 %v89
    %v688 = vunpack.c.h.b16 %v89
    %v689 = vunpack.c.l.b16 %v90
    %v690 = vunpack.c.h.b16 %v90
    %v691 = vunpack.c.l.b16 %v91
    %v692 = vunpack.c.h.b16 %v91
    %v693 = vunpack.c.l.b16 %v92
    %v694 = vunpack.c.h.b16 %v92
    %v695 = vunpack.c.l.b16 %v93
    %v696 = vunpack.c.h.b16 %v93
    %v697 = vunpack.c.l.b16 %v94
    %v698 = vunpack.c.h.b16 %v94
    %v699 = vunpack.c.l.b16 %v95
    %v700 = vunpack.c.h.b16 %v95
    %v701 = vunpack.c.l.b16 %v96
    %v702 = vunpack.c.h.b16 %v96
    %v703 = vunpack.c.l.b16 %v97
    %v704 = vunpack.c.h.b16 %v97
    %v705 = vunpack.c.l.b16 %v98
    %v706 = vunpack.c.h.b16 %v98
    %v707 = vpack.c.b16 %v647, %v643
    %v708 = vpack.c.b16 %v648, %v644
    %v709 = vpack.c.b16 %v649, %v645
    %v710 = vpack.c.b16 %v650, %v646
    %v711 = vpack.c.b16 %v655, %v651
    %v712 = vpack.c.b16 %v656, %v652
    %v713 = vpack.c.b16 %v657, %v653
    %v714 = vpack.c.b16 %v658, %v654
    %v715 = vpack.c.b16 %v663, %v659
    %v716 = vpack.c.b16 %v664, %v660
    %v717 = vpack.c.b16 %v665, %v661
    %v718 = vpack.c.b16 %v666, %v662
    %v719 = vpack.c.b16 %v671, %v667
    %v720 = vpack.c.b16 %v672, %v668
    %v721 = vpack.c.b16 %v673, %v669
    %v722 = vpack.c.b16 %v674, %v670
    %v723 = vpack.c.b16 %v679, %v675
    %v724 = vpack.c.b16 %v680, %v676
    %v725 = vpack.c.b16 %v681, %v677
    %v726 = vpack.c.b16 %v682, %v678
    %v727 = vpack.c.b16 %v687, %v683
    %v728 = vpack.c.b16 %v688, %v684
    %v729 = vpack.c.b16 %v689, %v685
    %v730 = vpack.c.b16 %v690, %v686
    %v731 = vpack.c.b16 %v695, %v691
    %v732 = vpack.c.b16 %v696, %v692
    %v733 = vpack.c.b16 %v697, %v693
    %v734 = vpack.c.b16 %v698, %v694
    %v735 = vpack.c.b16 %v703, %v699
    %v736 = vpack.c.b16 %v704, %v700
    %v737 = vpack.c.b16 %v705, %v701
    %v738 = vpack.c.b16 %v706, %v702
    %771 = vmatprep.subr.bf16.mxu0 %v736
    %772 = vmatpush1.bf16.msra.mxu0 %v735
    %773 = vmatprep.subr.bf16.mxu0 %v732
    %774 = vmatpush1.bf16.msra.mxu0 %v731
    %775 = vmatprep.subr.bf16.mxu0 %v728
    %776 = vmatpush1.bf16.msra.mxu0 %v727
    %777 = vmatprep.subr.bf16.mxu0 %v724
    %778 = vmatpush1.bf16.msra.mxu0 %v723
    %779 = vmatprep.subr.bf16.mxu0 %v720
    %780 = vmatpush1.bf16.msra.mxu0 %v719
    %781 = vmatprep.subr.bf16.mxu0 %v716
    %782 = vmatpush1.bf16.msra.mxu0 %v715
    %783 = vmatprep.subr.bf16.mxu0 %v712
    %784 = vmatpush1.bf16.msra.mxu0 %v711
    %785 = vmatprep.subr.bf16.mxu0 %v708
    %786 = vmatpush1.bf16.msra.mxu0 %v707
    %787 = vmatprep.subr.bf16.mxu0 0
    %788 = vmatpush2.bf16.msra.mxu0 0
    %789 = vmatprep.subr.bf16.mxu0 0
    %790 = vmatpush2.bf16.msra.mxu0 0
    %791 = vmatprep.subr.bf16.mxu0 0
    %792 = vmatpush2.bf16.msra.mxu0 0
    %793 = vmatprep.subr.bf16.mxu0 0
    %794 = vmatpush2.bf16.msra.mxu0 0
    %795 = vmatprep.subr.bf16.mxu0 0
    %796 = vmatpush2.bf16.msra.mxu0 0
    %797 = vmatprep.subr.bf16.mxu0 0
    %798 = vmatpush2.bf16.msra.mxu0 0
    %799 = vmatprep.subr.bf16.mxu0 0
    %800 = vmatpush2.bf16.msra.mxu0 0
    %801 = vmatprep.subr.bf16.mxu0 0
    %802 = vmatpush2.bf16.msra.mxu0 0
    %803 = vmatprep.mubr.bf16.mxu0 0
    %804 = vmatmul.mubr.bf16.gmra.mxu0 %v351
    %v805 = vpop.f32.mrf.mxu0
    %v806 = vadd.f32 0.0, %v805
    %v807 = vpop.f32.mrf.mxu0
    %v808 = vadd.f32 0.0, %v807
    %v809 = vpop.f32.mrf.mxu0
    %v810 = vpop.f32.mrf.mxu0
    %811 = vdwg.mxu0
    %812 = vmatprep.subr.bf16.mxu0 %v738
    %813 = vmatpush1.bf16.msra.mxu0 %v737
    %814 = vmatprep.subr.bf16.mxu0 %v734
    %815 = vmatpush1.bf16.msra.mxu0 %v733
    %816 = vmatprep.subr.bf16.mxu0 %v730
    %817 = vmatpush1.bf16.msra.mxu0 %v729
    %818 = vmatprep.subr.bf16.mxu0 %v726
    %819 = vmatpush1.bf16.msra.mxu0 %v725
    %820 = vmatprep.subr.bf16.mxu0 %v722
    %821 = vmatpush1.bf16.msra.mxu0 %v721
    %822 = vmatprep.subr.bf16.mxu0 %v718
    %823 = vmatpush1.bf16.msra.mxu0 %v717
    %824 = vmatprep.subr.bf16.mxu0 %v714
    %825 = vmatpush1.bf16.msra.mxu0 %v713
    %826 = vmatprep.subr.bf16.mxu0 %v710
    %827 = vmatpush1.bf16.msra.mxu0 %v709
    %828 = vmatprep.subr.bf16.mxu0 0
    %829 = vmatpush2.bf16.msra.mxu0 0
    %830 = vmatprep.subr.bf16.mxu0 0
    %831 = vmatpush2.bf16.msra.mxu0 0
    %832 = vmatprep.subr.bf16.mxu0 0
    %833 = vmatpush2.bf16.msra.mxu0 0
    %834 = vmatprep.subr.bf16.mxu0 0
    %835 = vmatpush2.bf16.msra.mxu0 0
    %836 = vmatprep.subr.bf16.mxu0 0
    %837 = vmatpush2.bf16.msra.mxu0 0
    %838 = vmatprep.subr.bf16.mxu0 0
    %839 = vmatpush2.bf16.msra.mxu0 0
    %840 = vmatprep.subr.bf16.mxu0 0
    %841 = vmatpush2.bf16.msra.mxu0 0
    %842 = vmatprep.subr.bf16.mxu0 0
    %843 = vmatpush2.bf16.msra.mxu0 0
    %844 = vmatprep.mubr.bf16.mxu0 0
    %845 = vmatmul.mubr.bf16.gmra.mxu0 %v351
    %v846 = vpop.f32.mrf.mxu0
    %v847 = vadd.f32 0.0, %v846
    %v848 = vpop.f32.mrf.mxu0
    %v849 = vadd.f32 0.0, %v848
    %v850 = vpop.f32.mrf.mxu0
    %v851 = vpop.f32.mrf.mxu0
    %852 = vdwg.mxu0
    %v853 = vadd.f32 %v266, %v806
    %v854 = vadd.f32 %v268, %v808
    %v855 = vadd.f32 %v307, %v847
    %v856 = vadd.f32 %v309, %v849
    %v857 = vxor.u32 %v853, 2147483648
    %v858 = vmul.f32 %v857, 1.442695
    %v859 = vpow.pop %v858
    %v860 = vadd.f32 %v859, 1.0
    %v861 = vrcp.pop %v860
    %v862 = vmul.f32 1.0, %v861
    %v863 = vxor.u32 %v854, 2147483648
    %v864 = vmul.f32 %v863, 1.442695
    %v865 = vpow.pop %v864
    %v866 = vadd.f32 %v865, 1.0
    %v867 = vrcp.pop %v866
    %v868 = vmul.f32 1.0, %v867
    %v869 = vtanh.pop %v855
    %v870 = vxor.u32 %v856, 2147483648
    %v871 = vmul.f32 %v870, 1.442695
    %v872 = vpow.pop %v871
    %v873 = vadd.f32 %v872, 1.0
    %v874 = vrcp.pop %v873
    %v875 = vmul.f32 1.0, %v874
    %v876 = vmul.f32 %v868, %v348
    %v877 = vmul.f32 %v862, %v869
    %v878 = vadd.f32 %v876, %v877
    %v879 = vtanh.pop %v878
    %v880 = vmul.f32 %v875, %v879
    %v881 = vpack.c.bf16 %v880, %v880
    %v914 = vunpack.c.l.b16 %v131
    %v915 = vunpack.c.h.b16 %v131
    %v916 = vunpack.c.l.b16 %v132
    %v917 = vunpack.c.h.b16 %v132
    %v918 = vunpack.c.l.b16 %v133
    %v919 = vunpack.c.h.b16 %v133
    %v920 = vunpack.c.l.b16 %v134
    %v921 = vunpack.c.h.b16 %v134
    %v922 = vunpack.c.l.b16 %v135
    %v923 = vunpack.c.h.b16 %v135
    %v924 = vunpack.c.l.b16 %v136
    %v925 = vunpack.c.h.b16 %v136
    %v926 = vunpack.c.l.b16 %v137
    %v927 = vunpack.c.h.b16 %v137
    %v928 = vunpack.c.l.b16 %v138
    %v929 = vunpack.c.h.b16 %v138
    %v930 = vunpack.c.l.b16 %v139
    %v931 = vunpack.c.h.b16 %v139
    %v932 = vunpack.c.l.b16 %v140
    %v933 = vunpack.c.h.b16 %v140
    %v934 = vunpack.c.l.b16 %v141
    %v935 = vunpack.c.h.b16 %v141
    %v936 = vunpack.c.l.b16 %v142
    %v937 = vunpack.c.h.b16 %v142
    %v938 = vunpack.c.l.b16 %v143
    %v939 = vunpack.c.h.b16 %v143
    %v940 = vunpack.c.l.b16 %v144
    %v941 = vunpack.c.h.b16 %v144
    %v942 = vunpack.c.l.b16 %v145
    %v943 = vunpack.c.h.b16 %v145
    %v944 = vunpack.c.l.b16 %v146
    %v945 = vunpack.c.h.b16 %v146
    %v946 = vunpack.c.l.b16 %v147
    %v947 = vunpack.c.h.b16 %v147
    %v948 = vunpack.c.l.b16 %v148
    %v949 = vunpack.c.h.b16 %v148
    %v950 = vunpack.c.l.b16 %v149
    %v951 = vunpack.c.h.b16 %v149
    %v952 = vunpack.c.l.b16 %v150
    %v953 = vunpack.c.h.b16 %v150
    %v954 = vunpack.c.l.b16 %v151
    %v955 = vunpack.c.h.b16 %v151
    %v956 = vunpack.c.l.b16 %v152
    %v957 = vunpack.c.h.b16 %v152
    %v958 = vunpack.c.l.b16 %v153
    %v959 = vunpack.c.h.b16 %v153
    %v960 = vunpack.c.l.b16 %v154
    %v961 = vunpack.c.h.b16 %v154
    %v962 = vunpack.c.l.b16 %v155
    %v963 = vunpack.c.h.b16 %v155
    %v964 = vunpack.c.l.b16 %v156
    %v965 = vunpack.c.h.b16 %v156
    %v966 = vunpack.c.l.b16 %v157
    %v967 = vunpack.c.h.b16 %v157
    %v968 = vunpack.c.l.b16 %v158
    %v969 = vunpack.c.h.b16 %v158
    %v970 = vunpack.c.l.b16 %v159
    %v971 = vunpack.c.h.b16 %v159
    %v972 = vunpack.c.l.b16 %v160
    %v973 = vunpack.c.h.b16 %v160
    %v974 = vunpack.c.l.b16 %v161
    %v975 = vunpack.c.h.b16 %v161
    %v976 = vunpack.c.l.b16 %v162
    %v977 = vunpack.c.h.b16 %v162
    %v978 = vpack.c.b16 %v918, %v914
    %v979 = vpack.c.b16 %v919, %v915
    %v980 = vpack.c.b16 %v920, %v916
    %v981 = vpack.c.b16 %v921, %v917
    %v982 = vpack.c.b16 %v926, %v922
    %v983 = vpack.c.b16 %v927, %v923
    %v984 = vpack.c.b16 %v928, %v924
    %v985 = vpack.c.b16 %v929, %v925
    %v986 = vpack.c.b16 %v934, %v930
    %v987 = vpack.c.b16 %v935, %v931
    %v988 = vpack.c.b16 %v936, %v932
    %v989 = vpack.c.b16 %v937, %v933
    %v990 = vpack.c.b16 %v942, %v938
    %v991 = vpack.c.b16 %v943, %v939
    %v992 = vpack.c.b16 %v944, %v940
    %v993 = vpack.c.b16 %v945, %v941
    %v994 = vpack.c.b16 %v950, %v946
    %v995 = vpack.c.b16 %v951, %v947
    %v996 = vpack.c.b16 %v952, %v948
    %v997 = vpack.c.b16 %v953, %v949
    %v998 = vpack.c.b16 %v958, %v954
    %v999 = vpack.c.b16 %v959, %v955
    %v1000 = vpack.c.b16 %v960, %v956
    %v1001 = vpack.c.b16 %v961, %v957
    %v1002 = vpack.c.b16 %v966, %v962
    %v1003 = vpack.c.b16 %v967, %v963
    %v1004 = vpack.c.b16 %v968, %v964
    %v1005 = vpack.c.b16 %v969, %v965
    %v1006 = vpack.c.b16 %v974, %v970
    %v1007 = vpack.c.b16 %v975, %v971
    %v1008 = vpack.c.b16 %v976, %v972
    %v1009 = vpack.c.b16 %v977, %v973
    %1042 = vmatprep.subr.bf16.mxu0 %v477
    %1043 = vmatpush1.bf16.msra.mxu0 %v476
    %1044 = vmatprep.subr.bf16.mxu0 %v473
    %1045 = vmatpush1.bf16.msra.mxu0 %v472
    %1046 = vmatprep.subr.bf16.mxu0 %v469
    %1047 = vmatpush1.bf16.msra.mxu0 %v468
    %1048 = vmatprep.subr.bf16.mxu0 %v465
    %1049 = vmatpush1.bf16.msra.mxu0 %v464
    %1050 = vmatprep.subr.bf16.mxu0 %v461
    %1051 = vmatpush1.bf16.msra.mxu0 %v460
    %1052 = vmatprep.subr.bf16.mxu0 %v457
    %1053 = vmatpush1.bf16.msra.mxu0 %v456
    %1054 = vmatprep.subr.bf16.mxu0 %v453
    %1055 = vmatpush1.bf16.msra.mxu0 %v452
    %1056 = vmatprep.subr.bf16.mxu0 %v449
    %1057 = vmatpush1.bf16.msra.mxu0 %v448
    %1058 = vmatprep.subr.bf16.mxu0 %v1007
    %1059 = vmatpush2.bf16.msra.mxu0 %v1006
    %1060 = vmatprep.subr.bf16.mxu0 %v1003
    %1061 = vmatpush2.bf16.msra.mxu0 %v1002
    %1062 = vmatprep.subr.bf16.mxu0 %v999
    %1063 = vmatpush2.bf16.msra.mxu0 %v998
    %1064 = vmatprep.subr.bf16.mxu0 %v995
    %1065 = vmatpush2.bf16.msra.mxu0 %v994
    %1066 = vmatprep.subr.bf16.mxu0 %v991
    %1067 = vmatpush2.bf16.msra.mxu0 %v990
    %1068 = vmatprep.subr.bf16.mxu0 %v987
    %1069 = vmatpush2.bf16.msra.mxu0 %v986
    %1070 = vmatprep.subr.bf16.mxu0 %v983
    %1071 = vmatpush2.bf16.msra.mxu0 %v982
    %1072 = vmatprep.subr.bf16.mxu0 %v979
    %1073 = vmatpush2.bf16.msra.mxu0 %v978
    %1074 = vmatprep.mubr.bf16.mxu0 %v609
    %1075 = vmatmul.mubr.bf16.gmra.mxu0 %v881
    %v1076 = vpop.f32.mrf.mxu0
    %v1077 = vadd.f32 %v318, %v1076
    %v1078 = vpop.f32.mrf.mxu0
    %v1079 = vadd.f32 %v322, %v1078
    %v1080 = vpop.f32.mrf.mxu0
    %v1081 = vpop.f32.mrf.mxu0
    %1082 = vdwg.mxu0
    %1083 = vmatprep.subr.bf16.mxu0 %v479
    %1084 = vmatpush1.bf16.msra.mxu0 %v478
    %1085 = vmatprep.subr.bf16.mxu0 %v475
    %1086 = vmatpush1.bf16.msra.mxu0 %v474
    %1087 = vmatprep.subr.bf16.mxu0 %v471
    %1088 = vmatpush1.bf16.msra.mxu0 %v470
    %1089 = vmatprep.subr.bf16.mxu0 %v467
    %1090 = vmatpush1.bf16.msra.mxu0 %v466
    %1091 = vmatprep.subr.bf16.mxu0 %v463
    %1092 = vmatpush1.bf16.msra.mxu0 %v462
    %1093 = vmatprep.subr.bf16.mxu0 %v459
    %1094 = vmatpush1.bf16.msra.mxu0 %v458
    %1095 = vmatprep.subr.bf16.mxu0 %v455
    %1096 = vmatpush1.bf16.msra.mxu0 %v454
    %1097 = vmatprep.subr.bf16.mxu0 %v451
    %1098 = vmatpush1.bf16.msra.mxu0 %v450
    %1099 = vmatprep.subr.bf16.mxu0 %v1009
    %1100 = vmatpush2.bf16.msra.mxu0 %v1008
    %1101 = vmatprep.subr.bf16.mxu0 %v1005
    %1102 = vmatpush2.bf16.msra.mxu0 %v1004
    %1103 = vmatprep.subr.bf16.mxu0 %v1001
    %1104 = vmatpush2.bf16.msra.mxu0 %v1000
    %1105 = vmatprep.subr.bf16.mxu0 %v997
    %1106 = vmatpush2.bf16.msra.mxu0 %v996
    %1107 = vmatprep.subr.bf16.mxu0 %v993
    %1108 = vmatpush2.bf16.msra.mxu0 %v992
    %1109 = vmatprep.subr.bf16.mxu0 %v989
    %1110 = vmatpush2.bf16.msra.mxu0 %v988
    %1111 = vmatprep.subr.bf16.mxu0 %v985
    %1112 = vmatpush2.bf16.msra.mxu0 %v984
    %1113 = vmatprep.subr.bf16.mxu0 %v981
    %1114 = vmatpush2.bf16.msra.mxu0 %v980
    %1115 = vmatprep.mubr.bf16.mxu0 %v609
    %1116 = vmatmul.mubr.bf16.gmra.mxu0 %v881
    %v1117 = vpop.f32.mrf.mxu0
    %v1118 = vadd.f32 %v326, %v1117
    %v1119 = vpop.f32.mrf.mxu0
    %v1120 = vadd.f32 %v330, %v1119
    %v1121 = vpop.f32.mrf.mxu0
    %v1122 = vpop.f32.mrf.mxu0
    %1123 = vdwg.mxu0
    %v1124 = vxor.u32 %v1077, 2147483648
    %v1125 = vmul.f32 %v1124, 1.442695
    %v1126 = vpow.pop %v1125
    %v1127 = vadd.f32 %v1126, 1.0
    %v1128 = vrcp.pop %v1127
    %v1129 = vmul.f32 1.0, %v1128
    %v1130 = vxor.u32 %v1079, 2147483648
    %v1131 = vmul.f32 %v1130, 1.442695
    %v1132 = vpow.pop %v1131
    %v1133 = vadd.f32 %v1132, 1.0
    %v1134 = vrcp.pop %v1133
    %v1135 = vmul.f32 1.0, %v1134
    %v1136 = vtanh.pop %v1118
    %v1137 = vxor.u32 %v1120, 2147483648
    %v1138 = vmul.f32 %v1137, 1.442695
    %v1139 = vpow.pop %v1138
    %v1140 = vadd.f32 %v1139, 1.0
    %v1141 = vrcp.pop %v1140
    %v1142 = vmul.f32 1.0, %v1141
    %v1143 = vmul.f32 %v1135, %v606
    %v1144 = vmul.f32 %v1129, %v1136
    %v1145 = vadd.f32 %v1143, %v1144
    %v1146 = vtanh.pop %v1145
    %v1147 = vmul.f32 %v1142, %v1146
    %v1148 = vpack.c.bf16 %v1147, %v1147
    %s1149 = scalar_lea.vmem [#allocation2], 4
    %1150 = vst [vmem:[%s1149] sm:$0xf] %v1148
    %1151 = vmatprep.subr.bf16.mxu0 %v736
    %1152 = vmatpush1.bf16.msra.mxu0 %v735
    %1153 = vmatprep.subr.bf16.mxu0 %v732
    %1154 = vmatpush1.bf16.msra.mxu0 %v731
    %1155 = vmatprep.subr.bf16.mxu0 %v728
    %1156 = vmatpush1.bf16.msra.mxu0 %v727
    %1157 = vmatprep.subr.bf16.mxu0 %v724
    %1158 = vmatpush1.bf16.msra.mxu0 %v723
    %1159 = vmatprep.subr.bf16.mxu0 %v720
    %1160 = vmatpush1.bf16.msra.mxu0 %v719
    %1161 = vmatprep.subr.bf16.mxu0 %v716
    %1162 = vmatpush1.bf16.msra.mxu0 %v715
    %1163 = vmatprep.subr.bf16.mxu0 %v712
    %1164 = vmatpush1.bf16.msra.mxu0 %v711
    %1165 = vmatprep.subr.bf16.mxu0 %v708
    %1166 = vmatpush1.bf16.msra.mxu0 %v707
    %1167 = vmatprep.subr.bf16.mxu0 0
    %1168 = vmatpush2.bf16.msra.mxu0 0
    %1169 = vmatprep.subr.bf16.mxu0 0
    %1170 = vmatpush2.bf16.msra.mxu0 0
    %1171 = vmatprep.subr.bf16.mxu0 0
    %1172 = vmatpush2.bf16.msra.mxu0 0
    %1173 = vmatprep.subr.bf16.mxu0 0
    %1174 = vmatpush2.bf16.msra.mxu0 0
    %1175 = vmatprep.subr.bf16.mxu0 0
    %1176 = vmatpush2.bf16.msra.mxu0 0
    %1177 = vmatprep.subr.bf16.mxu0 0
    %1178 = vmatpush2.bf16.msra.mxu0 0
    %1179 = vmatprep.subr.bf16.mxu0 0
    %1180 = vmatpush2.bf16.msra.mxu0 0
    %1181 = vmatprep.subr.bf16.mxu0 0
    %1182 = vmatpush2.bf16.msra.mxu0 0
    %1183 = vmatprep.mubr.bf16.mxu0 0
    %1184 = vmatmul.mubr.bf16.gmra.mxu0 %v881
    %v1185 = vpop.f32.mrf.mxu0
    %v1186 = vadd.f32 0.0, %v1185
    %v1187 = vpop.f32.mrf.mxu0
    %v1188 = vadd.f32 0.0, %v1187
    %v1189 = vpop.f32.mrf.mxu0
    %v1190 = vpop.f32.mrf.mxu0
    %1191 = vdwg.mxu0
    %1192 = vmatprep.subr.bf16.mxu0 %v738
    %1193 = vmatpush1.bf16.msra.mxu0 %v737
    %1194 = vmatprep.subr.bf16.mxu0 %v734
    %1195 = vmatpush1.bf16.msra.mxu0 %v733
    %1196 = vmatprep.subr.bf16.mxu0 %v730
    %1197 = vmatpush1.bf16.msra.mxu0 %v729
    %1198 = vmatprep.subr.bf16.mxu0 %v726
    %1199 = vmatpush1.bf16.msra.mxu0 %v725
    %1200 = vmatprep.subr.bf16.mxu0 %v722
    %1201 = vmatpush1.bf16.msra.mxu0 %v721
    %1202 = vmatprep.subr.bf16.mxu0 %v718
    %1203 = vmatpush1.bf16.msra.mxu0 %v717
    %1204 = vmatprep.subr.bf16.mxu0 %v714
    %1205 = vmatpush1.bf16.msra.mxu0 %v713
    %1206 = vmatprep.subr.bf16.mxu0 %v710
    %1207 = vmatpush1.bf16.msra.mxu0 %v709
    %1208 = vmatprep.subr.bf16.mxu0 0
    %1209 = vmatpush2.bf16.msra.mxu0 0
    %1210 = vmatprep.subr.bf16.mxu0 0
    %1211 = vmatpush2.bf16.msra.mxu0 0
    %1212 = vmatprep.subr.bf16.mxu0 0
    %1213 = vmatpush2.bf16.msra.mxu0 0
    %1214 = vmatprep.subr.bf16.mxu0 0
    %1215 = vmatpush2.bf16.msra.mxu0 0
    %1216 = vmatprep.subr.bf16.mxu0 0
    %1217 = vmatpush2.bf16.msra.mxu0 0
    %1218 = vmatprep.subr.bf16.mxu0 0
    %1219 = vmatpush2.bf16.msra.mxu0 0
    %1220 = vmatprep.subr.bf16.mxu0 0
    %1221 = vmatpush2.bf16.msra.mxu0 0
    %1222 = vmatprep.subr.bf16.mxu0 0
    %1223 = vmatpush2.bf16.msra.mxu0 0
    %1224 = vmatprep.mubr.bf16.mxu0 0
    %1225 = vmatmul.mubr.bf16.gmra.mxu0 %v881
    %v1226 = vpop.f32.mrf.mxu0
    %v1227 = vadd.f32 0.0, %v1226
    %v1228 = vpop.f32.mrf.mxu0
    %v1229 = vadd.f32 0.0, %v1228
    %v1230 = vpop.f32.mrf.mxu0
    %v1231 = vpop.f32.mrf.mxu0
    %1232 = vdwg.mxu0
    %v1233 = vadd.f32 %v266, %v1186
    %v1234 = vadd.f32 %v268, %v1188
    %v1235 = vadd.f32 %v307, %v1227
    %v1236 = vadd.f32 %v309, %v1229
    %v1237 = vxor.u32 %v1233, 2147483648
    %v1238 = vmul.f32 %v1237, 1.442695
    %v1239 = vpow.pop %v1238
    %v1240 = vadd.f32 %v1239, 1.0
    %v1241 = vrcp.pop %v1240
    %v1242 = vmul.f32 1.0, %v1241
    %v1243 = vxor.u32 %v1234, 2147483648
    %v1244 = vmul.f32 %v1243, 1.442695
    %v1245 = vpow.pop %v1244
    %v1246 = vadd.f32 %v1245, 1.0
    %v1247 = vrcp.pop %v1246
    %v1248 = vmul.f32 1.0, %v1247
    %v1249 = vtanh.pop %v1235
    %v1250 = vxor.u32 %v1236, 2147483648
    %v1251 = vmul.f32 %v1250, 1.442695
    %v1252 = vpow.pop %v1251
    %v1253 = vadd.f32 %v1252, 1.0
    %v1254 = vrcp.pop %v1253
    %v1255 = vmul.f32 1.0, %v1254
    %v1256 = vmul.f32 %v1248, %v878
    %v1257 = vmul.f32 %v1242, %v1249
    %v1258 = vadd.f32 %v1256, %v1257
    %v1259 = vtanh.pop %v1258
    %v1260 = vmul.f32 %v1255, %v1259
    %v1261 = vpack.c.bf16 %v1260, %v1260
    %1262 = vmatprep.subr.bf16.mxu0 %v477
    %1263 = vmatpush1.bf16.msra.mxu0 %v476
    %1264 = vmatprep.subr.bf16.mxu0 %v473
    %1265 = vmatpush1.bf16.msra.mxu0 %v472
    %1266 = vmatprep.subr.bf16.mxu0 %v469
    %1267 = vmatpush1.bf16.msra.mxu0 %v468
    %1268 = vmatprep.subr.bf16.mxu0 %v465
    %1269 = vmatpush1.bf16.msra.mxu0 %v464
    %1270 = vmatprep.subr.bf16.mxu0 %v461
    %1271 = vmatpush1.bf16.msra.mxu0 %v460
    %1272 = vmatprep.subr.bf16.mxu0 %v457
    %1273 = vmatpush1.bf16.msra.mxu0 %v456
    %1274 = vmatprep.subr.bf16.mxu0 %v453
    %1275 = vmatpush1.bf16.msra.mxu0 %v452
    %1276 = vmatprep.subr.bf16.mxu0 %v449
    %1277 = vmatpush1.bf16.msra.mxu0 %v448
    %1278 = vmatprep.subr.bf16.mxu0 %v1007
    %1279 = vmatpush2.bf16.msra.mxu0 %v1006
    %1280 = vmatprep.subr.bf16.mxu0 %v1003
    %1281 = vmatpush2.bf16.msra.mxu0 %v1002
    %1282 = vmatprep.subr.bf16.mxu0 %v999
    %1283 = vmatpush2.bf16.msra.mxu0 %v998
    %1284 = vmatprep.subr.bf16.mxu0 %v995
    %1285 = vmatpush2.bf16.msra.mxu0 %v994
    %1286 = vmatprep.subr.bf16.mxu0 %v991
    %1287 = vmatpush2.bf16.msra.mxu0 %v990
    %1288 = vmatprep.subr.bf16.mxu0 %v987
    %1289 = vmatpush2.bf16.msra.mxu0 %v986
    %1290 = vmatprep.subr.bf16.mxu0 %v983
    %1291 = vmatpush2.bf16.msra.mxu0 %v982
    %1292 = vmatprep.subr.bf16.mxu0 %v979
    %1293 = vmatpush2.bf16.msra.mxu0 %v978
    %1294 = vmatprep.mubr.bf16.mxu0 %v1148
    %1295 = vmatmul.mubr.bf16.gmra.mxu0 %v1261
    %v1296 = vpop.f32.mrf.mxu0
    %v1297 = vadd.f32 %v318, %v1296
    %v1298 = vpop.f32.mrf.mxu0
    %v1299 = vadd.f32 %v322, %v1298
    %v1300 = vpop.f32.mrf.mxu0
    %v1301 = vpop.f32.mrf.mxu0
    %1302 = vdwg.mxu0
    %1303 = vmatprep.subr.bf16.mxu0 %v479
    %1304 = vmatpush1.bf16.msra.mxu0 %v478
    %1305 = vmatprep.subr.bf16.mxu0 %v475
    %1306 = vmatpush1.bf16.msra.mxu0 %v474
    %1307 = vmatprep.subr.bf16.mxu0 %v471
    %1308 = vmatpush1.bf16.msra.mxu0 %v470
    %1309 = vmatprep.subr.bf16.mxu0 %v467
    %1310 = vmatpush1.bf16.msra.mxu0 %v466
    %1311 = vmatprep.subr.bf16.mxu0 %v463
    %1312 = vmatpush1.bf16.msra.mxu0 %v462
    %1313 = vmatprep.subr.bf16.mxu0 %v459
    %1314 = vmatpush1.bf16.msra.mxu0 %v458
    %1315 = vmatprep.subr.bf16.mxu0 %v455
    %1316 = vmatpush1.bf16.msra.mxu0 %v454
    %1317 = vmatprep.subr.bf16.mxu0 %v451
    %1318 = vmatpush1.bf16.msra.mxu0 %v450
    %1319 = vmatprep.subr.bf16.mxu0 %v1009
    %1320 = vmatpush2.bf16.msra.mxu0 %v1008
    %1321 = vmatprep.subr.bf16.mxu0 %v1005
    %1322 = vmatpush2.bf16.msra.mxu0 %v1004
    %1323 = vmatprep.subr.bf16.mxu0 %v1001
    %1324 = vmatpush2.bf16.msra.mxu0 %v1000
    %1325 = vmatprep.subr.bf16.mxu0 %v997
    %1326 = vmatpush2.bf16.msra.mxu0 %v996
    %1327 = vmatprep.subr.bf16.mxu0 %v993
    %1328 = vmatpush2.bf16.msra.mxu0 %v992
    %1329 = vmatprep.subr.bf16.mxu0 %v989
    %1330 = vmatpush2.bf16.msra.mxu0 %v988
    %1331 = vmatprep.subr.bf16.mxu0 %v985
    %1332 = vmatpush2.bf16.msra.mxu0 %v984
    %1333 = vmatprep.subr.bf16.mxu0 %v981
    %1334 = vmatpush2.bf16.msra.mxu0 %v980
    %1335 = vmatprep.mubr.bf16.mxu0 %v1148
    %1336 = vmatmul.mubr.bf16.gmra.mxu0 %v1261
    %v1337 = vpop.f32.mrf.mxu0
    %v1338 = vadd.f32 %v326, %v1337
    %v1339 = vpop.f32.mrf.mxu0
    %v1340 = vadd.f32 %v330, %v1339
    %v1341 = vpop.f32.mrf.mxu0
    %v1342 = vpop.f32.mrf.mxu0
    %1343 = vdwg.mxu0
    %v1344 = vxor.u32 %v1297, 2147483648
    %v1345 = vmul.f32 %v1344, 1.442695
    %v1346 = vpow.pop %v1345
    %v1347 = vadd.f32 %v1346, 1.0
    %v1348 = vrcp.pop %v1347
    %v1349 = vmul.f32 1.0, %v1348
    %v1350 = vxor.u32 %v1299, 2147483648
    %v1351 = vmul.f32 %v1350, 1.442695
    %v1352 = vpow.pop %v1351
    %v1353 = vadd.f32 %v1352, 1.0
    %v1354 = vrcp.pop %v1353
    %v1355 = vmul.f32 1.0, %v1354
    %v1356 = vtanh.pop %v1338
    %v1357 = vxor.u32 %v1340, 2147483648
    %v1358 = vmul.f32 %v1357, 1.442695
    %v1359 = vpow.pop %v1358
    %v1360 = vadd.f32 %v1359, 1.0
    %v1361 = vrcp.pop %v1360
    %v1362 = vmul.f32 1.0, %v1361
    %v1363 = vmul.f32 %v1355, %v1145
    %v1364 = vmul.f32 %v1349, %v1356
    %v1365 = vadd.f32 %v1363, %v1364
    %v1366 = vtanh.pop %v1365
    %v1367 = vmul.f32 %v1362, %v1366
    %v1368 = vpack.c.bf16 %v1367, %v1367
    %s1369 = scalar_lea.vmem [#allocation2], 8
    %1370 = vst [vmem:[%s1369] sm:$0xf] %v1368
    %1371 = vmatprep.subr.bf16.mxu0 %v736
    %1372 = vmatpush1.bf16.msra.mxu0 %v735
    %1373 = vmatprep.subr.bf16.mxu0 %v732
    %1374 = vmatpush1.bf16.msra.mxu0 %v731
    %1375 = vmatprep.subr.bf16.mxu0 %v728
    %1376 = vmatpush1.bf16.msra.mxu0 %v727
    %1377 = vmatprep.subr.bf16.mxu0 %v724
    %1378 = vmatpush1.bf16.msra.mxu0 %v723
    %1379 = vmatprep.subr.bf16.mxu0 %v720
    %1380 = vmatpush1.bf16.msra.mxu0 %v719
    %1381 = vmatprep.subr.bf16.mxu0 %v716
    %1382 = vmatpush1.bf16.msra.mxu0 %v715
    %1383 = vmatprep.subr.bf16.mxu0 %v712
    %1384 = vmatpush1.bf16.msra.mxu0 %v711
    %1385 = vmatprep.subr.bf16.mxu0 %v708
    %1386 = vmatpush1.bf16.msra.mxu0 %v707
    %1387 = vmatprep.subr.bf16.mxu0 0
    %1388 = vmatpush2.bf16.msra.mxu0 0
    %1389 = vmatprep.subr.bf16.mxu0 0
    %1390 = vmatpush2.bf16.msra.mxu0 0
    %1391 = vmatprep.subr.bf16.mxu0 0
    %1392 = vmatpush2.bf16.msra.mxu0 0
    %1393 = vmatprep.subr.bf16.mxu0 0
    %1394 = vmatpush2.bf16.msra.mxu0 0
    %1395 = vmatprep.subr.bf16.mxu0 0
    %1396 = vmatpush2.bf16.msra.mxu0 0
    %1397 = vmatprep.subr.bf16.mxu0 0
    %1398 = vmatpush2.bf16.msra.mxu0 0
    %1399 = vmatprep.subr.bf16.mxu0 0
    %1400 = vmatpush2.bf16.msra.mxu0 0
    %1401 = vmatprep.subr.bf16.mxu0 0
    %1402 = vmatpush2.bf16.msra.mxu0 0
    %1403 = vmatprep.mubr.bf16.mxu0 0
    %1404 = vmatmul.mubr.bf16.gmra.mxu0 %v1261
    %v1405 = vpop.f32.mrf.mxu0
    %v1406 = vadd.f32 0.0, %v1405
    %v1407 = vpop.f32.mrf.mxu0
    %v1408 = vadd.f32 0.0, %v1407
    %v1409 = vpop.f32.mrf.mxu0
    %v1410 = vpop.f32.mrf.mxu0
    %1411 = vdwg.mxu0
    %1412 = vmatprep.subr.bf16.mxu0 %v738
    %1413 = vmatpush1.bf16.msra.mxu0 %v737
    %1414 = vmatprep.subr.bf16.mxu0 %v734
    %1415 = vmatpush1.bf16.msra.mxu0 %v733
    %1416 = vmatprep.subr.bf16.mxu0 %v730
    %1417 = vmatpush1.bf16.msra.mxu0 %v729
    %1418 = vmatprep.subr.bf16.mxu0 %v726
    %1419 = vmatpush1.bf16.msra.mxu0 %v725
    %1420 = vmatprep.subr.bf16.mxu0 %v722
    %1421 = vmatpush1.bf16.msra.mxu0 %v721
    %1422 = vmatprep.subr.bf16.mxu0 %v718
    %1423 = vmatpush1.bf16.msra.mxu0 %v717
    %1424 = vmatprep.subr.bf16.mxu0 %v714
    %1425 = vmatpush1.bf16.msra.mxu0 %v713
    %1426 = vmatprep.subr.bf16.mxu0 %v710
    %1427 = vmatpush1.bf16.msra.mxu0 %v709
    %1428 = vmatprep.subr.bf16.mxu0 0
    %1429 = vmatpush2.bf16.msra.mxu0 0
    %1430 = vmatprep.subr.bf16.mxu0 0
    %1431 = vmatpush2.bf16.msra.mxu0 0
    %1432 = vmatprep.subr.bf16.mxu0 0
    %1433 = vmatpush2.bf16.msra.mxu0 0
    %1434 = vmatprep.subr.bf16.mxu0 0
    %1435 = vmatpush2.bf16.msra.mxu0 0
    %1436 = vmatprep.subr.bf16.mxu0 0
    %1437 = vmatpush2.bf16.msra.mxu0 0
    %1438 = vmatprep.subr.bf16.mxu0 0
    %1439 = vmatpush2.bf16.msra.mxu0 0
    %1440 = vmatprep.subr.bf16.mxu0 0
    %1441 = vmatpush2.bf16.msra.mxu0 0
    %1442 = vmatprep.subr.bf16.mxu0 0
    %1443 = vmatpush2.bf16.msra.mxu0 0
    %1444 = vmatprep.mubr.bf16.mxu0 0
    %1445 = vmatmul.mubr.bf16.gmra.mxu0 %v1261
    %v1446 = vpop.f32.mrf.mxu0
    %v1447 = vadd.f32 0.0, %v1446
    %v1448 = vpop.f32.mrf.mxu0
    %v1449 = vadd.f32 0.0, %v1448
    %v1450 = vpop.f32.mrf.mxu0
    %v1451 = vpop.f32.mrf.mxu0
    %1452 = vdwg.mxu0
    %v1453 = vadd.f32 %v266, %v1406
    %v1454 = vadd.f32 %v268, %v1408
    %v1455 = vadd.f32 %v307, %v1447
    %v1456 = vadd.f32 %v309, %v1449
    %v1457 = vxor.u32 %v1453, 2147483648
    %v1458 = vmul.f32 %v1457, 1.442695
    %v1459 = vpow.pop %v1458
    %v1460 = vadd.f32 %v1459, 1.0
    %v1461 = vrcp.pop %v1460
    %v1462 = vmul.f32 1.0, %v1461
    %v1463 = vxor.u32 %v1454, 2147483648
    %v1464 = vmul.f32 %v1463, 1.442695
    %v1465 = vpow.pop %v1464
    %v1466 = vadd.f32 %v1465, 1.0
    %v1467 = vrcp.pop %v1466
    %v1468 = vmul.f32 1.0, %v1467
    %v1469 = vtanh.pop %v1455
    %v1470 = vxor.u32 %v1456, 2147483648
    %v1471 = vmul.f32 %v1470, 1.442695
    %v1472 = vpow.pop %v1471
    %v1473 = vadd.f32 %v1472, 1.0
    %v1474 = vrcp.pop %v1473
    %v1475 = vmul.f32 1.0, %v1474
    %v1476 = vmul.f32 %v1468, %v1258
    %v1477 = vmul.f32 %v1462, %v1469
    %v1478 = vadd.f32 %v1476, %v1477
    %v1479 = vtanh.pop %v1478
    %v1480 = vmul.f32 %v1475, %v1479
    %v1481 = vpack.c.bf16 %v1480, %v1480
    %1482 = vmatprep.subr.bf16.mxu0 %v477
    %1483 = vmatpush1.bf16.msra.mxu0 %v476
    %1484 = vmatprep.subr.bf16.mxu0 %v473
    %1485 = vmatpush1.bf16.msra.mxu0 %v472
    %1486 = vmatprep.subr.bf16.mxu0 %v469
    %1487 = vmatpush1.bf16.msra.mxu0 %v468
    %1488 = vmatprep.subr.bf16.mxu0 %v465
    %1489 = vmatpush1.bf16.msra.mxu0 %v464
    %1490 = vmatprep.subr.bf16.mxu0 %v461
    %1491 = vmatpush1.bf16.msra.mxu0 %v460
    %1492 = vmatprep.subr.bf16.mxu0 %v457
    %1493 = vmatpush1.bf16.msra.mxu0 %v456
    %1494 = vmatprep.subr.bf16.mxu0 %v453
    %1495 = vmatpush1.bf16.msra.mxu0 %v452
    %1496 = vmatprep.subr.bf16.mxu0 %v449
    %1497 = vmatpush1.bf16.msra.mxu0 %v448
    %1498 = vmatprep.subr.bf16.mxu0 %v1007
    %1499 = vmatpush2.bf16.msra.mxu0 %v1006
    %1500 = vmatprep.subr.bf16.mxu0 %v1003
    %1501 = vmatpush2.bf16.msra.mxu0 %v1002
    %1502 = vmatprep.subr.bf16.mxu0 %v999
    %1503 = vmatpush2.bf16.msra.mxu0 %v998
    %1504 = vmatprep.subr.bf16.mxu0 %v995
    %1505 = vmatpush2.bf16.msra.mxu0 %v994
    %1506 = vmatprep.subr.bf16.mxu0 %v991
    %1507 = vmatpush2.bf16.msra.mxu0 %v990
    %1508 = vmatprep.subr.bf16.mxu0 %v987
    %1509 = vmatpush2.bf16.msra.mxu0 %v986
    %1510 = vmatprep.subr.bf16.mxu0 %v983
    %1511 = vmatpush2.bf16.msra.mxu0 %v982
    %1512 = vmatprep.subr.bf16.mxu0 %v979
    %1513 = vmatpush2.bf16.msra.mxu0 %v978
    %1514 = vmatprep.mubr.bf16.mxu0 %v1368
    %1515 = vmatmul.mubr.bf16.gmra.mxu0 %v1481
    %v1516 = vpop.f32.mrf.mxu0
    %v1517 = vadd.f32 %v318, %v1516
    %v1518 = vpop.f32.mrf.mxu0
    %v1519 = vadd.f32 %v322, %v1518
    %v1520 = vpop.f32.mrf.mxu0
    %v1521 = vpop.f32.mrf.mxu0
    %1522 = vdwg.mxu0
    %1523 = vmatprep.subr.bf16.mxu0 %v479
    %1524 = vmatpush1.bf16.msra.mxu0 %v478
    %1525 = vmatprep.subr.bf16.mxu0 %v475
    %1526 = vmatpush1.bf16.msra.mxu0 %v474
    %1527 = vmatprep.subr.bf16.mxu0 %v471
    %1528 = vmatpush1.bf16.msra.mxu0 %v470
    %1529 = vmatprep.subr.bf16.mxu0 %v467
    %1530 = vmatpush1.bf16.msra.mxu0 %v466
    %1531 = vmatprep.subr.bf16.mxu0 %v463
    %1532 = vmatpush1.bf16.msra.mxu0 %v462
    %1533 = vmatprep.subr.bf16.mxu0 %v459
    %1534 = vmatpush1.bf16.msra.mxu0 %v458
    %1535 = vmatprep.subr.bf16.mxu0 %v455
    %1536 = vmatpush1.bf16.msra.mxu0 %v454
    %1537 = vmatprep.subr.bf16.mxu0 %v451
    %1538 = vmatpush1.bf16.msra.mxu0 %v450
    %1539 = vmatprep.subr.bf16.mxu0 %v1009
    %1540 = vmatpush2.bf16.msra.mxu0 %v1008
    %1541 = vmatprep.subr.bf16.mxu0 %v1005
    %1542 = vmatpush2.bf16.msra.mxu0 %v1004
    %1543 = vmatprep.subr.bf16.mxu0 %v1001
    %1544 = vmatpush2.bf16.msra.mxu0 %v1000
    %1545 = vmatprep.subr.bf16.mxu0 %v997
    %1546 = vmatpush2.bf16.msra.mxu0 %v996
    %1547 = vmatprep.subr.bf16.mxu0 %v993
    %1548 = vmatpush2.bf16.msra.mxu0 %v992
    %1549 = vmatprep.subr.bf16.mxu0 %v989
    %1550 = vmatpush2.bf16.msra.mxu0 %v988
    %1551 = vmatprep.subr.bf16.mxu0 %v985
    %1552 = vmatpush2.bf16.msra.mxu0 %v984
    %1553 = vmatprep.subr.bf16.mxu0 %v981
    %1554 = vmatpush2.bf16.msra.mxu0 %v980
    %1555 = vmatprep.mubr.bf16.mxu0 %v1368
    %1556 = vmatmul.mubr.bf16.gmra.mxu0 %v1481
    %v1557 = vpop.f32.mrf.mxu0
    %v1558 = vadd.f32 %v326, %v1557
    %v1559 = vpop.f32.mrf.mxu0
    %v1560 = vadd.f32 %v330, %v1559
    %v1561 = vpop.f32.mrf.mxu0
    %v1562 = vpop.f32.mrf.mxu0
    %1563 = vdwg.mxu0
    %v1564 = vxor.u32 %v1517, 2147483648
    %v1565 = vmul.f32 %v1564, 1.442695
    %v1566 = vpow.pop %v1565
    %v1567 = vadd.f32 %v1566, 1.0
    %v1568 = vrcp.pop %v1567
    %v1569 = vmul.f32 1.0, %v1568
    %v1570 = vxor.u32 %v1519, 2147483648
    %v1571 = vmul.f32 %v1570, 1.442695
    %v1572 = vpow.pop %v1571
    %v1573 = vadd.f32 %v1572, 1.0
    %v1574 = vrcp.pop %v1573
    %v1575 = vmul.f32 1.0, %v1574
    %v1576 = vtanh.pop %v1558
    %v1577 = vxor.u32 %v1560, 2147483648
    %v1578 = vmul.f32 %v1577, 1.442695
    %v1579 = vpow.pop %v1578
    %v1580 = vadd.f32 %v1579, 1.0
    %v1581 = vrcp.pop %v1580
    %v1582 = vmul.f32 1.0, %v1581
    %v1583 = vmul.f32 %v1575, %v1365
    %v1584 = vmul.f32 %v1569, %v1576
    %v1585 = vadd.f32 %v1583, %v1584
    %v1586 = vtanh.pop %v1585
    %v1587 = vmul.f32 %v1582, %v1586
    %v1588 = vpack.c.bf16 %v1587, %v1587
    %s1589 = scalar_lea.vmem [#allocation2], 12
    %1590 = vst [vmem:[%s1589] sm:$0xf] %v1588
    %1591 = vmatprep.subr.bf16.mxu0 %v736
    %1592 = vmatpush1.bf16.msra.mxu0 %v735
    %1593 = vmatprep.subr.bf16.mxu0 %v732
    %1594 = vmatpush1.bf16.msra.mxu0 %v731
    %1595 = vmatprep.subr.bf16.mxu0 %v728
    %1596 = vmatpush1.bf16.msra.mxu0 %v727
    %1597 = vmatprep.subr.bf16.mxu0 %v724
    %1598 = vmatpush1.bf16.msra.mxu0 %v723
    %1599 = vmatprep.subr.bf16.mxu0 %v720
    %1600 = vmatpush1.bf16.msra.mxu0 %v719
    %1601 = vmatprep.subr.bf16.mxu0 %v716
    %1602 = vmatpush1.bf16.msra.mxu0 %v715
    %1603 = vmatprep.subr.bf16.mxu0 %v712
    %1604 = vmatpush1.bf16.msra.mxu0 %v711
    %1605 = vmatprep.subr.bf16.mxu0 %v708
    %1606 = vmatpush1.bf16.msra.mxu0 %v707
    %1607 = vmatprep.subr.bf16.mxu0 0
    %1608 = vmatpush2.bf16.msra.mxu0 0
    %1609 = vmatprep.subr.bf16.mxu0 0
    %1610 = vmatpush2.bf16.msra.mxu0 0
    %1611 = vmatprep.subr.bf16.mxu0 0
    %1612 = vmatpush2.bf16.msra.mxu0 0
    %1613 = vmatprep.subr.bf16.mxu0 0
    %1614 = vmatpush2.bf16.msra.mxu0 0
    %1615 = vmatprep.subr.bf16.mxu0 0
    %1616 = vmatpush2.bf16.msra.mxu0 0
    %1617 = vmatprep.subr.bf16.mxu0 0
    %1618 = vmatpush2.bf16.msra.mxu0 0
    %1619 = vmatprep.subr.bf16.mxu0 0
    %1620 = vmatpush2.bf16.msra.mxu0 0
    %1621 = vmatprep.subr.bf16.mxu0 0
    %1622 = vmatpush2.bf16.msra.mxu0 0
    %1623 = vmatprep.mubr.bf16.mxu0 0
    %1624 = vmatmul.mubr.bf16.gmra.mxu0 %v1481
    %v1625 = vpop.f32.mrf.mxu0
    %v1626 = vadd.f32 0.0, %v1625
    %v1627 = vpop.f32.mrf.mxu0
    %v1628 = vadd.f32 0.0, %v1627
    %v1629 = vpop.f32.mrf.mxu0
    %v1630 = vpop.f32.mrf.mxu0
    %1631 = vdwg.mxu0
    %1632 = vmatprep.subr.bf16.mxu0 %v738
    %1633 = vmatpush1.bf16.msra.mxu0 %v737
    %1634 = vmatprep.subr.bf16.mxu0 %v734
    %1635 = vmatpush1.bf16.msra.mxu0 %v733
    %1636 = vmatprep.subr.bf16.mxu0 %v730
    %1637 = vmatpush1.bf16.msra.mxu0 %v729
    %1638 = vmatprep.subr.bf16.mxu0 %v726
    %1639 = vmatpush1.bf16.msra.mxu0 %v725
    %1640 = vmatprep.subr.bf16.mxu0 %v722
    %1641 = vmatpush1.bf16.msra.mxu0 %v721
    %1642 = vmatprep.subr.bf16.mxu0 %v718
    %1643 = vmatpush1.bf16.msra.mxu0 %v717
    %1644 = vmatprep.subr.bf16.mxu0 %v714
    %1645 = vmatpush1.bf16.msra.mxu0 %v713
    %1646 = vmatprep.subr.bf16.mxu0 %v710
    %1647 = vmatpush1.bf16.msra.mxu0 %v709
    %1648 = vmatprep.subr.bf16.mxu0 0
    %1649 = vmatpush2.bf16.msra.mxu0 0
    %1650 = vmatprep.subr.bf16.mxu0 0
    %1651 = vmatpush2.bf16.msra.mxu0 0
    %1652 = vmatprep.subr.bf16.mxu0 0
    %1653 = vmatpush2.bf16.msra.mxu0 0
    %1654 = vmatprep.subr.bf16.mxu0 0
    %1655 = vmatpush2.bf16.msra.mxu0 0
    %1656 = vmatprep.subr.bf16.mxu0 0
    %1657 = vmatpush2.bf16.msra.mxu0 0
    %1658 = vmatprep.subr.bf16.mxu0 0
    %1659 = vmatpush2.bf16.msra.mxu0 0
    %1660 = vmatprep.subr.bf16.mxu0 0
    %1661 = vmatpush2.bf16.msra.mxu0 0
    %1662 = vmatprep.subr.bf16.mxu0 0
    %1663 = vmatpush2.bf16.msra.mxu0 0
    %1664 = vmatprep.mubr.bf16.mxu0 0
    %1665 = vmatmul.mubr.bf16.gmra.mxu0 %v1481
    %v1666 = vpop.f32.mrf.mxu0
    %v1667 = vadd.f32 0.0, %v1666
    %v1668 = vpop.f32.mrf.mxu0
    %v1669 = vadd.f32 0.0, %v1668
    %v1670 = vpop.f32.mrf.mxu0
    %v1671 = vpop.f32.mrf.mxu0
    %1672 = vdwg.mxu0
    %v1673 = vadd.f32 %v266, %v1626
    %v1674 = vadd.f32 %v268, %v1628
    %v1675 = vadd.f32 %v307, %v1667
    %v1676 = vadd.f32 %v309, %v1669
    %v1677 = vxor.u32 %v1673, 2147483648
    %v1678 = vmul.f32 %v1677, 1.442695
    %v1679 = vpow.pop %v1678
    %v1680 = vadd.f32 %v1679, 1.0
    %v1681 = vrcp.pop %v1680
    %v1682 = vmul.f32 1.0, %v1681
    %v1683 = vxor.u32 %v1674, 2147483648
    %v1684 = vmul.f32 %v1683, 1.442695
    %v1685 = vpow.pop %v1684
    %v1686 = vadd.f32 %v1685, 1.0
    %v1687 = vrcp.pop %v1686
    %v1688 = vmul.f32 1.0, %v1687
    %v1689 = vtanh.pop %v1675
    %v1690 = vxor.u32 %v1676, 2147483648
    %v1691 = vmul.f32 %v1690, 1.442695
    %v1692 = vpow.pop %v1691
    %v1693 = vadd.f32 %v1692, 1.0
    %v1694 = vrcp.pop %v1693
    %v1695 = vmul.f32 1.0, %v1694
    %v1696 = vmul.f32 %v1688, %v1478
    %v1697 = vmul.f32 %v1682, %v1689
    %v1698 = vadd.f32 %v1696, %v1697
    %v1699 = vtanh.pop %v1698
    %v1700 = vmul.f32 %v1695, %v1699
    %v1701 = vpack.c.bf16 %v1700, %v1700
    %1702 = vmatprep.subr.bf16.mxu0 %v477
    %1703 = vmatpush1.bf16.msra.mxu0 %v476
    %1704 = vmatprep.subr.bf16.mxu0 %v473
    %1705 = vmatpush1.bf16.msra.mxu0 %v472
    %1706 = vmatprep.subr.bf16.mxu0 %v469
    %1707 = vmatpush1.bf16.msra.mxu0 %v468
    %1708 = vmatprep.subr.bf16.mxu0 %v465
    %1709 = vmatpush1.bf16.msra.mxu0 %v464
    %1710 = vmatprep.subr.bf16.mxu0 %v461
    %1711 = vmatpush1.bf16.msra.mxu0 %v460
    %1712 = vmatprep.subr.bf16.mxu0 %v457
    %1713 = vmatpush1.bf16.msra.mxu0 %v456
    %1714 = vmatprep.subr.bf16.mxu0 %v453
    %1715 = vmatpush1.bf16.msra.mxu0 %v452
    %1716 = vmatprep.subr.bf16.mxu0 %v449
    %1717 = vmatpush1.bf16.msra.mxu0 %v448
    %1718 = vmatprep.subr.bf16.mxu0 %v1007
    %1719 = vmatpush2.bf16.msra.mxu0 %v1006
    %1720 = vmatprep.subr.bf16.mxu0 %v1003
    %1721 = vmatpush2.bf16.msra.mxu0 %v1002
    %1722 = vmatprep.subr.bf16.mxu0 %v999
    %1723 = vmatpush2.bf16.msra.mxu0 %v998
    %1724 = vmatprep.subr.bf16.mxu0 %v995
    %1725 = vmatpush2.bf16.msra.mxu0 %v994
    %1726 = vmatprep.subr.bf16.mxu0 %v991
    %1727 = vmatpush2.bf16.msra.mxu0 %v990
    %1728 = vmatprep.subr.bf16.mxu0 %v987
    %1729 = vmatpush2.bf16.msra.mxu0 %v986
    %1730 = vmatprep.subr.bf16.mxu0 %v983
    %1731 = vmatpush2.bf16.msra.mxu0 %v982
    %1732 = vmatprep.subr.bf16.mxu0 %v979
    %1733 = vmatpush2.bf16.msra.mxu0 %v978
    %1734 = vmatprep.mubr.bf16.mxu0 %v1588
    %1735 = vmatmul.mubr.bf16.gmra.mxu0 %v1701
    %v1736 = vpop.f32.mrf.mxu0
    %v1737 = vadd.f32 %v318, %v1736
    %v1738 = vpop.f32.mrf.mxu0
    %v1739 = vadd.f32 %v322, %v1738
    %v1740 = vpop.f32.mrf.mxu0
    %v1741 = vpop.f32.mrf.mxu0
    %1742 = vdwg.mxu0
    %1743 = vmatprep.subr.bf16.mxu0 %v479
    %1744 = vmatpush1.bf16.msra.mxu0 %v478
    %1745 = vmatprep.subr.bf16.mxu0 %v475
    %1746 = vmatpush1.bf16.msra.mxu0 %v474
    %1747 = vmatprep.subr.bf16.mxu0 %v471
    %1748 = vmatpush1.bf16.msra.mxu0 %v470
    %1749 = vmatprep.subr.bf16.mxu0 %v467
    %1750 = vmatpush1.bf16.msra.mxu0 %v466
    %1751 = vmatprep.subr.bf16.mxu0 %v463
    %1752 = vmatpush1.bf16.msra.mxu0 %v462
    %1753 = vmatprep.subr.bf16.mxu0 %v459
    %1754 = vmatpush1.bf16.msra.mxu0 %v458
    %1755 = vmatprep.subr.bf16.mxu0 %v455
    %1756 = vmatpush1.bf16.msra.mxu0 %v454
    %1757 = vmatprep.subr.bf16.mxu0 %v451
    %1758 = vmatpush1.bf16.msra.mxu0 %v450
    %1759 = vmatprep.subr.bf16.mxu0 %v1009
    %1760 = vmatpush2.bf16.msra.mxu0 %v1008
    %1761 = vmatprep.subr.bf16.mxu0 %v1005
    %1762 = vmatpush2.bf16.msra.mxu0 %v1004
    %1763 = vmatprep.subr.bf16.mxu0 %v1001
    %1764 = vmatpush2.bf16.msra.mxu0 %v1000
    %1765 = vmatprep.subr.bf16.mxu0 %v997
    %1766 = vmatpush2.bf16.msra.mxu0 %v996
    %1767 = vmatprep.subr.bf16.mxu0 %v993
    %1768 = vmatpush2.bf16.msra.mxu0 %v992
    %1769 = vmatprep.subr.bf16.mxu0 %v989
    %1770 = vmatpush2.bf16.msra.mxu0 %v988
    %1771 = vmatprep.subr.bf16.mxu0 %v985
    %1772 = vmatpush2.bf16.msra.mxu0 %v984
    %1773 = vmatprep.subr.bf16.mxu0 %v981
    %1774 = vmatpush2.bf16.msra.mxu0 %v980
    %1775 = vmatprep.mubr.bf16.mxu0 %v1588
    %1776 = vmatmul.mubr.bf16.gmra.mxu0 %v1701
    %v1777 = vpop.f32.mrf.mxu0
    %v1778 = vadd.f32 %v326, %v1777
    %v1779 = vpop.f32.mrf.mxu0
    %v1780 = vadd.f32 %v330, %v1779
    %v1781 = vpop.f32.mrf.mxu0
    %v1782 = vpop.f32.mrf.mxu0
    %1783 = vdwg.mxu0
    %v1784 = vxor.u32 %v1737, 2147483648
    %v1785 = vmul.f32 %v1784, 1.442695
    %v1786 = vpow.pop %v1785
    %v1787 = vadd.f32 %v1786, 1.0
    %v1788 = vrcp.pop %v1787
    %v1789 = vmul.f32 1.0, %v1788
    %v1790 = vxor.u32 %v1739, 2147483648
    %v1791 = vmul.f32 %v1790, 1.442695
    %v1792 = vpow.pop %v1791
    %v1793 = vadd.f32 %v1792, 1.0
    %v1794 = vrcp.pop %v1793
    %v1795 = vmul.f32 1.0, %v1794
    %v1796 = vtanh.pop %v1778
    %v1797 = vxor.u32 %v1780, 2147483648
    %v1798 = vmul.f32 %v1797, 1.442695
    %v1799 = vpow.pop %v1798
    %v1800 = vadd.f32 %v1799, 1.0
    %v1801 = vrcp.pop %v1800
    %v1802 = vmul.f32 1.0, %v1801
    %v1803 = vmul.f32 %v1795, %v1585
    %v1804 = vmul.f32 %v1789, %v1796
    %v1805 = vadd.f32 %v1803, %v1804
    %v1806 = vtanh.pop %v1805
    %v1807 = vmul.f32 %v1802, %v1806
    %v1808 = vpack.c.bf16 %v1807, %v1807
    %s1809 = scalar_lea.vmem [#allocation2], 16
    %1810 = vst [vmem:[%s1809] sm:$0xf] %v1808
    %1811 = vmatprep.subr.bf16.mxu0 %v736
    %1812 = vmatpush1.bf16.msra.mxu0 %v735
    %1813 = vmatprep.subr.bf16.mxu0 %v732
    %1814 = vmatpush1.bf16.msra.mxu0 %v731
    %1815 = vmatprep.subr.bf16.mxu0 %v728
    %1816 = vmatpush1.bf16.msra.mxu0 %v727
    %1817 = vmatprep.subr.bf16.mxu0 %v724
    %1818 = vmatpush1.bf16.msra.mxu0 %v723
    %1819 = vmatprep.subr.bf16.mxu0 %v720
    %1820 = vmatpush1.bf16.msra.mxu0 %v719
    %1821 = vmatprep.subr.bf16.mxu0 %v716
    %1822 = vmatpush1.bf16.msra.mxu0 %v715
    %1823 = vmatprep.subr.bf16.mxu0 %v712
    %1824 = vmatpush1.bf16.msra.mxu0 %v711
    %1825 = vmatprep.subr.bf16.mxu0 %v708
    %1826 = vmatpush1.bf16.msra.mxu0 %v707
    %1827 = vmatprep.subr.bf16.mxu0 0
    %1828 = vmatpush2.bf16.msra.mxu0 0
    %1829 = vmatprep.subr.bf16.mxu0 0
    %1830 = vmatpush2.bf16.msra.mxu0 0
    %1831 = vmatprep.subr.bf16.mxu0 0
    %1832 = vmatpush2.bf16.msra.mxu0 0
    %1833 = vmatprep.subr.bf16.mxu0 0
    %1834 = vmatpush2.bf16.msra.mxu0 0
    %1835 = vmatprep.subr.bf16.mxu0 0
    %1836 = vmatpush2.bf16.msra.mxu0 0
    %1837 = vmatprep.subr.bf16.mxu0 0
    %1838 = vmatpush2.bf16.msra.mxu0 0
    %1839 = vmatprep.subr.bf16.mxu0 0
    %1840 = vmatpush2.bf16.msra.mxu0 0
    %1841 = vmatprep.subr.bf16.mxu0 0
    %1842 = vmatpush2.bf16.msra.mxu0 0
    %1843 = vmatprep.mubr.bf16.mxu0 0
    %1844 = vmatmul.mubr.bf16.gmra.mxu0 %v1701
    %v1845 = vpop.f32.mrf.mxu0
    %v1846 = vadd.f32 0.0, %v1845
    %v1847 = vpop.f32.mrf.mxu0
    %v1848 = vadd.f32 0.0, %v1847
    %v1849 = vpop.f32.mrf.mxu0
    %v1850 = vpop.f32.mrf.mxu0
    %1851 = vdwg.mxu0
    %1852 = vmatprep.subr.bf16.mxu0 %v738
    %1853 = vmatpush1.bf16.msra.mxu0 %v737
    %1854 = vmatprep.subr.bf16.mxu0 %v734
    %1855 = vmatpush1.bf16.msra.mxu0 %v733
    %1856 = vmatprep.subr.bf16.mxu0 %v730
    %1857 = vmatpush1.bf16.msra.mxu0 %v729
    %1858 = vmatprep.subr.bf16.mxu0 %v726
    %1859 = vmatpush1.bf16.msra.mxu0 %v725
    %1860 = vmatprep.subr.bf16.mxu0 %v722
    %1861 = vmatpush1.bf16.msra.mxu0 %v721
    %1862 = vmatprep.subr.bf16.mxu0 %v718
    %1863 = vmatpush1.bf16.msra.mxu0 %v717
    %1864 = vmatprep.subr.bf16.mxu0 %v714
    %1865 = vmatpush1.bf16.msra.mxu0 %v713
    %1866 = vmatprep.subr.bf16.mxu0 %v710
    %1867 = vmatpush1.bf16.msra.mxu0 %v709
    %1868 = vmatprep.subr.bf16.mxu0 0
    %1869 = vmatpush2.bf16.msra.mxu0 0
    %1870 = vmatprep.subr.bf16.mxu0 0
    %1871 = vmatpush2.bf16.msra.mxu0 0
    %1872 = vmatprep.subr.bf16.mxu0 0
    %1873 = vmatpush2.bf16.msra.mxu0 0
    %1874 = vmatprep.subr.bf16.mxu0 0
    %1875 = vmatpush2.bf16.msra.mxu0 0
    %1876 = vmatprep.subr.bf16.mxu0 0
    %1877 = vmatpush2.bf16.msra.mxu0 0
    %1878 = vmatprep.subr.bf16.mxu0 0
    %1879 = vmatpush2.bf16.msra.mxu0 0
    %1880 = vmatprep.subr.bf16.mxu0 0
    %1881 = vmatpush2.bf16.msra.mxu0 0
    %1882 = vmatprep.subr.bf16.mxu0 0
    %1883 = vmatpush2.bf16.msra.mxu0 0
    %1884 = vmatprep.mubr.bf16.mxu0 0
    %1885 = vmatmul.mubr.bf16.gmra.mxu0 %v1701
    %v1886 = vpop.f32.mrf.mxu0
    %v1887 = vadd.f32 0.0, %v1886
    %v1888 = vpop.f32.mrf.mxu0
    %v1889 = vadd.f32 0.0, %v1888
    %v1890 = vpop.f32.mrf.mxu0
    %v1891 = vpop.f32.mrf.mxu0
    %1892 = vdwg.mxu0
    %v1893 = vadd.f32 %v266, %v1846
    %v1894 = vadd.f32 %v268, %v1848
    %v1895 = vadd.f32 %v307, %v1887
    %v1896 = vadd.f32 %v309, %v1889
    %v1897 = vxor.u32 %v1893, 2147483648
    %v1898 = vmul.f32 %v1897, 1.442695
    %v1899 = vpow.pop %v1898
    %v1900 = vadd.f32 %v1899, 1.0
    %v1901 = vrcp.pop %v1900
    %v1902 = vmul.f32 1.0, %v1901
    %v1903 = vxor.u32 %v1894, 2147483648
    %v1904 = vmul.f32 %v1903, 1.442695
    %v1905 = vpow.pop %v1904
    %v1906 = vadd.f32 %v1905, 1.0
    %v1907 = vrcp.pop %v1906
    %v1908 = vmul.f32 1.0, %v1907
    %v1909 = vtanh.pop %v1895
    %v1910 = vxor.u32 %v1896, 2147483648
    %v1911 = vmul.f32 %v1910, 1.442695
    %v1912 = vpow.pop %v1911
    %v1913 = vadd.f32 %v1912, 1.0
    %v1914 = vrcp.pop %v1913
    %v1915 = vmul.f32 1.0, %v1914
    %v1916 = vmul.f32 %v1908, %v1698
    %v1917 = vmul.f32 %v1902, %v1909
    %v1918 = vadd.f32 %v1916, %v1917
    %v1919 = vtanh.pop %v1918
    %v1920 = vmul.f32 %v1915, %v1919
    %v1921 = vpack.c.bf16 %v1920, %v1920
    %1922 = vmatprep.subr.bf16.mxu0 %v477
    %1923 = vmatpush1.bf16.msra.mxu0 %v476
    %1924 = vmatprep.subr.bf16.mxu0 %v473
    %1925 = vmatpush1.bf16.msra.mxu0 %v472
    %1926 = vmatprep.subr.bf16.mxu0 %v469
    %1927 = vmatpush1.bf16.msra.mxu0 %v468
    %1928 = vmatprep.subr.bf16.mxu0 %v465
    %1929 = vmatpush1.bf16.msra.mxu0 %v464
    %1930 = vmatprep.subr.bf16.mxu0 %v461
    %1931 = vmatpush1.bf16.msra.mxu0 %v460
    %1932 = vmatprep.subr.bf16.mxu0 %v457
    %1933 = vmatpush1.bf16.msra.mxu0 %v456
    %1934 = vmatprep.subr.bf16.mxu0 %v453
    %1935 = vmatpush1.bf16.msra.mxu0 %v452
    %1936 = vmatprep.subr.bf16.mxu0 %v449
    %1937 = vmatpush1.bf16.msra.mxu0 %v448
    %1938 = vmatprep.subr.bf16.mxu0 %v1007
    %1939 = vmatpush2.bf16.msra.mxu0 %v1006
    %1940 = vmatprep.subr.bf16.mxu0 %v1003
    %1941 = vmatpush2.bf16.msra.mxu0 %v1002
    %1942 = vmatprep.subr.bf16.mxu0 %v999
    %1943 = vmatpush2.bf16.msra.mxu0 %v998
    %1944 = vmatprep.subr.bf16.mxu0 %v995
    %1945 = vmatpush2.bf16.msra.mxu0 %v994
    %1946 = vmatprep.subr.bf16.mxu0 %v991
    %1947 = vmatpush2.bf16.msra.mxu0 %v990
    %1948 = vmatprep.subr.bf16.mxu0 %v987
    %1949 = vmatpush2.bf16.msra.mxu0 %v986
    %1950 = vmatprep.subr.bf16.mxu0 %v983
    %1951 = vmatpush2.bf16.msra.mxu0 %v982
    %1952 = vmatprep.subr.bf16.mxu0 %v979
    %1953 = vmatpush2.bf16.msra.mxu0 %v978
    %1954 = vmatprep.mubr.bf16.mxu0 %v1808
    %1955 = vmatmul.mubr.bf16.gmra.mxu0 %v1921
    %v1956 = vpop.f32.mrf.mxu0
    %v1957 = vadd.f32 %v318, %v1956
    %v1958 = vpop.f32.mrf.mxu0
    %v1959 = vadd.f32 %v322, %v1958
    %v1960 = vpop.f32.mrf.mxu0
    %v1961 = vpop.f32.mrf.mxu0
    %1962 = vdwg.mxu0
    %1963 = vmatprep.subr.bf16.mxu0 %v479
    %1964 = vmatpush1.bf16.msra.mxu0 %v478
    %1965 = vmatprep.subr.bf16.mxu0 %v475
    %1966 = vmatpush1.bf16.msra.mxu0 %v474
    %1967 = vmatprep.subr.bf16.mxu0 %v471
    %1968 = vmatpush1.bf16.msra.mxu0 %v470
    %1969 = vmatprep.subr.bf16.mxu0 %v467
    %1970 = vmatpush1.bf16.msra.mxu0 %v466
    %1971 = vmatprep.subr.bf16.mxu0 %v463
    %1972 = vmatpush1.bf16.msra.mxu0 %v462
    %1973 = vmatprep.subr.bf16.mxu0 %v459
    %1974 = vmatpush1.bf16.msra.mxu0 %v458
    %1975 = vmatprep.subr.bf16.mxu0 %v455
    %1976 = vmatpush1.bf16.msra.mxu0 %v454
    %1977 = vmatprep.subr.bf16.mxu0 %v451
    %1978 = vmatpush1.bf16.msra.mxu0 %v450
    %1979 = vmatprep.subr.bf16.mxu0 %v1009
    %1980 = vmatpush2.bf16.msra.mxu0 %v1008
    %1981 = vmatprep.subr.bf16.mxu0 %v1005
    %1982 = vmatpush2.bf16.msra.mxu0 %v1004
    %1983 = vmatprep.subr.bf16.mxu0 %v1001
    %1984 = vmatpush2.bf16.msra.mxu0 %v1000
    %1985 = vmatprep.subr.bf16.mxu0 %v997
    %1986 = vmatpush2.bf16.msra.mxu0 %v996
    %1987 = vmatprep.subr.bf16.mxu0 %v993
    %1988 = vmatpush2.bf16.msra.mxu0 %v992
    %1989 = vmatprep.subr.bf16.mxu0 %v989
    %1990 = vmatpush2.bf16.msra.mxu0 %v988
    %1991 = vmatprep.subr.bf16.mxu0 %v985
    %1992 = vmatpush2.bf16.msra.mxu0 %v984
    %1993 = vmatprep.subr.bf16.mxu0 %v981
    %1994 = vmatpush2.bf16.msra.mxu0 %v980
    %1995 = vmatprep.mubr.bf16.mxu0 %v1808
    %1996 = vmatmul.mubr.bf16.gmra.mxu0 %v1921
    %v1997 = vpop.f32.mrf.mxu0
    %v1998 = vadd.f32 %v326, %v1997
    %v1999 = vpop.f32.mrf.mxu0
    %v2000 = vadd.f32 %v330, %v1999
    %v2001 = vpop.f32.mrf.mxu0
    %v2002 = vpop.f32.mrf.mxu0
    %2003 = vdwg.mxu0
    %v2004 = vxor.u32 %v1957, 2147483648
    %v2005 = vmul.f32 %v2004, 1.442695
    %v2006 = vpow.pop %v2005
    %v2007 = vadd.f32 %v2006, 1.0
    %v2008 = vrcp.pop %v2007
    %v2009 = vmul.f32 1.0, %v2008
    %v2010 = vxor.u32 %v1959, 2147483648
    %v2011 = vmul.f32 %v2010, 1.442695
    %v2012 = vpow.pop %v2011
    %v2013 = vadd.f32 %v2012, 1.0
    %v2014 = vrcp.pop %v2013
    %v2015 = vmul.f32 1.0, %v2014
    %v2016 = vtanh.pop %v1998
    %v2017 = vxor.u32 %v2000, 2147483648
    %v2018 = vmul.f32 %v2017, 1.442695
    %v2019 = vpow.pop %v2018
    %v2020 = vadd.f32 %v2019, 1.0
    %v2021 = vrcp.pop %v2020
    %v2022 = vmul.f32 1.0, %v2021
    %v2023 = vmul.f32 %v2015, %v1805
    %v2024 = vmul.f32 %v2009, %v2016
    %v2025 = vadd.f32 %v2023, %v2024
    %v2026 = vtanh.pop %v2025
    %v2027 = vmul.f32 %v2022, %v2026
    %v2028 = vpack.c.bf16 %v2027, %v2027
    %s2029 = scalar_lea.vmem [#allocation2], 20
    %2030 = vst [vmem:[%s2029] sm:$0xf] %v2028
    %2031 = vmatprep.subr.bf16.mxu0 %v736
    %2032 = vmatpush1.bf16.msra.mxu0 %v735
    %2033 = vmatprep.subr.bf16.mxu0 %v732
    %2034 = vmatpush1.bf16.msra.mxu0 %v731
    %2035 = vmatprep.subr.bf16.mxu0 %v728
    %2036 = vmatpush1.bf16.msra.mxu0 %v727
    %2037 = vmatprep.subr.bf16.mxu0 %v724
    %2038 = vmatpush1.bf16.msra.mxu0 %v723
    %2039 = vmatprep.subr.bf16.mxu0 %v720
    %2040 = vmatpush1.bf16.msra.mxu0 %v719
    %2041 = vmatprep.subr.bf16.mxu0 %v716
    %2042 = vmatpush1.bf16.msra.mxu0 %v715
    %2043 = vmatprep.subr.bf16.mxu0 %v712
    %2044 = vmatpush1.bf16.msra.mxu0 %v711
    %2045 = vmatprep.subr.bf16.mxu0 %v708
    %2046 = vmatpush1.bf16.msra.mxu0 %v707
    %2047 = vmatprep.subr.bf16.mxu0 0
    %2048 = vmatpush2.bf16.msra.mxu0 0
    %2049 = vmatprep.subr.bf16.mxu0 0
    %2050 = vmatpush2.bf16.msra.mxu0 0
    %2051 = vmatprep.subr.bf16.mxu0 0
    %2052 = vmatpush2.bf16.msra.mxu0 0
    %2053 = vmatprep.subr.bf16.mxu0 0
    %2054 = vmatpush2.bf16.msra.mxu0 0
    %2055 = vmatprep.subr.bf16.mxu0 0
    %2056 = vmatpush2.bf16.msra.mxu0 0
    %2057 = vmatprep.subr.bf16.mxu0 0
    %2058 = vmatpush2.bf16.msra.mxu0 0
    %2059 = vmatprep.subr.bf16.mxu0 0
    %2060 = vmatpush2.bf16.msra.mxu0 0
    %2061 = vmatprep.subr.bf16.mxu0 0
    %2062 = vmatpush2.bf16.msra.mxu0 0
    %2063 = vmatprep.mubr.bf16.mxu0 0
    %2064 = vmatmul.mubr.bf16.gmra.mxu0 %v1921
    %v2065 = vpop.f32.mrf.mxu0
    %v2066 = vadd.f32 0.0, %v2065
    %v2067 = vpop.f32.mrf.mxu0
    %v2068 = vadd.f32 0.0, %v2067
    %v2069 = vpop.f32.mrf.mxu0
    %v2070 = vpop.f32.mrf.mxu0
    %2071 = vdwg.mxu0
    %2072 = vmatprep.subr.bf16.mxu0 %v738
    %2073 = vmatpush1.bf16.msra.mxu0 %v737
    %2074 = vmatprep.subr.bf16.mxu0 %v734
    %2075 = vmatpush1.bf16.msra.mxu0 %v733
    %2076 = vmatprep.subr.bf16.mxu0 %v730
    %2077 = vmatpush1.bf16.msra.mxu0 %v729
    %2078 = vmatprep.subr.bf16.mxu0 %v726
    %2079 = vmatpush1.bf16.msra.mxu0 %v725
    %2080 = vmatprep.subr.bf16.mxu0 %v722
    %2081 = vmatpush1.bf16.msra.mxu0 %v721
    %2082 = vmatprep.subr.bf16.mxu0 %v718
    %2083 = vmatpush1.bf16.msra.mxu0 %v717
    %2084 = vmatprep.subr.bf16.mxu0 %v714
    %2085 = vmatpush1.bf16.msra.mxu0 %v713
    %2086 = vmatprep.subr.bf16.mxu0 %v710
    %2087 = vmatpush1.bf16.msra.mxu0 %v709
    %2088 = vmatprep.subr.bf16.mxu0 0
    %2089 = vmatpush2.bf16.msra.mxu0 0
    %2090 = vmatprep.subr.bf16.mxu0 0
    %2091 = vmatpush2.bf16.msra.mxu0 0
    %2092 = vmatprep.subr.bf16.mxu0 0
    %2093 = vmatpush2.bf16.msra.mxu0 0
    %2094 = vmatprep.subr.bf16.mxu0 0
    %2095 = vmatpush2.bf16.msra.mxu0 0
    %2096 = vmatprep.subr.bf16.mxu0 0
    %2097 = vmatpush2.bf16.msra.mxu0 0
    %2098 = vmatprep.subr.bf16.mxu0 0
    %2099 = vmatpush2.bf16.msra.mxu0 0
    %2100 = vmatprep.subr.bf16.mxu0 0
    %2101 = vmatpush2.bf16.msra.mxu0 0
    %2102 = vmatprep.subr.bf16.mxu0 0
    %2103 = vmatpush2.bf16.msra.mxu0 0
    %2104 = vmatprep.mubr.bf16.mxu0 0
    %2105 = vmatmul.mubr.bf16.gmra.mxu0 %v1921
    %v2106 = vpop.f32.mrf.mxu0
    %v2107 = vadd.f32 0.0, %v2106
    %v2108 = vpop.f32.mrf.mxu0
    %v2109 = vadd.f32 0.0, %v2108
    %v2110 = vpop.f32.mrf.mxu0
    %v2111 = vpop.f32.mrf.mxu0
    %2112 = vdwg.mxu0
    %v2113 = vadd.f32 %v266, %v2066
    %v2114 = vadd.f32 %v268, %v2068
    %v2115 = vadd.f32 %v307, %v2107
    %v2116 = vadd.f32 %v309, %v2109
    %v2117 = vxor.u32 %v2113, 2147483648
    %v2118 = vmul.f32 %v2117, 1.442695
    %v2119 = vpow.pop %v2118
    %v2120 = vadd.f32 %v2119, 1.0
    %v2121 = vrcp.pop %v2120
    %v2122 = vmul.f32 1.0, %v2121
    %v2123 = vxor.u32 %v2114, 2147483648
    %v2124 = vmul.f32 %v2123, 1.442695
    %v2125 = vpow.pop %v2124
    %v2126 = vadd.f32 %v2125, 1.0
    %v2127 = vrcp.pop %v2126
    %v2128 = vmul.f32 1.0, %v2127
    %v2129 = vtanh.pop %v2115
    %v2130 = vxor.u32 %v2116, 2147483648
    %v2131 = vmul.f32 %v2130, 1.442695
    %v2132 = vpow.pop %v2131
    %v2133 = vadd.f32 %v2132, 1.0
    %v2134 = vrcp.pop %v2133
    %v2135 = vmul.f32 1.0, %v2134
    %v2136 = vmul.f32 %v2128, %v1918
    %v2137 = vmul.f32 %v2122, %v2129
    %v2138 = vadd.f32 %v2136, %v2137
    %v2139 = vtanh.pop %v2138
    %v2140 = vmul.f32 %v2135, %v2139
    %v2141 = vpack.c.bf16 %v2140, %v2140
    %2142 = vmatprep.subr.bf16.mxu0 %v477
    %2143 = vmatpush1.bf16.msra.mxu0 %v476
    %2144 = vmatprep.subr.bf16.mxu0 %v473
    %2145 = vmatpush1.bf16.msra.mxu0 %v472
    %2146 = vmatprep.subr.bf16.mxu0 %v469
    %2147 = vmatpush1.bf16.msra.mxu0 %v468
    %2148 = vmatprep.subr.bf16.mxu0 %v465
    %2149 = vmatpush1.bf16.msra.mxu0 %v464
    %2150 = vmatprep.subr.bf16.mxu0 %v461
    %2151 = vmatpush1.bf16.msra.mxu0 %v460
    %2152 = vmatprep.subr.bf16.mxu0 %v457
    %2153 = vmatpush1.bf16.msra.mxu0 %v456
    %2154 = vmatprep.subr.bf16.mxu0 %v453
    %2155 = vmatpush1.bf16.msra.mxu0 %v452
    %2156 = vmatprep.subr.bf16.mxu0 %v449
    %2157 = vmatpush1.bf16.msra.mxu0 %v448
    %2158 = vmatprep.subr.bf16.mxu0 %v1007
    %2159 = vmatpush2.bf16.msra.mxu0 %v1006
    %2160 = vmatprep.subr.bf16.mxu0 %v1003
    %2161 = vmatpush2.bf16.msra.mxu0 %v1002
    %2162 = vmatprep.subr.bf16.mxu0 %v999
    %2163 = vmatpush2.bf16.msra.mxu0 %v998
    %2164 = vmatprep.subr.bf16.mxu0 %v995
    %2165 = vmatpush2.bf16.msra.mxu0 %v994
    %2166 = vmatprep.subr.bf16.mxu0 %v991
    %2167 = vmatpush2.bf16.msra.mxu0 %v990
    %2168 = vmatprep.subr.bf16.mxu0 %v987
    %2169 = vmatpush2.bf16.msra.mxu0 %v986
    %2170 = vmatprep.subr.bf16.mxu0 %v983
    %2171 = vmatpush2.bf16.msra.mxu0 %v982
    %2172 = vmatprep.subr.bf16.mxu0 %v979
    %2173 = vmatpush2.bf16.msra.mxu0 %v978
    %2174 = vmatprep.mubr.bf16.mxu0 %v2028
    %2175 = vmatmul.mubr.bf16.gmra.mxu0 %v2141
    %v2176 = vpop.f32.mrf.mxu0
    %v2177 = vadd.f32 %v318, %v2176
    %v2178 = vpop.f32.mrf.mxu0
    %v2179 = vadd.f32 %v322, %v2178
    %v2180 = vpop.f32.mrf.mxu0
    %v2181 = vpop.f32.mrf.mxu0
    %2182 = vdwg.mxu0
    %2183 = vmatprep.subr.bf16.mxu0 %v479
    %2184 = vmatpush1.bf16.msra.mxu0 %v478
    %2185 = vmatprep.subr.bf16.mxu0 %v475
    %2186 = vmatpush1.bf16.msra.mxu0 %v474
    %2187 = vmatprep.subr.bf16.mxu0 %v471
    %2188 = vmatpush1.bf16.msra.mxu0 %v470
    %2189 = vmatprep.subr.bf16.mxu0 %v467
    %2190 = vmatpush1.bf16.msra.mxu0 %v466
    %2191 = vmatprep.subr.bf16.mxu0 %v463
    %2192 = vmatpush1.bf16.msra.mxu0 %v462
    %2193 = vmatprep.subr.bf16.mxu0 %v459
    %2194 = vmatpush1.bf16.msra.mxu0 %v458
    %2195 = vmatprep.subr.bf16.mxu0 %v455
    %2196 = vmatpush1.bf16.msra.mxu0 %v454
    %2197 = vmatprep.subr.bf16.mxu0 %v451
    %2198 = vmatpush1.bf16.msra.mxu0 %v450
    %2199 = vmatprep.subr.bf16.mxu0 %v1009
    %2200 = vmatpush2.bf16.msra.mxu0 %v1008
    %2201 = vmatprep.subr.bf16.mxu0 %v1005
    %2202 = vmatpush2.bf16.msra.mxu0 %v1004
    %2203 = vmatprep.subr.bf16.mxu0 %v1001
    %2204 = vmatpush2.bf16.msra.mxu0 %v1000
    %2205 = vmatprep.subr.bf16.mxu0 %v997
    %2206 = vmatpush2.bf16.msra.mxu0 %v996
    %2207 = vmatprep.subr.bf16.mxu0 %v993
    %2208 = vmatpush2.bf16.msra.mxu0 %v992
    %2209 = vmatprep.subr.bf16.mxu0 %v989
    %2210 = vmatpush2.bf16.msra.mxu0 %v988
    %2211 = vmatprep.subr.bf16.mxu0 %v985
    %2212 = vmatpush2.bf16.msra.mxu0 %v984
    %2213 = vmatprep.subr.bf16.mxu0 %v981
    %2214 = vmatpush2.bf16.msra.mxu0 %v980
    %2215 = vmatprep.mubr.bf16.mxu0 %v2028
    %2216 = vmatmul.mubr.bf16.gmra.mxu0 %v2141
    %v2217 = vpop.f32.mrf.mxu0
    %v2218 = vadd.f32 %v326, %v2217
    %v2219 = vpop.f32.mrf.mxu0
    %v2220 = vadd.f32 %v330, %v2219
    %v2221 = vpop.f32.mrf.mxu0
    %v2222 = vpop.f32.mrf.mxu0
    %2223 = vdwg.mxu0
    %v2224 = vxor.u32 %v2177, 2147483648
    %v2225 = vmul.f32 %v2224, 1.442695
    %v2226 = vpow.pop %v2225
    %v2227 = vadd.f32 %v2226, 1.0
    %v2228 = vrcp.pop %v2227
    %v2229 = vmul.f32 1.0, %v2228
    %v2230 = vxor.u32 %v2179, 2147483648
    %v2231 = vmul.f32 %v2230, 1.442695
    %v2232 = vpow.pop %v2231
    %v2233 = vadd.f32 %v2232, 1.0
    %v2234 = vrcp.pop %v2233
    %v2235 = vmul.f32 1.0, %v2234
    %v2236 = vtanh.pop %v2218
    %v2237 = vxor.u32 %v2220, 2147483648
    %v2238 = vmul.f32 %v2237, 1.442695
    %v2239 = vpow.pop %v2238
    %v2240 = vadd.f32 %v2239, 1.0
    %v2241 = vrcp.pop %v2240
    %v2242 = vmul.f32 1.0, %v2241
    %v2243 = vmul.f32 %v2235, %v2025
    %v2244 = vmul.f32 %v2229, %v2236
    %v2245 = vadd.f32 %v2243, %v2244
    %v2246 = vtanh.pop %v2245
    %v2247 = vmul.f32 %v2242, %v2246
    %v2248 = vpack.c.bf16 %v2247, %v2247
    %s2249 = scalar_lea.vmem [#allocation2], 24
    %2250 = vst [vmem:[%s2249] sm:$0xf] %v2248
    %2251 = vmatprep.subr.bf16.mxu0 %v736
    %2252 = vmatpush1.bf16.msra.mxu0 %v735
    %2253 = vmatprep.subr.bf16.mxu0 %v732
    %2254 = vmatpush1.bf16.msra.mxu0 %v731
    %2255 = vmatprep.subr.bf16.mxu0 %v728
    %2256 = vmatpush1.bf16.msra.mxu0 %v727
    %2257 = vmatprep.subr.bf16.mxu0 %v724
    %2258 = vmatpush1.bf16.msra.mxu0 %v723
    %2259 = vmatprep.subr.bf16.mxu0 %v720
    %2260 = vmatpush1.bf16.msra.mxu0 %v719
    %2261 = vmatprep.subr.bf16.mxu0 %v716
    %2262 = vmatpush1.bf16.msra.mxu0 %v715
    %2263 = vmatprep.subr.bf16.mxu0 %v712
    %2264 = vmatpush1.bf16.msra.mxu0 %v711
    %2265 = vmatprep.subr.bf16.mxu0 %v708
    %2266 = vmatpush1.bf16.msra.mxu0 %v707
    %2267 = vmatprep.subr.bf16.mxu0 0
    %2268 = vmatpush2.bf16.msra.mxu0 0
    %2269 = vmatprep.subr.bf16.mxu0 0
    %2270 = vmatpush2.bf16.msra.mxu0 0
    %2271 = vmatprep.subr.bf16.mxu0 0
    %2272 = vmatpush2.bf16.msra.mxu0 0
    %2273 = vmatprep.subr.bf16.mxu0 0
    %2274 = vmatpush2.bf16.msra.mxu0 0
    %2275 = vmatprep.subr.bf16.mxu0 0
    %2276 = vmatpush2.bf16.msra.mxu0 0
    %2277 = vmatprep.subr.bf16.mxu0 0
    %2278 = vmatpush2.bf16.msra.mxu0 0
    %2279 = vmatprep.subr.bf16.mxu0 0
    %2280 = vmatpush2.bf16.msra.mxu0 0
    %2281 = vmatprep.subr.bf16.mxu0 0
    %2282 = vmatpush2.bf16.msra.mxu0 0
    %2283 = vmatprep.mubr.bf16.mxu0 0
    %2284 = vmatmul.mubr.bf16.gmra.mxu0 %v2141
    %v2285 = vpop.f32.mrf.mxu0
    %v2286 = vadd.f32 0.0, %v2285
    %v2287 = vpop.f32.mrf.mxu0
    %v2288 = vadd.f32 0.0, %v2287
    %v2289 = vpop.f32.mrf.mxu0
    %v2290 = vpop.f32.mrf.mxu0
    %2291 = vdwg.mxu0
    %2292 = vmatprep.subr.bf16.mxu0 %v738
    %2293 = vmatpush1.bf16.msra.mxu0 %v737
    %2294 = vmatprep.subr.bf16.mxu0 %v734
    %2295 = vmatpush1.bf16.msra.mxu0 %v733
    %2296 = vmatprep.subr.bf16.mxu0 %v730
    %2297 = vmatpush1.bf16.msra.mxu0 %v729
    %2298 = vmatprep.subr.bf16.mxu0 %v726
    %2299 = vmatpush1.bf16.msra.mxu0 %v725
    %2300 = vmatprep.subr.bf16.mxu0 %v722
    %2301 = vmatpush1.bf16.msra.mxu0 %v721
    %2302 = vmatprep.subr.bf16.mxu0 %v718
    %2303 = vmatpush1.bf16.msra.mxu0 %v717
    %2304 = vmatprep.subr.bf16.mxu0 %v714
    %2305 = vmatpush1.bf16.msra.mxu0 %v713
    %2306 = vmatprep.subr.bf16.mxu0 %v710
    %2307 = vmatpush1.bf16.msra.mxu0 %v709
    %2308 = vmatprep.subr.bf16.mxu0 0
    %2309 = vmatpush2.bf16.msra.mxu0 0
    %2310 = vmatprep.subr.bf16.mxu0 0
    %2311 = vmatpush2.bf16.msra.mxu0 0
    %2312 = vmatprep.subr.bf16.mxu0 0
    %2313 = vmatpush2.bf16.msra.mxu0 0
    %2314 = vmatprep.subr.bf16.mxu0 0
    %2315 = vmatpush2.bf16.msra.mxu0 0
    %2316 = vmatprep.subr.bf16.mxu0 0
    %2317 = vmatpush2.bf16.msra.mxu0 0
    %2318 = vmatprep.subr.bf16.mxu0 0
    %2319 = vmatpush2.bf16.msra.mxu0 0
    %2320 = vmatprep.subr.bf16.mxu0 0
    %2321 = vmatpush2.bf16.msra.mxu0 0
    %2322 = vmatprep.subr.bf16.mxu0 0
    %2323 = vmatpush2.bf16.msra.mxu0 0
    %2324 = vmatprep.mubr.bf16.mxu0 0
    %2325 = vmatmul.mubr.bf16.gmra.mxu0 %v2141
    %v2326 = vpop.f32.mrf.mxu0
    %v2327 = vadd.f32 0.0, %v2326
    %v2328 = vpop.f32.mrf.mxu0
    %v2329 = vadd.f32 0.0, %v2328
    %v2330 = vpop.f32.mrf.mxu0
    %v2331 = vpop.f32.mrf.mxu0
    %2332 = vdwg.mxu0
    %v2333 = vadd.f32 %v266, %v2286
    %v2334 = vadd.f32 %v268, %v2288
    %v2335 = vadd.f32 %v307, %v2327
    %v2336 = vadd.f32 %v309, %v2329
    %v2337 = vxor.u32 %v2333, 2147483648
    %v2338 = vmul.f32 %v2337, 1.442695
    %v2339 = vpow.pop %v2338
    %v2340 = vadd.f32 %v2339, 1.0
    %v2341 = vrcp.pop %v2340
    %v2342 = vmul.f32 1.0, %v2341
    %v2343 = vxor.u32 %v2334, 2147483648
    %v2344 = vmul.f32 %v2343, 1.442695
    %v2345 = vpow.pop %v2344
    %v2346 = vadd.f32 %v2345, 1.0
    %v2347 = vrcp.pop %v2346
    %v2348 = vmul.f32 1.0, %v2347
    %v2349 = vtanh.pop %v2335
    %v2350 = vxor.u32 %v2336, 2147483648
    %v2351 = vmul.f32 %v2350, 1.442695
    %v2352 = vpow.pop %v2351
    %v2353 = vadd.f32 %v2352, 1.0
    %v2354 = vrcp.pop %v2353
    %v2355 = vmul.f32 1.0, %v2354
    %v2356 = vmul.f32 %v2348, %v2138
    %v2357 = vmul.f32 %v2342, %v2349
    %v2358 = vadd.f32 %v2356, %v2357
    %v2359 = vtanh.pop %v2358
    %v2360 = vmul.f32 %v2355, %v2359
    %v2361 = vpack.c.bf16 %v2360, %v2360
    %2362 = vmatprep.subr.bf16.mxu0 %v477
    %2363 = vmatpush1.bf16.msra.mxu0 %v476
    %2364 = vmatprep.subr.bf16.mxu0 %v473
    %2365 = vmatpush1.bf16.msra.mxu0 %v472
    %2366 = vmatprep.subr.bf16.mxu0 %v469
    %2367 = vmatpush1.bf16.msra.mxu0 %v468
    %2368 = vmatprep.subr.bf16.mxu0 %v465
    %2369 = vmatpush1.bf16.msra.mxu0 %v464
    %2370 = vmatprep.subr.bf16.mxu0 %v461
    %2371 = vmatpush1.bf16.msra.mxu0 %v460
    %2372 = vmatprep.subr.bf16.mxu0 %v457
    %2373 = vmatpush1.bf16.msra.mxu0 %v456
    %2374 = vmatprep.subr.bf16.mxu0 %v453
    %2375 = vmatpush1.bf16.msra.mxu0 %v452
    %2376 = vmatprep.subr.bf16.mxu0 %v449
    %2377 = vmatpush1.bf16.msra.mxu0 %v448
    %2378 = vmatprep.subr.bf16.mxu0 %v1007
    %2379 = vmatpush2.bf16.msra.mxu0 %v1006
    %2380 = vmatprep.subr.bf16.mxu0 %v1003
    %2381 = vmatpush2.bf16.msra.mxu0 %v1002
    %2382 = vmatprep.subr.bf16.mxu0 %v999
    %2383 = vmatpush2.bf16.msra.mxu0 %v998
    %2384 = vmatprep.subr.bf16.mxu0 %v995
    %2385 = vmatpush2.bf16.msra.mxu0 %v994
    %2386 = vmatprep.subr.bf16.mxu0 %v991
    %2387 = vmatpush2.bf16.msra.mxu0 %v990
    %2388 = vmatprep.subr.bf16.mxu0 %v987
    %2389 = vmatpush2.bf16.msra.mxu0 %v986
    %2390 = vmatprep.subr.bf16.mxu0 %v983
    %2391 = vmatpush2.bf16.msra.mxu0 %v982
    %2392 = vmatprep.subr.bf16.mxu0 %v979
    %2393 = vmatpush2.bf16.msra.mxu0 %v978
    %2394 = vmatprep.mubr.bf16.mxu0 %v2248
    %2395 = vmatmul.mubr.bf16.gmra.mxu0 %v2361
    %v2396 = vpop.f32.mrf.mxu0
    %v2397 = vadd.f32 %v318, %v2396
    %v2398 = vpop.f32.mrf.mxu0
    %v2399 = vadd.f32 %v322, %v2398
    %v2400 = vpop.f32.mrf.mxu0
    %v2401 = vpop.f32.mrf.mxu0
    %2402 = vdwg.mxu0
    %2403 = vmatprep.subr.bf16.mxu0 %v479
    %2404 = vmatpush1.bf16.msra.mxu0 %v478
    %2405 = vmatprep.subr.bf16.mxu0 %v475
    %2406 = vmatpush1.bf16.msra.mxu0 %v474
    %2407 = vmatprep.subr.bf16.mxu0 %v471
    %2408 = vmatpush1.bf16.msra.mxu0 %v470
    %2409 = vmatprep.subr.bf16.mxu0 %v467
    %2410 = vmatpush1.bf16.msra.mxu0 %v466
    %2411 = vmatprep.subr.bf16.mxu0 %v463
    %2412 = vmatpush1.bf16.msra.mxu0 %v462
    %2413 = vmatprep.subr.bf16.mxu0 %v459
    %2414 = vmatpush1.bf16.msra.mxu0 %v458
    %2415 = vmatprep.subr.bf16.mxu0 %v455
    %2416 = vmatpush1.bf16.msra.mxu0 %v454
    %2417 = vmatprep.subr.bf16.mxu0 %v451
    %2418 = vmatpush1.bf16.msra.mxu0 %v450
    %2419 = vmatprep.subr.bf16.mxu0 %v1009
    %2420 = vmatpush2.bf16.msra.mxu0 %v1008
    %2421 = vmatprep.subr.bf16.mxu0 %v1005
    %2422 = vmatpush2.bf16.msra.mxu0 %v1004
    %2423 = vmatprep.subr.bf16.mxu0 %v1001
    %2424 = vmatpush2.bf16.msra.mxu0 %v1000
    %2425 = vmatprep.subr.bf16.mxu0 %v997
    %2426 = vmatpush2.bf16.msra.mxu0 %v996
    %2427 = vmatprep.subr.bf16.mxu0 %v993
    %2428 = vmatpush2.bf16.msra.mxu0 %v992
    %2429 = vmatprep.subr.bf16.mxu0 %v989
    %2430 = vmatpush2.bf16.msra.mxu0 %v988
    %2431 = vmatprep.subr.bf16.mxu0 %v985
    %2432 = vmatpush2.bf16.msra.mxu0 %v984
    %2433 = vmatprep.subr.bf16.mxu0 %v981
    %2434 = vmatpush2.bf16.msra.mxu0 %v980
    %2435 = vmatprep.mubr.bf16.mxu0 %v2248
    %2436 = vmatmul.mubr.bf16.gmra.mxu0 %v2361
    %v2437 = vpop.f32.mrf.mxu0
    %v2438 = vadd.f32 %v326, %v2437
    %v2439 = vpop.f32.mrf.mxu0
    %v2440 = vadd.f32 %v330, %v2439
    %v2441 = vpop.f32.mrf.mxu0
    %v2442 = vpop.f32.mrf.mxu0
    %2443 = vdwg.mxu0
    %v2444 = vxor.u32 %v2397, 2147483648
    %v2445 = vmul.f32 %v2444, 1.442695
    %v2446 = vpow.pop %v2445
    %v2447 = vadd.f32 %v2446, 1.0
    %v2448 = vrcp.pop %v2447
    %v2449 = vmul.f32 1.0, %v2448
    %v2450 = vxor.u32 %v2399, 2147483648
    %v2451 = vmul.f32 %v2450, 1.442695
    %v2452 = vpow.pop %v2451
    %v2453 = vadd.f32 %v2452, 1.0
    %v2454 = vrcp.pop %v2453
    %v2455 = vmul.f32 1.0, %v2454
    %v2456 = vtanh.pop %v2438
    %v2457 = vxor.u32 %v2440, 2147483648
    %v2458 = vmul.f32 %v2457, 1.442695
    %v2459 = vpow.pop %v2458
    %v2460 = vadd.f32 %v2459, 1.0
    %v2461 = vrcp.pop %v2460
    %v2462 = vmul.f32 1.0, %v2461
    %v2463 = vmul.f32 %v2455, %v2245
    %v2464 = vmul.f32 %v2449, %v2456
    %v2465 = vadd.f32 %v2463, %v2464
    %v2466 = vtanh.pop %v2465
    %v2467 = vmul.f32 %v2462, %v2466
    %v2468 = vpack.c.bf16 %v2467, %v2467
    %s2469 = scalar_lea.vmem [#allocation2], 28
    %2470 = vst [vmem:[%s2469] sm:$0xf] %v2468
    %v2471 = vld [vmem:[#allocation2] sm:$0xf]
    %v2472 = vld [vmem:[#allocation2 + $0x4] sm:$0xf]
    %v2473 = vld [vmem:[#allocation2 + $0x8] sm:$0xf]
    %v2474 = vld [vmem:[#allocation2 + $0xc] sm:$0xf]
    %v2475 = vld [vmem:[#allocation2 + $0x10] sm:$0xf]
    %v2476 = vld [vmem:[#allocation2 + $0x14] sm:$0xf]
    %v2477 = vld [vmem:[#allocation2 + $0x18] sm:$0xf]
    %v2478 = vld [vmem:[#allocation2 + $0x1c] sm:$0xf]
    %v2479 = vld [vmem:[%s7] sm:$0x1]
    %v2481 = vlaneseq
    %v2482 = vshrl.u32 %v2481, 7
    %v2483 = vsub.s32 0, %v2482
    %v2484 = vrot.slane %v2479, %v2483
    %v2494 = vunpack.c.l.b16 %v2471
    %v2495 = vunpack.c.l.b16 %v2472
    %v2496 = vunpack.c.l.b16 %v2473
    %v2497 = vunpack.c.l.b16 %v2474
    %v2498 = vunpack.c.l.b16 %v2475
    %v2499 = vunpack.c.l.b16 %v2476
    %v2500 = vunpack.c.l.b16 %v2477
    %v2501 = vunpack.c.l.b16 %v2478
    %v2502 = vpack.c.b16 %v2495, %v2494
    %v2503 = vpack.c.b16 %v2497, %v2496
    %v2504 = vpack.c.b16 %v2499, %v2498
    %v2505 = vpack.c.b16 %v2501, %v2500
    %v2526 = vunpack.c.l.b16 %v163
    %v2527 = vunpack.c.l.b16 %v164
    %v2528 = vunpack.c.l.b16 %v165
    %v2529 = vunpack.c.l.b16 %v166
    %v2530 = vunpack.c.l.b16 %v167
    %v2531 = vunpack.c.l.b16 %v168
    %v2532 = vunpack.c.l.b16 %v169
    %v2533 = vunpack.c.l.b16 %v170
    %v2534 = vunpack.c.l.b16 %v171
    %v2535 = vunpack.c.l.b16 %v172
    %v2536 = vunpack.c.l.b16 %v173
    %v2537 = vunpack.c.l.b16 %v174
    %v2538 = vunpack.c.l.b16 %v175
    %v2539 = vunpack.c.l.b16 %v176
    %v2540 = vunpack.c.l.b16 %v177
    %v2541 = vunpack.c.l.b16 %v178
    %v2542 = vpack.c.b16 %v2527, %v2526
    %v2543 = vpack.c.b16 %v2529, %v2528
    %v2544 = vpack.c.b16 %v2531, %v2530
    %v2545 = vpack.c.b16 %v2533, %v2532
    %v2546 = vpack.c.b16 %v2535, %v2534
    %v2547 = vpack.c.b16 %v2537, %v2536
    %v2548 = vpack.c.b16 %v2539, %v2538
    %v2549 = vpack.c.b16 %v2541, %v2540
    %2558 = vmatprep.subr.bf16.mxu0 0
    %2559 = vmatpush1.bf16.msra.mxu0 %v2549
    %2560 = vmatprep.subr.bf16.mxu0 0
    %2561 = vmatpush1.bf16.msra.mxu0 %v2548
    %2562 = vmatprep.subr.bf16.mxu0 0
    %2563 = vmatpush1.bf16.msra.mxu0 %v2547
    %2564 = vmatprep.subr.bf16.mxu0 0
    %2565 = vmatpush1.bf16.msra.mxu0 %v2546
    %2566 = vmatprep.subr.bf16.mxu0 0
    %2567 = vmatpush1.bf16.msra.mxu0 %v2545
    %2568 = vmatprep.subr.bf16.mxu0 0
    %2569 = vmatpush1.bf16.msra.mxu0 %v2544
    %2570 = vmatprep.subr.bf16.mxu0 0
    %2571 = vmatpush1.bf16.msra.mxu0 %v2543
    %2572 = vmatprep.subr.bf16.mxu0 0
    %2573 = vmatpush1.bf16.msra.mxu0 %v2542
    %2574 = vmatprep.subr.bf16.mxu0 0
    %2575 = vmatpush2.bf16.msra.mxu0 0
    %2576 = vmatprep.subr.bf16.mxu0 0
    %2577 = vmatpush2.bf16.msra.mxu0 0
    %2578 = vmatprep.subr.bf16.mxu0 0
    %2579 = vmatpush2.bf16.msra.mxu0 0
    %2580 = vmatprep.subr.bf16.mxu0 0
    %2581 = vmatpush2.bf16.msra.mxu0 0
    %2582 = vmatprep.subr.bf16.mxu0 0
    %2583 = vmatpush2.bf16.msra.mxu0 0
    %2584 = vmatprep.subr.bf16.mxu0 0
    %2585 = vmatpush2.bf16.msra.mxu0 0
    %2586 = vmatprep.subr.bf16.mxu0 0
    %2587 = vmatpush2.bf16.msra.mxu0 0
    %2588 = vmatprep.subr.bf16.mxu0 0
    %2589 = vmatpush2.bf16.msra.mxu0 0
    %2590 = vmatprep.mubr.bf16.mxu0 0
    %2591 = vmatmul.mubr.bf16.gmra.mxu0 %v2502
    %v2592 = vpop.f32.mrf.mxu0
    %v2593 = vadd.f32 %v2484, %v2592
    %v2594 = vpop.f32.mrf.mxu0
    %v2595 = vpop.f32.mrf.mxu0
    %v2596 = vadd.f32 %v2484, %v2595
    %v2597 = vpop.f32.mrf.mxu0
    %2598 = vmatprep.mubr.bf16.mxu0 0
    %2599 = vmatmul.mubr.bf16.gmra.mxu0 %v2503
    %v2600 = vpop.f32.mrf.mxu0
    %v2601 = vadd.f32 %v2484, %v2600
    %v2602 = vpop.f32.mrf.mxu0
    %v2603 = vpop.f32.mrf.mxu0
    %v2604 = vadd.f32 %v2484, %v2603
    %v2605 = vpop.f32.mrf.mxu0
    %2606 = vmatprep.mubr.bf16.mxu0 0
    %2607 = vmatmul.mubr.bf16.gmra.mxu0 %v2504
    %v2608 = vpop.f32.mrf.mxu0
    %v2609 = vadd.f32 %v2484, %v2608
    %v2610 = vpop.f32.mrf.mxu0
    %v2611 = vpop.f32.mrf.mxu0
    %v2612 = vadd.f32 %v2484, %v2611
    %v2613 = vpop.f32.mrf.mxu0
    %2614 = vmatprep.mubr.bf16.mxu0 0
    %2615 = vmatmul.mubr.bf16.gmra.mxu0 %v2505
    %v2616 = vpop.f32.mrf.mxu0
    %v2617 = vadd.f32 %v2484, %v2616
    %v2618 = vpop.f32.mrf.mxu0
    %v2619 = vpop.f32.mrf.mxu0
    %v2620 = vadd.f32 %v2484, %v2619
    %v2621 = vpop.f32.mrf.mxu0
    %2622 = vdwg.mxu0
    %vm2623 = vcmask 15360
    %2624 = vst.msk [vmem:[%s8] sm:$0xff] %vm2623, %v2593
    %2625 = vst.msk [vmem:[%s8 + $0x8] sm:$0xff] %vm2623, %v2596
    %2626 = vst.msk [vmem:[%s8 + $0x10] sm:$0xff] %vm2623, %v2601
    %2627 = vst.msk [vmem:[%s8 + $0x18] sm:$0xff] %vm2623, %v2604
    %2628 = vst.msk [vmem:[%s8 + $0x20] sm:$0xff] %vm2623, %v2609
    %2629 = vst.msk [vmem:[%s8 + $0x28] sm:$0xff] %vm2623, %v2612
    %2630 = vst.msk [vmem:[%s8 + $0x30] sm:$0xff] %vm2623, %v2617
    %2631 = vst.msk [vmem:[%s8 + $0x38] sm:$0xff] %vm2623, %v2620
    %2632 = vst [vmem:[#allocation8] sm:$0xff] %v2360
    %s2633 = scalar_lea.vmem [#allocation8], 8
    %2634 = vst [vmem:[%s2633] sm:$0xff] %v2467
    %2635 = vst [vmem:[#allocation9] sm:$0xff] %v2358
    %s2636 = scalar_lea.vmem [#allocation9], 8
    %2637 = vst [vmem:[%s2636] sm:$0xff] %v2465
    // Predicated region
    $region42: #{tpu_custom_call.1} parent=1 // pred_check
      _
    $region43: #{tpu_custom_call.1} parent=1 // pred_check_branch
      %2639 = sbr.rel (0) target = $region45
    $region44: #{tpu_custom_call.1} parent=1 // pred_region
      _
    $region45: #{tpu_custom_call.1} parent=1 // pred_fallthru
      _
    // Predicated region
    $region46: #{tpu_custom_call.1} parent=1 // pred_check
      _
    $region47: #{tpu_custom_call.1} parent=1 // pred_check_branch
      %2641 = sbr.rel (0) target = $region49
    $region48: #{tpu_custom_call.1} parent=1 // pred_region
      %s2643 = ssub.s32 256, 256
      %2644 = vsyncadd [#allocation5], %s2643
      %s2645 = sshll.u32 [#allocation8], 4
      %s2646 = int_to_ptr.vmem [resolvable:$true] %s2645
      %2651 = dma.vmem_to_hbm [thread:$0]  %s2646, 256, %s9, [#allocation5], 128, 128, 8
    $region49: #{tpu_custom_call.1} parent=1 // pred_fallthru
      _
    // Predicated region
    $region50: #{tpu_custom_call.1} parent=1 // pred_check
      _
    $region51: #{tpu_custom_call.1} parent=1 // pred_check_branch
      %2653 = sbr.rel (0) target = $region53
    $region52: #{tpu_custom_call.1} parent=1 // pred_region
      %s2655 = ssub.s32 256, 256
      %2656 = vsyncadd [#allocation10], %s2655
      %s2657 = sshll.u32 [#allocation9], 4
      %s2658 = int_to_ptr.vmem [resolvable:$true] %s2657
      %2663 = dma.vmem_to_hbm [thread:$0]  %s2658, 256, %s10, [#allocation10], 128, 128, 8
    $region53: #{tpu_custom_call.1} parent=1 // pred_fallthru
      _
    // Predicated region
    $region54: #{tpu_custom_call.1} parent=1 // pred_check
      _
    $region55: #{tpu_custom_call.1} parent=1 // pred_check_branch
      %2665 = sbr.rel (0) target = $region57
    $region56: #{tpu_custom_call.1} parent=1 // pred_region
      _
    $region57: #{tpu_custom_call.1} parent=1 // pred_fallthru
      _
    // Predicated region
    $region58: #{tpu_custom_call.1} parent=1 // pred_check
      _
    $region59: #{tpu_custom_call.1} parent=1 // pred_check_branch
      %2667 = sbr.rel (0) target = $region61
    $region60: #{tpu_custom_call.1} parent=1 // pred_region
      %2668 = dma.done [#allocation5], 256
    $region61: #{tpu_custom_call.1} parent=1 // pred_fallthru
      _
    // Predicated region
    $region62: #{tpu_custom_call.1} parent=1 // pred_check
      _
    $region63: #{tpu_custom_call.1} parent=1 // pred_check_branch
      %2670 = sbr.rel (0) target = $region65
    $region64: #{tpu_custom_call.1} parent=1 // pred_region
      %2671 = dma.done [#allocation10], 256
    $region65: #{tpu_custom_call.1} parent=1 // pred_fallthru
      _
    %2672 = vsyncpa [#allocation4], 1
    %2673 = vsyncpa [#allocation7], 1
    %2674 = vsyncpa [#allocation5], 1
    %2675 = vsyncpa [#allocation10], 1

</llo_original>
